<compile_context>
chip_gen: v7x
topology: tpu7x:2x2x1
jax: 0.10.0
libtpu: 0.0.40
codegen_flags: <defaults>
</compile_context>

<pallas_src>
import functools

import jax
import jax.numpy as jnp
import numpy as np
from jax import lax
from jax.experimental import pallas as pl
from jax.experimental.pallas import tpu as pltpu


def _vel_net_kernel(x_ref, w_ref, b_ref, mask_ref, o_ref, col_ref, *, wp, ltot, ch):
    """One layer of the fused network (grid axis 0 = layer, sequential).

    x_ref    : (64, LTOT)    padded+flattened network input, batch folded into lanes
    w_ref    : (1, 64, 576)  this layer's weights, column = (kh*3+kw)*64 + cin
    b_ref    : (1, 64, 1)    this layer's bias
    mask_ref : (1, LTOT)     1.0 at interior (non-border, non-tail) lane positions
    o_ref    : (64, LTOT)    resident activation buffer / final output
    col_ref  : (576, LTOT)   im2col scratch (9 lane-rolled copies of the activation)
    """
    layer = pl.program_id(0)
    last = pl.num_programs(0) - 1

    # Layer 0: load the network input (zero border + zero lane tail included) into the
    # resident activation block.
    @pl.when(layer == 0)
    def _():
        o_ref[...] = x_ref[...]

    # 3x3 conv (pad=1) + LeakyReLU(0.2): fill the im2col scratch with full-width
    # XLU rolls (lane-aligned reads), then ONE (64,576)@(576,LTOT) MXU matmul.
    @pl.when(layer < last)
    def _():
        x_full = o_ref[...]                                       # aligned full-block load
        for kh in range(3):
            for kw in range(3):
                t = kh * 3 + kw
                off = (kh - 1) * wp + (kw - 1)                     # read offset rel. center
                sh = (-off) % ltot
                if sh == 0:
                    col_ref[t * ch:(t + 1) * ch, :] = x_full
                else:
                    col_ref[t * ch:(t + 1) * ch, :] = pltpu.roll(x_full, shift=sh, axis=1)
        # Deliberate accuracy contract: DEFAULT precision (bf16 MXU passes) with f32
        # accumulation across the whole K=576 contraction.
        acc = jnp.dot(w_ref[0], col_ref[...],
                      preferred_element_type=jnp.float32,
                      precision=lax.Precision.DEFAULT)
        acc = acc + b_ref[0]                                       # (64,1) bias broadcast
        y = jnp.where(acc >= 0, acc, acc * jnp.float32(0.2))       # LeakyReLU(0.2)
        # Kill border / lane-tail / cross-batch lanes, then a full-width aligned,
        # unmasked store (next layer relies on these zeros as its padding).
        o_ref[...] = (y * mask_ref[...]).astype(o_ref.dtype)

    # Final 1x1 conv: single center-tap (64,64)@(64,LTOT) dot, no activation.
    @pl.when(layer == last)
    def _():
        x_full = o_ref[...]
        wc = w_ref[0, :, 4 * ch:5 * ch]                            # center tap only
        acc = jnp.dot(wc, x_full, preferred_element_type=jnp.float32,
                      precision=lax.Precision.DEFAULT)
        acc = acc + b_ref[0]
        o_ref[...] = (acc * mask_ref[...]).astype(o_ref.dtype)


def vel_net_forward(x, conv_weights, conv_biases, final_weight, final_bias,
                    *, label_dsp_dim):
    """Forward of Vel_net_conv_two_label_dsp_dim_LeakyReLU_no_skip (is_batchnorm=False).

    x            : (N, in_channels, H, W) float32
    conv_weights : list of 20 arrays (64, cin_l, 3, 3)   (cin_0=in_channels, rest 64)
    conv_biases  : list of 20 arrays (64,)
    final_weight : (n_classes, 64, 1, 1)
    final_bias   : (n_classes,)
    label_dsp_dim: static (ld1, ld2) -> output (N, n_classes, ld1, ld2)
    """
    CH = 64
    N, cin0, H, W = x.shape
    assert cin0 <= CH, "in_channels must be <= 64"
    n_classes = final_weight.shape[0]
    HP, WP = H + 2, W + 2
    P = HP * WP
    PPAD = ((P + 127) // 128) * 128            # per-batch lane segment (128-aligned)
    LTOT = N * PPAD                            # batch folded into the lane axis
    n_layers = len(conv_weights) + 1           # 20 conv3x3 layers + final 1x1

    # ---- input: NCHW is already channel-major. Pad channels to 64, spatial border by 1,
    # flatten (H+2)*(W+2) into lanes, pad each segment to PPAD, fold batch into lanes.
    xp = jnp.pad(x.astype(jnp.float32), ((0, 0), (0, CH - cin0), (1, 1), (1, 1)))
    x_flat = jnp.pad(xp.reshape(N, CH, P), ((0, 0), (0, 0), (0, PPAD - P)))
    x_flat = jnp.transpose(x_flat, (1, 0, 2)).reshape(CH, LTOT)

    # ---- weights: one lane-flat (Cout=64, 9*Cin=576) block per layer.
    def flat_w(w):
        cin = w.shape[1]
        if cin < CH:
            w = jnp.pad(w, ((0, 0), (0, CH - cin), (0, 0), (0, 0)))
        # (Cout, Cin, 3, 3) -> (Cout, 3, 3, Cin) -> (Cout, 576); col = (kh*3+kw)*64 + cin
        return jnp.transpose(w, (0, 2, 3, 1)).reshape(CH, 9 * CH)

    w_blocks = [flat_w(w) for w in conv_weights]
    # Final 1x1 conv stored in the center-tap columns of a 3x3-shaped block (the kernel
    # only reads those 64 columns on the last layer); Cout zero-padded to 64.
    wf = jnp.zeros((CH, CH, 3, 3), jnp.float32)
    wf = wf.at[:n_classes, :, 1, 1].set(final_weight[:, :, 0, 0])
    w_blocks.append(flat_w(wf))
    w_all = jnp.stack(w_blocks).astype(jnp.float32)               # (n_layers, 64, 576)

    b_blocks = list(conv_biases) + [jnp.pad(final_bias, (0, CH - n_classes))]
    b_all = jnp.stack(b_blocks).astype(jnp.float32).reshape(n_layers, CH, 1)

    # Interior mask over the folded lane axis: 1.0 exactly at padded-image interior
    # positions (1 <= row <= H, 1 <= col <= W) of each batch segment, 0 elsewhere
    # (border, lane tail), so the zero padding survives every layer.
    p = jnp.arange(LTOT, dtype=jnp.int32) % PPAD
    row = p // WP
    col = p % WP
    interior = (row >= 1) & (row <= H) & (col >= 1) & (col <= W) & (p < P)
    mask = interior.astype(jnp.float32).reshape(1, LTOT)

    kernel = functools.partial(_vel_net_kernel, wp=WP, ltot=LTOT, ch=CH)
    out = pl.pallas_call(
        kernel,
        out_shape=jax.ShapeDtypeStruct((CH, LTOT), jnp.float32),
        grid_spec=pltpu.PrefetchScalarGridSpec(
            num_scalar_prefetch=0,
            grid=(n_layers,),
            in_specs=[
                pl.BlockSpec((CH, LTOT), lambda l: (0, 0)),        # network input
                pl.BlockSpec((1, CH, 9 * CH), lambda l: (l, 0, 0)),  # layer weights
                pl.BlockSpec((1, CH, 1), lambda l: (l, 0, 0)),     # layer bias
                pl.BlockSpec((1, LTOT), lambda l: (0, 0)),         # interior mask
            ],
            out_specs=pl.BlockSpec((CH, LTOT), lambda l: (0, 0)),  # resident activation
            scratch_shapes=[pltpu.VMEM((9 * CH, LTOT), jnp.float32)],  # im2col scratch
        ),
        compiler_params=pltpu.CompilerParams(
            dimension_semantics=("arbitrary",)),                   # sequential layer dep
    )(x_flat, w_all, b_all, mask)

    # ---- back to NCHW + center crop to label_dsp_dim (pure slicing / metadata).
    y = out[:n_classes].reshape(n_classes, N, PPAD)[:, :, :P]
    y = jnp.transpose(y.reshape(n_classes, N, HP, WP), (1, 0, 2, 3))
    ld1, ld2 = label_dsp_dim
    beg1 = (H - ld1) // 2
    beg2 = (W - ld2) // 2
    return y[:, :, 1 + beg1:1 + beg1 + ld1, 1 + beg2:1 + beg2 + ld2]


def _reference(x, conv_weights, conv_biases, final_weight, final_bias, label_dsp_dim):
    """Pure-JAX reference: 20x (Conv2d 3x3 pad=1 + LeakyReLU(0.2)) + 1x1 conv + crop."""
    y = x
    for w, b in zip(conv_weights, conv_biases):
        y = lax.conv_general_dilated(
            y, w, (1, 1), [(1, 1), (1, 1)],
            dimension_numbers=("NCHW", "OIHW", "NCHW"),
            precision=lax.Precision.HIGHEST)
        y = y + b.reshape(1, -1, 1, 1)
        y = jnp.where(y >= 0, y, 0.2 * y)
    y = lax.conv_general_dilated(
        y, final_weight, (1, 1), [(0, 0), (0, 0)],
        dimension_numbers=("NCHW", "OIHW", "NCHW"),
        precision=lax.Precision.HIGHEST)
    y = y + final_bias.reshape(1, -1, 1, 1)
    ld1, ld2 = label_dsp_dim
    H, W = y.shape[2], y.shape[3]
    b1 = (H - ld1) // 2
    b2 = (W - ld2) // 2
    return y[:, :, b1:b1 + ld1, b2:b2 + ld2]


if __name__ == "__main__":
    N, IN_CH, N_CLASSES, H, W = 2, 4, 2, 16, 16
    LABEL_DSP_DIM = (10, 10)
    CH = 64
    N_CONV = 20

    key = jax.random.PRNGKey(0)
    keys = jax.random.split(key, 2 * N_CONV + 3)

    conv_ws, conv_bs = [], []
    cin = IN_CH
    std3 = float(np.sqrt(2.0 / (3 * 3 * CH)))      # module's He-style init (n=k*k*out)
    for i in range(N_CONV):
        conv_ws.append(std3 * jax.random.normal(keys[2 * i], (CH, cin, 3, 3), jnp.float32))
        conv_bs.append(0.01 * jax.random.normal(keys[2 * i + 1], (CH,), jnp.float32))
        cin = CH
    final_w = float(np.sqrt(1.0 / CH)) * jax.random.normal(
        keys[-3], (N_CLASSES, CH, 1, 1), jnp.float32)
    final_b = 0.01 * jax.random.normal(keys[-2], (N_CLASSES,), jnp.float32)
    x = jax.random.normal(keys[-1], (N, IN_CH, H, W), jnp.float32)

    run = jax.jit(functools.partial(vel_net_forward, label_dsp_dim=LABEL_DSP_DIM))
    out = jax.block_until_ready(run(x, conv_ws, conv_bs, final_w, final_b))

    ref = jax.block_until_ready(
        _reference(x, conv_ws, conv_bs, final_w, final_b, LABEL_DSP_DIM))

    assert out.shape == (N, N_CLASSES) + LABEL_DSP_DIM, out.shape
    np.testing.assert_allclose(np.asarray(out), np.asarray(ref), rtol=1e-2, atol=1e-2)

    print("KERNEL_OK")
</pallas_src>

<mosaic_0001>
module attributes {stable_mosaic.version = 11 : i64} {
  func.func @_vel_net_kernel(%arg0: i32, %arg1: memref<64x768xf32, #tpu.memory_space<vmem>>, %arg2: memref<1x64x576xf32, #tpu.memory_space<vmem>>, %arg3: memref<1x64x1xf32, #tpu.memory_space<vmem>>, %arg4: memref<1x768xf32, #tpu.memory_space<vmem>>, %arg5: memref<64x768xf32, #tpu.memory_space<vmem>>, %arg6: memref<576x768xf32, #tpu.memory_space<vmem>>) attributes {dimension_semantics = [#tpu.dimension_semantics<arbitrary>], iteration_bounds = array<i64: 21>, scalar_prefetch = 0 : i64, scratch_operands = 1 : i64, tpu.core_type = #tpu.core_type<tc>, window_params = [{pipeline_mode = #tpu.pipeline_mode<synchronous>, transform_indices = @transform_0, window_bounds = array<i64: 64, 768>}, {transform_indices = @transform_1, window_bounds = array<i64: 1, 64, 576>}, {transform_indices = @transform_2, window_bounds = array<i64: 1, 64, 1>}, {pipeline_mode = #tpu.pipeline_mode<synchronous>, transform_indices = @transform_3, window_bounds = array<i64: 1, 768>}, {pipeline_mode = #tpu.pipeline_mode<synchronous>, transform_indices = @transform_4, window_bounds = array<i64: 64, 768>}]} {
    %c0_i32 = arith.constant 0 : i32
    %0 = arith.cmpi eq, %arg0, %c0_i32 : i32
    %1 = arith.extui %0 : i1 to i32
    %c0_i32_0 = arith.constant 0 : i32
    %2 = arith.cmpi ne, %1, %c0_i32_0 : i32
    scf.if %2 {
      %c0 = arith.constant 0 : index
      %c0_4 = arith.constant 0 : index
      %9 = vector.load %arg1[%c0, %c0_4] : memref<64x768xf32, #tpu.memory_space<vmem>>, vector<64x768xf32>
      %c0_5 = arith.constant 0 : index
      %c0_6 = arith.constant 0 : index
      %10 = vector.load %arg5[%c0_5, %c0_6] : memref<64x768xf32, #tpu.memory_space<vmem>>, vector<64x768xf32>
      tpu.vector_store %arg5[%c0_5, %c0_6], %9 {strides = array<i32>} : memref<64x768xf32, #tpu.memory_space<vmem>>, vector<64x768xf32>,
    } else {
    }
    %c20_i32 = arith.constant 20 : i32
    %3 = arith.cmpi slt, %arg0, %c20_i32 : i32
    %4 = arith.extui %3 : i1 to i32
    %c0_i32_1 = arith.constant 0 : i32
    %5 = arith.cmpi ne, %4, %c0_i32_1 : i32
    scf.if %5 {
      %c0 = arith.constant 0 : index
      %c0_4 = arith.constant 0 : index
      %9 = vector.load %arg5[%c0, %c0_4] : memref<64x768xf32, #tpu.memory_space<vmem>>, vector<64x768xf32>
      %c19_i32 = arith.constant 19 : i32
      %10 = tpu.dynamic_rotate %9 by %c19_i32 dim 1 : vector<64x768xf32>, i32 -> vector<64x768xf32>
      %c0_5 = arith.constant 0 : index
      %c0_6 = arith.constant 0 : index
      %11 = vector.load %arg6[%c0_5, %c0_6] : memref<576x768xf32, #tpu.memory_space<vmem>>, vector<64x768xf32>
      tpu.vector_store %arg6[%c0_5, %c0_6], %10 {strides = array<i32>} : memref<576x768xf32, #tpu.memory_space<vmem>>, vector<64x768xf32>,
      %c18_i32 = arith.constant 18 : i32
      %12 = tpu.dynamic_rotate %9 by %c18_i32 dim 1 : vector<64x768xf32>, i32 -> vector<64x768xf32>
      %c64 = arith.constant 64 : index
      %c0_7 = arith.constant 0 : index
      %13 = vector.load %arg6[%c64, %c0_7] : memref<576x768xf32, #tpu.memory_space<vmem>>, vector<64x768xf32>
      tpu.vector_store %arg6[%c64, %c0_7], %12 {strides = array<i32>} : memref<576x768xf32, #tpu.memory_space<vmem>>, vector<64x768xf32>,
      %c17_i32 = arith.constant 17 : i32
      %14 = tpu.dynamic_rotate %9 by %c17_i32 dim 1 : vector<64x768xf32>, i32 -> vector<64x768xf32>
      %c128 = arith.constant 128 : index
      %c0_8 = arith.constant 0 : index
      %15 = vector.load %arg6[%c128, %c0_8] : memref<576x768xf32, #tpu.memory_space<vmem>>, vector<64x768xf32>
      tpu.vector_store %arg6[%c128, %c0_8], %14 {strides = array<i32>} : memref<576x768xf32, #tpu.memory_space<vmem>>, vector<64x768xf32>,
      %c1_i32 = arith.constant 1 : i32
      %16 = tpu.dynamic_rotate %9 by %c1_i32 dim 1 : vector<64x768xf32>, i32 -> vector<64x768xf32>
      %c192 = arith.constant 192 : index
      %c0_9 = arith.constant 0 : index
      %17 = vector.load %arg6[%c192, %c0_9] : memref<576x768xf32, #tpu.memory_space<vmem>>, vector<64x768xf32>
      tpu.vector_store %arg6[%c192, %c0_9], %16 {strides = array<i32>} : memref<576x768xf32, #tpu.memory_space<vmem>>, vector<64x768xf32>,
      %c256 = arith.constant 256 : index
      %c0_10 = arith.constant 0 : index
      %18 = vector.load %arg6[%c256, %c0_10] : memref<576x768xf32, #tpu.memory_space<vmem>>, vector<64x768xf32>
      tpu.vector_store %arg6[%c256, %c0_10], %9 {strides = array<i32>} : memref<576x768xf32, #tpu.memory_space<vmem>>, vector<64x768xf32>,
      %c767_i32 = arith.constant 767 : i32
      %19 = tpu.dynamic_rotate %9 by %c767_i32 dim 1 : vector<64x768xf32>, i32 -> vector<64x768xf32>
      %c320 = arith.constant 320 : index
      %c0_11 = arith.constant 0 : index
      %20 = vector.load %arg6[%c320, %c0_11] : memref<576x768xf32, #tpu.memory_space<vmem>>, vector<64x768xf32>
      tpu.vector_store %arg6[%c320, %c0_11], %19 {strides = array<i32>} : memref<576x768xf32, #tpu.memory_space<vmem>>, vector<64x768xf32>,
      %c751_i32 = arith.constant 751 : i32
      %21 = tpu.dynamic_rotate %9 by %c751_i32 dim 1 : vector<64x768xf32>, i32 -> vector<64x768xf32>
      %c384 = arith.constant 384 : index
      %c0_12 = arith.constant 0 : index
      %22 = vector.load %arg6[%c384, %c0_12] : memref<576x768xf32, #tpu.memory_space<vmem>>, vector<64x768xf32>
      tpu.vector_store %arg6[%c384, %c0_12], %21 {strides = array<i32>} : memref<576x768xf32, #tpu.memory_space<vmem>>, vector<64x768xf32>,
      %c750_i32 = arith.constant 750 : i32
      %23 = tpu.dynamic_rotate %9 by %c750_i32 dim 1 : vector<64x768xf32>, i32 -> vector<64x768xf32>
      %c448 = arith.constant 448 : index
      %c0_13 = arith.constant 0 : index
      %24 = vector.load %arg6[%c448, %c0_13] : memref<576x768xf32, #tpu.memory_space<vmem>>, vector<64x768xf32>
      tpu.vector_store %arg6[%c448, %c0_13], %23 {strides = array<i32>} : memref<576x768xf32, #tpu.memory_space<vmem>>, vector<64x768xf32>,
      %c749_i32 = arith.constant 749 : i32
      %25 = tpu.dynamic_rotate %9 by %c749_i32 dim 1 : vector<64x768xf32>, i32 -> vector<64x768xf32>
      %c512 = arith.constant 512 : index
      %c0_14 = arith.constant 0 : index
      %26 = vector.load %arg6[%c512, %c0_14] : memref<576x768xf32, #tpu.memory_space<vmem>>, vector<64x768xf32>
      tpu.vector_store %arg6[%c512, %c0_14], %25 {strides = array<i32>} : memref<576x768xf32, #tpu.memory_space<vmem>>, vector<64x768xf32>,
      %c0_15 = arith.constant 0 : index
      %c0_16 = arith.constant 0 : index
      %c0_17 = arith.constant 0 : index
      %27 = vector.load %arg2[%c0_15, %c0_16, %c0_17] : memref<1x64x576xf32, #tpu.memory_space<vmem>>, vector<1x64x576xf32>
      %28 = vector.shape_cast %27 : vector<1x64x576xf32> to vector<64x576xf32>
      %c0_18 = arith.constant 0 : index
      %c0_19 = arith.constant 0 : index
      %29 = vector.load %arg6[%c0_18, %c0_19] : memref<576x768xf32, #tpu.memory_space<vmem>>, vector<576x768xf32>
      %cst = arith.constant dense<0.000000e+00> : vector<64x768xf32>
      %30 = tpu.matmul %28, %29, %cst {dimension_numbers = #tpu.dot_dimension_numbers<[1], [0], [0], [1], [0, 0, 1, 1], [], []>} : vector<64x576xf32>, vector<576x768xf32>, vector<64x768xf32> -> vector<64x768xf32>
      %c0_20 = arith.constant 0 : index
      %c0_21 = arith.constant 0 : index
      %c0_22 = arith.constant 0 : index
      %31 = vector.load %arg3[%c0_20, %c0_21, %c0_22] : memref<1x64x1xf32, #tpu.memory_space<vmem>>, vector<1x64x1xf32>
      %32 = vector.shape_cast %31 : vector<1x64x1xf32> to vector<64x1xf32>
      %33 = vector.broadcast %32 : vector<64x1xf32> to vector<64x768xf32>
      %34 = arith.addf %30, %33 : vector<64x768xf32>
      %cst_23 = arith.constant 0.000000e+00 : f32
      %35 = vector.broadcast %cst_23 : f32 to vector<64x768xf32>
      %36 = arith.cmpf oge, %34, %35 : vector<64x768xf32>
      %cst_24 = arith.constant 2.000000e-01 : f32
      %37 = vector.broadcast %cst_24 : f32 to vector<64x768xf32>
      %38 = arith.mulf %34, %37 : vector<64x768xf32>
      %39 = arith.select %36, %34, %38 : vector<64x768xi1>, vector<64x768xf32>
      %c0_25 = arith.constant 0 : index
      %c0_26 = arith.constant 0 : index
      %40 = vector.load %arg4[%c0_25, %c0_26] : memref<1x768xf32, #tpu.memory_space<vmem>>, vector<1x768xf32>
      %41 = vector.broadcast %40 : vector<1x768xf32> to vector<64x768xf32>
      %42 = arith.mulf %39, %41 : vector<64x768xf32>
      %c0_27 = arith.constant 0 : index
      %c0_28 = arith.constant 0 : index
      %43 = vector.load %arg5[%c0_27, %c0_28] : memref<64x768xf32, #tpu.memory_space<vmem>>, vector<64x768xf32>
      tpu.vector_store %arg5[%c0_27, %c0_28], %42 {strides = array<i32>} : memref<64x768xf32, #tpu.memory_space<vmem>>, vector<64x768xf32>,
    } else {
    }
    %c20_i32_2 = arith.constant 20 : i32
    %6 = arith.cmpi eq, %arg0, %c20_i32_2 : i32
    %7 = arith.extui %6 : i1 to i32
    %c0_i32_3 = arith.constant 0 : i32
    %8 = arith.cmpi ne, %7, %c0_i32_3 : i32
    scf.if %8 {
      %c0 = arith.constant 0 : index
      %c0_4 = arith.constant 0 : index
      %9 = vector.load %arg5[%c0, %c0_4] : memref<64x768xf32, #tpu.memory_space<vmem>>, vector<64x768xf32>
      %c0_5 = arith.constant 0 : index
      %c0_6 = arith.constant 0 : index
      %c256 = arith.constant 256 : index
      %10 = vector.load %arg2[%c0_5, %c0_6, %c256] : memref<1x64x576xf32, #tpu.memory_space<vmem>>, vector<1x64x64xf32>
      %11 = vector.shape_cast %10 : vector<1x64x64xf32> to vector<64x64xf32>
      %cst = arith.constant dense<0.000000e+00> : vector<64x768xf32>
      %12 = tpu.matmul %11, %9, %cst {dimension_numbers = #tpu.dot_dimension_numbers<[1], [0], [0], [1], [0, 0, 1, 1], [], []>} : vector<64x64xf32>, vector<64x768xf32>, vector<64x768xf32> -> vector<64x768xf32>
      %c0_7 = arith.constant 0 : index
      %c0_8 = arith.constant 0 : index
      %c0_9 = arith.constant 0 : index
      %13 = vector.load %arg3[%c0_7, %c0_8, %c0_9] : memref<1x64x1xf32, #tpu.memory_space<vmem>>, vector<1x64x1xf32>
      %14 = vector.shape_cast %13 : vector<1x64x1xf32> to vector<64x1xf32>
      %15 = vector.broadcast %14 : vector<64x1xf32> to vector<64x768xf32>
      %16 = arith.addf %12, %15 : vector<64x768xf32>
      %c0_10 = arith.constant 0 : index
      %c0_11 = arith.constant 0 : index
      %17 = vector.load %arg4[%c0_10, %c0_11] : memref<1x768xf32, #tpu.memory_space<vmem>>, vector<1x768xf32>
      %18 = vector.broadcast %17 : vector<1x768xf32> to vector<64x768xf32>
      %19 = arith.mulf %16, %18 : vector<64x768xf32>
      %c0_12 = arith.constant 0 : index
      %c0_13 = arith.constant 0 : index
      %20 = vector.load %arg5[%c0_12, %c0_13] : memref<64x768xf32, #tpu.memory_space<vmem>>, vector<64x768xf32>
      tpu.vector_store %arg5[%c0_12, %c0_13], %19 {strides = array<i32>} : memref<64x768xf32, #tpu.memory_space<vmem>>, vector<64x768xf32>,
    } else {
    }
    return
  }
  func.func @transform_0(%arg0: i32) -> (i32, i32) {
    %c0_i32 = arith.constant 0 : i32
    %c0_i32_0 = arith.constant 0 : i32
    %c0_i32_1 = arith.constant 0 : i32
    return %c0_i32, %c0_i32_0 : i32, i32
  }
  func.func @transform_1(%arg0: i32) -> (i32, i32, i32) {
    %c0_i32 = arith.constant 0 : i32
    %c0_i32_0 = arith.constant 0 : i32
    %c0_i32_1 = arith.constant 0 : i32
    return %arg0, %c0_i32, %c0_i32_0 : i32, i32, i32
  }
  func.func @transform_2(%arg0: i32) -> (i32, i32, i32) {
    %c0_i32 = arith.constant 0 : i32
    %c0_i32_0 = arith.constant 0 : i32
    %c0_i32_1 = arith.constant 0 : i32
    return %arg0, %c0_i32, %c0_i32_0 : i32, i32, i32
  }
  func.func @transform_3(%arg0: i32) -> (i32, i32) {
    %c0_i32 = arith.constant 0 : i32
    %c0_i32_0 = arith.constant 0 : i32
    %c0_i32_1 = arith.constant 0 : i32
    return %c0_i32, %c0_i32_0 : i32, i32
  }
  func.func @transform_4(%arg0: i32) -> (i32, i32) {
    %c0_i32 = arith.constant 0 : i32
    %c0_i32_0 = arith.constant 0 : i32
    %c0_i32_1 = arith.constant 0 : i32
    return %c0_i32, %c0_i32_0 : i32, i32
  }
}

</mosaic_0001>

<llo_original>
// kernel: vel_net_forward.1
$region0: #{vel_net_forward.1}
  #allocation0 [shape = 'u32[]', space=smem, size = 0x4, offset = 0x4, fixed_abs, tag = 'smem constant byte address 0x4 - core index']
  #allocation1 [shape = 'u32[144,128]{1,0:T(1,128)}', space=vmem, size = 0x12000, scoped, tag = 'internal scratch']
  #allocation2 [shape = 'f32[576,768]{1,0:T(8,128)}', space=vmem, size = 0x1b0000, scoped, tag = 'scratch operand']
  %s0 = inlined_call_operand.vmem [shape: f32[64,768], index: 0, kind: input, shape index: {}]
  %s1 = inlined_call_operand.vmem [shape: f32[21,64,576], index: 1, kind: input, shape index: {}]
  %s2 = inlined_call_operand.vmem [shape: f32[21,64,1], index: 2, kind: input, shape index: {}]
  %s3 = inlined_call_operand.vmem [shape: f32[1,768], index: 3, kind: input, shape index: {}]
  %s4 = inlined_call_operand.vmem [shape: f32[64,768], index: 4, kind: output, shape index: {}]
  %s5 = sld [smem:[#allocation0]]
  $region61: #{vel_net_forward.1} parent=0
    _
  %s7 = ssub.s32 1, %s5
  %s8 = scalar_select 0, %s7, %s5
  loop: start=0, step=1, limit=23
  $region2: #{vel_net_forward.1} parent=0 // loop_pre_header
    _
  $region3: #{vel_net_forward.1} parent=0 // loop_header
    %s10 = sphi 0, %s14
    %p11 = scmp.ge.s32.totalorder %s10, 23
    %s18 = sphi 0, %s18
    %s20 = sphi 0, %s18
    %s21 = sphi 0, %s20
    %s35 = sphi 0, %s21
    %s41 = sphi 0, %s43
    %s44 = sphi 0, %s41
    %s45 = sphi 0, %s44
    %s61 = sphi 0, %s45
    %s67 = sphi 0, %s69
    %s70 = sphi 0, %s67
    %s71 = sphi 0, %s70
    %s87 = sphi 0, %s71
    %s91 = sphi 0, %s91
    %s93 = sphi 0, %s91
    %s94 = sphi 0, %s93
    %s108 = sphi 0, %s94
    %s112 = sphi 0, %s112
    %s114 = sphi 0, %s112
    %s115 = sphi 0, %s114
    %s129 = sphi 0, %s115
  $region4: #{vel_net_forward.1} parent=0 // loop_header_branch
    %13 = sbr.rel (%p11) target = $region8
  $region5: #{vel_net_forward.1} parent=0 // loop_body
    %s15 = ssub.s32 %s10, 1
    %s16 = ssub.s32 %s10, 2
    %s17 = sadd.s32 %s10, 1
    %s19 = sadd.s32 %s18, 1
    %p22 = scmp.eq.s32.totalorder %s10, 20
    %p23 = scmp.ne.s32.totalorder %s18, %s20
    %p24 = scmp.eq.s32.totalorder %s10, 0
    %p25 = por %p23, %p24
    %p26 = scmp.ne.s32.totalorder %s18, %s20
    %p27 = scmp.eq.s32.totalorder %s15, 20
    %p28 = por %p26, %p27
    %p29 = scmp.ne.s32.totalorder %s20, %s21
    %p30 = scmp.eq.s32.totalorder %s15, 0
    %p31 = por %p29, %p30
    %p32 = scmp.ne.s32.totalorder %s20, %s21
    %p33 = scmp.eq.s32.totalorder %s16, 20
    %p34 = por %p32, %p33
    %p36 = scmp.ne.s32.totalorder %s21, %s35
    %p37 = scmp.eq.s32.totalorder %s16, 0
    %p38 = por %p36, %p37
    %s39 = ssub.s32 %s10, %s17
    %p40 = scmp.eq.s32.totalorder %s39, 0
    %s42 = sadd.s32 %s41, 1
    %s43 = scalar_select %p40, %s41, %s42
    %p46 = pneg %p40
    %p47 = scmp.eq.s32.totalorder %s10, 20
    %p48 = por %p46, %p47
    %p49 = scmp.ne.s32.totalorder %s41, %s44
    %p50 = scmp.eq.s32.totalorder %s10, 0
    %p51 = por %p49, %p50
    %p52 = scmp.ne.s32.totalorder %s41, %s44
    %p53 = scmp.eq.s32.totalorder %s15, 20
    %p54 = por %p52, %p53
    %p55 = scmp.ne.s32.totalorder %s44, %s45
    %p56 = scmp.eq.s32.totalorder %s15, 0
    %p57 = por %p55, %p56
    %p58 = scmp.ne.s32.totalorder %s44, %s45
    %p59 = scmp.eq.s32.totalorder %s16, 20
    %p60 = por %p58, %p59
    %p62 = scmp.ne.s32.totalorder %s45, %s61
    %p63 = scmp.eq.s32.totalorder %s16, 0
    %p64 = por %p62, %p63
    %s65 = ssub.s32 %s10, %s17
    %p66 = scmp.eq.s32.totalorder %s65, 0
    %s68 = sadd.s32 %s67, 1
    %s69 = scalar_select %p66, %s67, %s68
    %p72 = pneg %p66
    %p73 = scmp.eq.s32.totalorder %s10, 20
    %p74 = por %p72, %p73
    %p75 = scmp.ne.s32.totalorder %s67, %s70
    %p76 = scmp.eq.s32.totalorder %s10, 0
    %p77 = por %p75, %p76
    %p78 = scmp.ne.s32.totalorder %s67, %s70
    %p79 = scmp.eq.s32.totalorder %s15, 20
    %p80 = por %p78, %p79
    %p81 = scmp.ne.s32.totalorder %s70, %s71
    %p82 = scmp.eq.s32.totalorder %s15, 0
    %p83 = por %p81, %p82
    %p84 = scmp.ne.s32.totalorder %s70, %s71
    %p85 = scmp.eq.s32.totalorder %s16, 20
    %p86 = por %p84, %p85
    %p88 = scmp.ne.s32.totalorder %s71, %s87
    %p89 = scmp.eq.s32.totalorder %s16, 0
    %p90 = por %p88, %p89
    %s92 = sadd.s32 %s91, 1
    %p95 = scmp.eq.s32.totalorder %s10, 20
    %p96 = scmp.ne.s32.totalorder %s91, %s93
    %p97 = scmp.eq.s32.totalorder %s10, 0
    %p98 = por %p96, %p97
    %p99 = scmp.ne.s32.totalorder %s91, %s93
    %p100 = scmp.eq.s32.totalorder %s15, 20
    %p101 = por %p99, %p100
    %p102 = scmp.ne.s32.totalorder %s93, %s94
    %p103 = scmp.eq.s32.totalorder %s15, 0
    %p104 = por %p102, %p103
    %p105 = scmp.ne.s32.totalorder %s93, %s94
    %p106 = scmp.eq.s32.totalorder %s16, 20
    %p107 = por %p105, %p106
    %p109 = scmp.ne.s32.totalorder %s94, %s108
    %p110 = scmp.eq.s32.totalorder %s16, 0
    %p111 = por %p109, %p110
    %s113 = sadd.s32 %s112, 1
    %p116 = scmp.eq.s32.totalorder %s10, 20
    %p117 = scmp.ne.s32.totalorder %s112, %s114
    %p118 = scmp.eq.s32.totalorder %s10, 0
    %p119 = por %p117, %p118
    %p120 = scmp.ne.s32.totalorder %s112, %s114
    %p121 = scmp.eq.s32.totalorder %s15, 20
    %p122 = por %p120, %p121
    %p123 = scmp.ne.s32.totalorder %s114, %s115
    %p124 = scmp.eq.s32.totalorder %s15, 0
    %p125 = por %p123, %p124
    %p126 = scmp.ne.s32.totalorder %s114, %s115
    %p127 = scmp.eq.s32.totalorder %s16, 20
    %p128 = por %p126, %p127
    %p130 = scmp.ne.s32.totalorder %s115, %s129
    %p131 = scmp.eq.s32.totalorder %s16, 0
    %p132 = por %p130, %p131
    %p133 = scmp.le.s32.totalorder 1, %s10
    %p134 = scmp.lt.s32.totalorder %s10, 22
    %p135 = pnand %p133, %p134
    %p136 = pneg %p135
    // Predicated region
    $region9: #{vel_net_forward.1} parent=5 // pred_check
      _
    $region10: #{vel_net_forward.1} parent=5 // pred_check_branch
      %138 = sbr.rel (%p135) target = $region12
    $region11: #{vel_net_forward.1} parent=5 // pred_region
      %s139 = ssub.s32 %s10, 1
      // Predicated region
      $region13: #{vel_net_forward.1} parent=11 // pred_check
        %p140 = pneg %p31
      $region14: #{vel_net_forward.1} parent=11 // pred_check_branch
        %142 = sbr.rel (%p140) target = $region16
      $region15: #{vel_net_forward.1} parent=11 // pred_region
        _
      $region16: #{vel_net_forward.1} parent=11 // pred_fallthru
        _
      // Predicated region
      $region17: #{vel_net_forward.1} parent=11 // pred_check
        %p143 = pneg %p104
      $region18: #{vel_net_forward.1} parent=11 // pred_check_branch
        %145 = sbr.rel (%p143) target = $region20
      $region19: #{vel_net_forward.1} parent=11 // pred_region
        _
      $region20: #{vel_net_forward.1} parent=11 // pred_fallthru
        _
    $region12: #{vel_net_forward.1} parent=5 // pred_fallthru
      _
    %p146 = scmp.lt.s32.totalorder %s10, 21
    // Predicated region
    $region21: #{vel_net_forward.1} parent=5 // pred_check
      %p147 = pneg %p146
    $region22: #{vel_net_forward.1} parent=5 // pred_check_branch
      %149 = sbr.rel (%p147) target = $region24
    $region23: #{vel_net_forward.1} parent=5 // pred_region
      // Predicated region
      $region25: #{vel_net_forward.1} parent=23 // pred_check
        %p150 = pneg %p51
      $region26: #{vel_net_forward.1} parent=23 // pred_check_branch
        %152 = sbr.rel (%p150) target = $region28
      $region27: #{vel_net_forward.1} parent=23 // pred_region
        %p153 = scmp.lt.s32.totalorder %s10, 20
        %s154 = scalar_select %p153, %s10, 20
        %s155 = smul.addr %s154, 40
        %s156 = smul.addr %s155, 8
        %s157 = scalar_lea.vmem %s1, %s156
      $region28: #{vel_net_forward.1} parent=23 // pred_fallthru
        _
      // Predicated region
      $region29: #{vel_net_forward.1} parent=23 // pred_check
        %p158 = pneg %p77
      $region30: #{vel_net_forward.1} parent=23 // pred_check_branch
        %160 = sbr.rel (%p158) target = $region32
      $region31: #{vel_net_forward.1} parent=23 // pred_region
        %p161 = scmp.lt.s32.totalorder %s10, 20
        %s162 = scalar_select %p161, %s10, 20
        %s163 = smul.addr %s162, 8
        %s164 = smul.addr %s163, 8
        %s165 = scalar_lea.vmem %s2, %s164
      $region32: #{vel_net_forward.1} parent=23 // pred_fallthru
        _
    $region24: #{vel_net_forward.1} parent=5 // pred_fallthru
      _
    %p166 = scmp.le.s32.totalorder 1, %s10
    %p167 = scmp.lt.s32.totalorder %s10, 22
    %p168 = pnand %p166, %p167
    %p169 = pneg %p168
    // Predicated region
    $region33: #{vel_net_forward.1} parent=5 // pred_check
      _
    $region34: #{vel_net_forward.1} parent=5 // pred_check_branch
      %171 = sbr.rel (%p168) target = $region36
    $region35: #{vel_net_forward.1} parent=5 // pred_region
      %s172 = ssub.s32 %s10, 1
      %p173 = pneg %p31
      %p174 = pneg %p28
      %p175 = scmp.lt.s32.totalorder %s15, 20
      %s176 = scalar_select %p175, %s15, 20
      %s177 = smul.addr %s176, 40
      %s178 = smul.addr %s177, 8
      %s179 = scalar_lea.vmem %s1, %s178
      %p180 = pneg %p57
      %p181 = pneg %p54
      %p182 = scmp.lt.s32.totalorder %s15, 20
      %s183 = scalar_select %p182, %s15, 20
      %s184 = smul.addr %s183, 8
      %s185 = smul.addr %s184, 8
      %s186 = scalar_lea.vmem %s2, %s185
      %p187 = pneg %p83
      %p188 = pneg %p80
      %p189 = pneg %p104
      %p190 = pneg %p101
      %p191 = pneg %p125
      %p192 = pneg %p122
      %p193 = scmp.lt.s32.totalorder %s15, 20
      %s194 = scalar_select %p193, %s15, 20
      %s195 = smul.addr %s194, 40
      %s196 = smul.addr %s195, 8
      %s197 = scalar_lea.vmem %s1, %s196
      %p198 = scmp.lt.s32.totalorder %s15, 20
      %s199 = scalar_select %p198, %s15, 20
      %s200 = smul.addr %s199, 8
      %s201 = smul.addr %s200, 8
      %s202 = scalar_lea.vmem %s2, %s201
      %p203 = scmp.eq.s32.totalorder %s15, 0
      // Predicated region
      $region37: #{vel_net_forward.1} parent=35 // pred_check
        %p204 = pneg %p203
      $region38: #{vel_net_forward.1} parent=35 // pred_check_branch
        %206 = sbr.rel (%p204) target = $region40
      $region39: #{vel_net_forward.1} parent=35 // pred_region
        %v207 = vld [vmem:[%s0] sm:$0xff]
        %v208 = vld [vmem:[%s0 + $0x8] sm:$0xff]
        %v209 = vld [vmem:[%s0 + $0x10] sm:$0xff]
        %v210 = vld [vmem:[%s0 + $0x18] sm:$0xff]
        %v211 = vld [vmem:[%s0 + $0x20] sm:$0xff]
        %v212 = vld [vmem:[%s0 + $0x28] sm:$0xff]
        %v213 = vld [vmem:[%s0 + $0x30] sm:$0xff]
        %v214 = vld [vmem:[%s0 + $0x38] sm:$0xff]
        %v215 = vld [vmem:[%s0 + $0x40] sm:$0xff]
        %v216 = vld [vmem:[%s0 + $0x48] sm:$0xff]
        %v217 = vld [vmem:[%s0 + $0x50] sm:$0xff]
        %v218 = vld [vmem:[%s0 + $0x58] sm:$0xff]
        %v219 = vld [vmem:[%s0 + $0x60] sm:$0xff]
        %v220 = vld [vmem:[%s0 + $0x68] sm:$0xff]
        %v221 = vld [vmem:[%s0 + $0x70] sm:$0xff]
        %v222 = vld [vmem:[%s0 + $0x78] sm:$0xff]
        %v223 = vld [vmem:[%s0 + $0x80] sm:$0xff]
        %v224 = vld [vmem:[%s0 + $0x88] sm:$0xff]
        %v225 = vld [vmem:[%s0 + $0x90] sm:$0xff]
        %v226 = vld [vmem:[%s0 + $0x98] sm:$0xff]
        %v227 = vld [vmem:[%s0 + $0xa0] sm:$0xff]
        %v228 = vld [vmem:[%s0 + $0xa8] sm:$0xff]
        %v229 = vld [vmem:[%s0 + $0xb0] sm:$0xff]
        %v230 = vld [vmem:[%s0 + $0xb8] sm:$0xff]
        %v231 = vld [vmem:[%s0 + $0xc0] sm:$0xff]
        %v232 = vld [vmem:[%s0 + $0xc8] sm:$0xff]
        %v233 = vld [vmem:[%s0 + $0xd0] sm:$0xff]
        %v234 = vld [vmem:[%s0 + $0xd8] sm:$0xff]
        %v235 = vld [vmem:[%s0 + $0xe0] sm:$0xff]
        %v236 = vld [vmem:[%s0 + $0xe8] sm:$0xff]
        %v237 = vld [vmem:[%s0 + $0xf0] sm:$0xff]
        %v238 = vld [vmem:[%s0 + $0xf8] sm:$0xff]
        %v239 = vld [vmem:[%s0 + $0x100] sm:$0xff]
        %v240 = vld [vmem:[%s0 + $0x108] sm:$0xff]
        %v241 = vld [vmem:[%s0 + $0x110] sm:$0xff]
        %v242 = vld [vmem:[%s0 + $0x118] sm:$0xff]
        %v243 = vld [vmem:[%s0 + $0x120] sm:$0xff]
        %v244 = vld [vmem:[%s0 + $0x128] sm:$0xff]
        %v245 = vld [vmem:[%s0 + $0x130] sm:$0xff]
        %v246 = vld [vmem:[%s0 + $0x138] sm:$0xff]
        %v247 = vld [vmem:[%s0 + $0x140] sm:$0xff]
        %v248 = vld [vmem:[%s0 + $0x148] sm:$0xff]
        %v249 = vld [vmem:[%s0 + $0x150] sm:$0xff]
        %v250 = vld [vmem:[%s0 + $0x158] sm:$0xff]
        %v251 = vld [vmem:[%s0 + $0x160] sm:$0xff]
        %v252 = vld [vmem:[%s0 + $0x168] sm:$0xff]
        %v253 = vld [vmem:[%s0 + $0x170] sm:$0xff]
        %v254 = vld [vmem:[%s0 + $0x178] sm:$0xff]
        %255 = vst [vmem:[%s4] sm:$0xff] %v207
        %256 = vst [vmem:[%s4 + $0x8] sm:$0xff] %v208
        %257 = vst [vmem:[%s4 + $0x10] sm:$0xff] %v209
        %258 = vst [vmem:[%s4 + $0x18] sm:$0xff] %v210
        %259 = vst [vmem:[%s4 + $0x20] sm:$0xff] %v211
        %260 = vst [vmem:[%s4 + $0x28] sm:$0xff] %v212
        %261 = vst [vmem:[%s4 + $0x30] sm:$0xff] %v213
        %262 = vst [vmem:[%s4 + $0x38] sm:$0xff] %v214
        %263 = vst [vmem:[%s4 + $0x40] sm:$0xff] %v215
        %264 = vst [vmem:[%s4 + $0x48] sm:$0xff] %v216
        %265 = vst [vmem:[%s4 + $0x50] sm:$0xff] %v217
        %266 = vst [vmem:[%s4 + $0x58] sm:$0xff] %v218
        %267 = vst [vmem:[%s4 + $0x60] sm:$0xff] %v219
        %268 = vst [vmem:[%s4 + $0x68] sm:$0xff] %v220
        %269 = vst [vmem:[%s4 + $0x70] sm:$0xff] %v221
        %270 = vst [vmem:[%s4 + $0x78] sm:$0xff] %v222
        %271 = vst [vmem:[%s4 + $0x80] sm:$0xff] %v223
        %272 = vst [vmem:[%s4 + $0x88] sm:$0xff] %v224
        %273 = vst [vmem:[%s4 + $0x90] sm:$0xff] %v225
        %274 = vst [vmem:[%s4 + $0x98] sm:$0xff] %v226
        %275 = vst [vmem:[%s4 + $0xa0] sm:$0xff] %v227
        %276 = vst [vmem:[%s4 + $0xa8] sm:$0xff] %v228
        %277 = vst [vmem:[%s4 + $0xb0] sm:$0xff] %v229
        %278 = vst [vmem:[%s4 + $0xb8] sm:$0xff] %v230
        %279 = vst [vmem:[%s4 + $0xc0] sm:$0xff] %v231
        %280 = vst [vmem:[%s4 + $0xc8] sm:$0xff] %v232
        %281 = vst [vmem:[%s4 + $0xd0] sm:$0xff] %v233
        %282 = vst [vmem:[%s4 + $0xd8] sm:$0xff] %v234
        %283 = vst [vmem:[%s4 + $0xe0] sm:$0xff] %v235
        %284 = vst [vmem:[%s4 + $0xe8] sm:$0xff] %v236
        %285 = vst [vmem:[%s4 + $0xf0] sm:$0xff] %v237
        %286 = vst [vmem:[%s4 + $0xf8] sm:$0xff] %v238
        %287 = vst [vmem:[%s4 + $0x100] sm:$0xff] %v239
        %288 = vst [vmem:[%s4 + $0x108] sm:$0xff] %v240
        %289 = vst [vmem:[%s4 + $0x110] sm:$0xff] %v241
        %290 = vst [vmem:[%s4 + $0x118] sm:$0xff] %v242
        %291 = vst [vmem:[%s4 + $0x120] sm:$0xff] %v243
        %292 = vst [vmem:[%s4 + $0x128] sm:$0xff] %v244
        %293 = vst [vmem:[%s4 + $0x130] sm:$0xff] %v245
        %294 = vst [vmem:[%s4 + $0x138] sm:$0xff] %v246
        %295 = vst [vmem:[%s4 + $0x140] sm:$0xff] %v247
        %296 = vst [vmem:[%s4 + $0x148] sm:$0xff] %v248
        %297 = vst [vmem:[%s4 + $0x150] sm:$0xff] %v249
        %298 = vst [vmem:[%s4 + $0x158] sm:$0xff] %v250
        %299 = vst [vmem:[%s4 + $0x160] sm:$0xff] %v251
        %300 = vst [vmem:[%s4 + $0x168] sm:$0xff] %v252
        %301 = vst [vmem:[%s4 + $0x170] sm:$0xff] %v253
        %302 = vst [vmem:[%s4 + $0x178] sm:$0xff] %v254
      $region40: #{vel_net_forward.1} parent=35 // pred_fallthru
        _
      %p303 = scmp.lt.s32.totalorder %s15, 20
      // Predicated region
      $region41: #{vel_net_forward.1} parent=35 // pred_check
        %p304 = pneg %p303
      $region42: #{vel_net_forward.1} parent=35 // pred_check_branch
        %306 = sbr.rel (%p304) target = $region44
      $region43: #{vel_net_forward.1} parent=35 // pred_region
        %v307 = vld [vmem:[%s4] sm:$0xff]
        %v308 = vld [vmem:[%s4 + $0x8] sm:$0xff]
        %v309 = vld [vmem:[%s4 + $0x10] sm:$0xff]
        %v310 = vld [vmem:[%s4 + $0x18] sm:$0xff]
        %v311 = vld [vmem:[%s4 + $0x20] sm:$0xff]
        %v312 = vld [vmem:[%s4 + $0x28] sm:$0xff]
        %v313 = vld [vmem:[%s4 + $0x30] sm:$0xff]
        %v314 = vld [vmem:[%s4 + $0x38] sm:$0xff]
        %v315 = vld [vmem:[%s4 + $0x40] sm:$0xff]
        %v316 = vld [vmem:[%s4 + $0x48] sm:$0xff]
        %v317 = vld [vmem:[%s4 + $0x50] sm:$0xff]
        %v318 = vld [vmem:[%s4 + $0x58] sm:$0xff]
        %v319 = vld [vmem:[%s4 + $0x60] sm:$0xff]
        %v320 = vld [vmem:[%s4 + $0x68] sm:$0xff]
        %v321 = vld [vmem:[%s4 + $0x70] sm:$0xff]
        %v322 = vld [vmem:[%s4 + $0x78] sm:$0xff]
        %v323 = vld [vmem:[%s4 + $0x80] sm:$0xff]
        %v324 = vld [vmem:[%s4 + $0x88] sm:$0xff]
        %v325 = vld [vmem:[%s4 + $0x90] sm:$0xff]
        %v326 = vld [vmem:[%s4 + $0x98] sm:$0xff]
        %v327 = vld [vmem:[%s4 + $0xa0] sm:$0xff]
        %v328 = vld [vmem:[%s4 + $0xa8] sm:$0xff]
        %v329 = vld [vmem:[%s4 + $0xb0] sm:$0xff]
        %v330 = vld [vmem:[%s4 + $0xb8] sm:$0xff]
        %v331 = vld [vmem:[%s4 + $0xc0] sm:$0xff]
        %v332 = vld [vmem:[%s4 + $0xc8] sm:$0xff]
        %v333 = vld [vmem:[%s4 + $0xd0] sm:$0xff]
        %v334 = vld [vmem:[%s4 + $0xd8] sm:$0xff]
        %v335 = vld [vmem:[%s4 + $0xe0] sm:$0xff]
        %v336 = vld [vmem:[%s4 + $0xe8] sm:$0xff]
        %v337 = vld [vmem:[%s4 + $0xf0] sm:$0xff]
        %v338 = vld [vmem:[%s4 + $0xf8] sm:$0xff]
        %v339 = vld [vmem:[%s4 + $0x100] sm:$0xff]
        %v340 = vld [vmem:[%s4 + $0x108] sm:$0xff]
        %v341 = vld [vmem:[%s4 + $0x110] sm:$0xff]
        %v342 = vld [vmem:[%s4 + $0x118] sm:$0xff]
        %v343 = vld [vmem:[%s4 + $0x120] sm:$0xff]
        %v344 = vld [vmem:[%s4 + $0x128] sm:$0xff]
        %v345 = vld [vmem:[%s4 + $0x130] sm:$0xff]
        %v346 = vld [vmem:[%s4 + $0x138] sm:$0xff]
        %v347 = vld [vmem:[%s4 + $0x140] sm:$0xff]
        %v348 = vld [vmem:[%s4 + $0x148] sm:$0xff]
        %v349 = vld [vmem:[%s4 + $0x150] sm:$0xff]
        %v350 = vld [vmem:[%s4 + $0x158] sm:$0xff]
        %v351 = vld [vmem:[%s4 + $0x160] sm:$0xff]
        %v352 = vld [vmem:[%s4 + $0x168] sm:$0xff]
        %v353 = vld [vmem:[%s4 + $0x170] sm:$0xff]
        %v354 = vld [vmem:[%s4 + $0x178] sm:$0xff]
        %355 = vrot.lane.b32.xlu0 %v307, 19
        %v356 = vpop.permute.xlu0 %355
        %357 = vrot.lane.b32.xlu0 %v313, 19
        %v358 = vpop.permute.xlu0 %357
        %359 = vrot.lane.b32.xlu0 %v319, 19
        %v360 = vpop.permute.xlu0 %359
        %361 = vrot.lane.b32.xlu0 %v325, 19
        %v362 = vpop.permute.xlu0 %361
        %363 = vrot.lane.b32.xlu0 %v331, 19
        %v364 = vpop.permute.xlu0 %363
        %365 = vrot.lane.b32.xlu0 %v337, 19
        %v366 = vpop.permute.xlu0 %365
        %367 = vrot.lane.b32.xlu0 %v343, 19
        %v368 = vpop.permute.xlu0 %367
        %369 = vrot.lane.b32.xlu0 %v349, 19
        %v370 = vpop.permute.xlu0 %369
        %371 = vrot.lane.b32.xlu0 %v308, 19
        %v372 = vpop.permute.xlu0 %371
        %373 = vrot.lane.b32.xlu0 %v314, 19
        %v374 = vpop.permute.xlu0 %373
        %375 = vrot.lane.b32.xlu0 %v320, 19
        %v376 = vpop.permute.xlu0 %375
        %377 = vrot.lane.b32.xlu0 %v326, 19
        %v378 = vpop.permute.xlu0 %377
        %379 = vrot.lane.b32.xlu0 %v332, 19
        %v380 = vpop.permute.xlu0 %379
        %381 = vrot.lane.b32.xlu0 %v338, 19
        %v382 = vpop.permute.xlu0 %381
        %383 = vrot.lane.b32.xlu0 %v344, 19
        %v384 = vpop.permute.xlu0 %383
        %385 = vrot.lane.b32.xlu0 %v350, 19
        %v386 = vpop.permute.xlu0 %385
        %387 = vrot.lane.b32.xlu0 %v309, 19
        %v388 = vpop.permute.xlu0 %387
        %389 = vrot.lane.b32.xlu0 %v315, 19
        %v390 = vpop.permute.xlu0 %389
        %391 = vrot.lane.b32.xlu0 %v321, 19
        %v392 = vpop.permute.xlu0 %391
        %393 = vrot.lane.b32.xlu0 %v327, 19
        %v394 = vpop.permute.xlu0 %393
        %395 = vrot.lane.b32.xlu0 %v333, 19
        %v396 = vpop.permute.xlu0 %395
        %397 = vrot.lane.b32.xlu0 %v339, 19
        %v398 = vpop.permute.xlu0 %397
        %399 = vrot.lane.b32.xlu0 %v345, 19
        %v400 = vpop.permute.xlu0 %399
        %401 = vrot.lane.b32.xlu0 %v351, 19
        %v402 = vpop.permute.xlu0 %401
        %403 = vrot.lane.b32.xlu0 %v310, 19
        %v404 = vpop.permute.xlu0 %403
        %405 = vrot.lane.b32.xlu0 %v316, 19
        %v406 = vpop.permute.xlu0 %405
        %407 = vrot.lane.b32.xlu0 %v322, 19
        %v408 = vpop.permute.xlu0 %407
        %409 = vrot.lane.b32.xlu0 %v328, 19
        %v410 = vpop.permute.xlu0 %409
        %411 = vrot.lane.b32.xlu0 %v334, 19
        %v412 = vpop.permute.xlu0 %411
        %413 = vrot.lane.b32.xlu0 %v340, 19
        %v414 = vpop.permute.xlu0 %413
        %415 = vrot.lane.b32.xlu0 %v346, 19
        %v416 = vpop.permute.xlu0 %415
        %417 = vrot.lane.b32.xlu0 %v352, 19
        %v418 = vpop.permute.xlu0 %417
        %419 = vrot.lane.b32.xlu0 %v311, 19
        %v420 = vpop.permute.xlu0 %419
        %421 = vrot.lane.b32.xlu0 %v317, 19
        %v422 = vpop.permute.xlu0 %421
        %423 = vrot.lane.b32.xlu0 %v323, 19
        %v424 = vpop.permute.xlu0 %423
        %425 = vrot.lane.b32.xlu0 %v329, 19
        %v426 = vpop.permute.xlu0 %425
        %427 = vrot.lane.b32.xlu0 %v335, 19
        %v428 = vpop.permute.xlu0 %427
        %429 = vrot.lane.b32.xlu0 %v341, 19
        %v430 = vpop.permute.xlu0 %429
        %431 = vrot.lane.b32.xlu0 %v347, 19
        %v432 = vpop.permute.xlu0 %431
        %433 = vrot.lane.b32.xlu0 %v353, 19
        %v434 = vpop.permute.xlu0 %433
        %435 = vrot.lane.b32.xlu0 %v312, 19
        %v436 = vpop.permute.xlu0 %435
        %437 = vrot.lane.b32.xlu0 %v318, 19
        %v438 = vpop.permute.xlu0 %437
        %439 = vrot.lane.b32.xlu0 %v324, 19
        %v440 = vpop.permute.xlu0 %439
        %441 = vrot.lane.b32.xlu0 %v330, 19
        %v442 = vpop.permute.xlu0 %441
        %443 = vrot.lane.b32.xlu0 %v336, 19
        %v444 = vpop.permute.xlu0 %443
        %445 = vrot.lane.b32.xlu0 %v342, 19
        %v446 = vpop.permute.xlu0 %445
        %447 = vrot.lane.b32.xlu0 %v348, 19
        %v448 = vpop.permute.xlu0 %447
        %449 = vrot.lane.b32.xlu0 %v354, 19
        %v450 = vpop.permute.xlu0 %449
        %v451 = vlaneseq
        %v452 = vand.u32 %v451, 127
        %vm453 = vcmp.lt.s32.totalorder %v452, 19
        %v454 = vsel %vm453, %v420, %v436
        %v455 = vsel %vm453, %v422, %v438
        %v456 = vsel %vm453, %v424, %v440
        %v457 = vsel %vm453, %v426, %v442
        %v458 = vsel %vm453, %v428, %v444
        %v459 = vsel %vm453, %v430, %v446
        %v460 = vsel %vm453, %v432, %v448
        %v461 = vsel %vm453, %v434, %v450
        %v462 = vsel %vm453, %v404, %v420
        %v463 = vsel %vm453, %v406, %v422
        %v464 = vsel %vm453, %v408, %v424
        %v465 = vsel %vm453, %v410, %v426
        %v466 = vsel %vm453, %v412, %v428
        %v467 = vsel %vm453, %v414, %v430
        %v468 = vsel %vm453, %v416, %v432
        %v469 = vsel %vm453, %v418, %v434
        %v470 = vsel %vm453, %v388, %v404
        %v471 = vsel %vm453, %v390, %v406
        %v472 = vsel %vm453, %v392, %v408
        %v473 = vsel %vm453, %v394, %v410
        %v474 = vsel %vm453, %v396, %v412
        %v475 = vsel %vm453, %v398, %v414
        %v476 = vsel %vm453, %v400, %v416
        %v477 = vsel %vm453, %v402, %v418
        %v478 = vsel %vm453, %v372, %v388
        %v479 = vsel %vm453, %v374, %v390
        %v480 = vsel %vm453, %v376, %v392
        %v481 = vsel %vm453, %v378, %v394
        %v482 = vsel %vm453, %v380, %v396
        %v483 = vsel %vm453, %v382, %v398
        %v484 = vsel %vm453, %v384, %v400
        %v485 = vsel %vm453, %v386, %v402
        %v486 = vsel %vm453, %v356, %v372
        %v487 = vsel %vm453, %v358, %v374
        %v488 = vsel %vm453, %v360, %v376
        %v489 = vsel %vm453, %v362, %v378
        %v490 = vsel %vm453, %v364, %v380
        %v491 = vsel %vm453, %v366, %v382
        %v492 = vsel %vm453, %v368, %v384
        %v493 = vsel %vm453, %v370, %v386
        %v494 = vsel %vm453, %v436, %v356
        %v495 = vsel %vm453, %v438, %v358
        %v496 = vsel %vm453, %v440, %v360
        %v497 = vsel %vm453, %v442, %v362
        %v498 = vsel %vm453, %v444, %v364
        %v499 = vsel %vm453, %v446, %v366
        %v500 = vsel %vm453, %v448, %v368
        %v501 = vsel %vm453, %v450, %v370
        %502 = vst [vmem:[#allocation2] sm:$0xff] %v494
        %503 = vst [vmem:[#allocation2 + $0x8] sm:$0xff] %v486
        %504 = vst [vmem:[#allocation2 + $0x10] sm:$0xff] %v478
        %505 = vst [vmem:[#allocation2 + $0x18] sm:$0xff] %v470
        %506 = vst [vmem:[#allocation2 + $0x20] sm:$0xff] %v462
        %507 = vst [vmem:[#allocation2 + $0x28] sm:$0xff] %v454
        %508 = vst [vmem:[#allocation2 + $0x30] sm:$0xff] %v495
        %509 = vst [vmem:[#allocation2 + $0x38] sm:$0xff] %v487
        %510 = vst [vmem:[#allocation2 + $0x40] sm:$0xff] %v479
        %511 = vst [vmem:[#allocation2 + $0x48] sm:$0xff] %v471
        %512 = vst [vmem:[#allocation2 + $0x50] sm:$0xff] %v463
        %513 = vst [vmem:[#allocation2 + $0x58] sm:$0xff] %v455
        %514 = vst [vmem:[#allocation2 + $0x60] sm:$0xff] %v496
        %515 = vst [vmem:[#allocation2 + $0x68] sm:$0xff] %v488
        %516 = vst [vmem:[#allocation2 + $0x70] sm:$0xff] %v480
        %517 = vst [vmem:[#allocation2 + $0x78] sm:$0xff] %v472
        %518 = vst [vmem:[#allocation2 + $0x80] sm:$0xff] %v464
        %519 = vst [vmem:[#allocation2 + $0x88] sm:$0xff] %v456
        %520 = vst [vmem:[#allocation2 + $0x90] sm:$0xff] %v497
        %521 = vst [vmem:[#allocation2 + $0x98] sm:$0xff] %v489
        %522 = vst [vmem:[#allocation2 + $0xa0] sm:$0xff] %v481
        %523 = vst [vmem:[#allocation2 + $0xa8] sm:$0xff] %v473
        %524 = vst [vmem:[#allocation2 + $0xb0] sm:$0xff] %v465
        %525 = vst [vmem:[#allocation2 + $0xb8] sm:$0xff] %v457
        %526 = vst [vmem:[#allocation2 + $0xc0] sm:$0xff] %v498
        %527 = vst [vmem:[#allocation2 + $0xc8] sm:$0xff] %v490
        %528 = vst [vmem:[#allocation2 + $0xd0] sm:$0xff] %v482
        %529 = vst [vmem:[#allocation2 + $0xd8] sm:$0xff] %v474
        %530 = vst [vmem:[#allocation2 + $0xe0] sm:$0xff] %v466
        %531 = vst [vmem:[#allocation2 + $0xe8] sm:$0xff] %v458
        %532 = vst [vmem:[#allocation2 + $0xf0] sm:$0xff] %v499
        %533 = vst [vmem:[#allocation2 + $0xf8] sm:$0xff] %v491
        %534 = vst [vmem:[#allocation2 + $0x100] sm:$0xff] %v483
        %535 = vst [vmem:[#allocation2 + $0x108] sm:$0xff] %v475
        %536 = vst [vmem:[#allocation2 + $0x110] sm:$0xff] %v467
        %537 = vst [vmem:[#allocation2 + $0x118] sm:$0xff] %v459
        %538 = vst [vmem:[#allocation2 + $0x120] sm:$0xff] %v500
        %539 = vst [vmem:[#allocation2 + $0x128] sm:$0xff] %v492
        %540 = vst [vmem:[#allocation2 + $0x130] sm:$0xff] %v484
        %541 = vst [vmem:[#allocation2 + $0x138] sm:$0xff] %v476
        %542 = vst [vmem:[#allocation2 + $0x140] sm:$0xff] %v468
        %543 = vst [vmem:[#allocation2 + $0x148] sm:$0xff] %v460
        %544 = vst [vmem:[#allocation2 + $0x150] sm:$0xff] %v501
        %545 = vst [vmem:[#allocation2 + $0x158] sm:$0xff] %v493
        %546 = vst [vmem:[#allocation2 + $0x160] sm:$0xff] %v485
        %547 = vst [vmem:[#allocation2 + $0x168] sm:$0xff] %v477
        %548 = vst [vmem:[#allocation2 + $0x170] sm:$0xff] %v469
        %549 = vst [vmem:[#allocation2 + $0x178] sm:$0xff] %v461
        %550 = vrot.lane.b32.xlu0 %v307, 18
        %v551 = vpop.permute.xlu0 %550
        %552 = vrot.lane.b32.xlu0 %v313, 18
        %v553 = vpop.permute.xlu0 %552
        %554 = vrot.lane.b32.xlu0 %v319, 18
        %v555 = vpop.permute.xlu0 %554
        %556 = vrot.lane.b32.xlu0 %v325, 18
        %v557 = vpop.permute.xlu0 %556
        %558 = vrot.lane.b32.xlu0 %v331, 18
        %v559 = vpop.permute.xlu0 %558
        %560 = vrot.lane.b32.xlu0 %v337, 18
        %v561 = vpop.permute.xlu0 %560
        %562 = vrot.lane.b32.xlu0 %v343, 18
        %v563 = vpop.permute.xlu0 %562
        %564 = vrot.lane.b32.xlu0 %v349, 18
        %v565 = vpop.permute.xlu0 %564
        %566 = vrot.lane.b32.xlu0 %v308, 18
        %v567 = vpop.permute.xlu0 %566
        %568 = vrot.lane.b32.xlu0 %v314, 18
        %v569 = vpop.permute.xlu0 %568
        %570 = vrot.lane.b32.xlu0 %v320, 18
        %v571 = vpop.permute.xlu0 %570
        %572 = vrot.lane.b32.xlu0 %v326, 18
        %v573 = vpop.permute.xlu0 %572
        %574 = vrot.lane.b32.xlu0 %v332, 18
        %v575 = vpop.permute.xlu0 %574
        %576 = vrot.lane.b32.xlu0 %v338, 18
        %v577 = vpop.permute.xlu0 %576
        %578 = vrot.lane.b32.xlu0 %v344, 18
        %v579 = vpop.permute.xlu0 %578
        %580 = vrot.lane.b32.xlu0 %v350, 18
        %v581 = vpop.permute.xlu0 %580
        %582 = vrot.lane.b32.xlu0 %v309, 18
        %v583 = vpop.permute.xlu0 %582
        %584 = vrot.lane.b32.xlu0 %v315, 18
        %v585 = vpop.permute.xlu0 %584
        %586 = vrot.lane.b32.xlu0 %v321, 18
        %v587 = vpop.permute.xlu0 %586
        %588 = vrot.lane.b32.xlu0 %v327, 18
        %v589 = vpop.permute.xlu0 %588
        %590 = vrot.lane.b32.xlu0 %v333, 18
        %v591 = vpop.permute.xlu0 %590
        %592 = vrot.lane.b32.xlu0 %v339, 18
        %v593 = vpop.permute.xlu0 %592
        %594 = vrot.lane.b32.xlu0 %v345, 18
        %v595 = vpop.permute.xlu0 %594
        %596 = vrot.lane.b32.xlu0 %v351, 18
        %v597 = vpop.permute.xlu0 %596
        %598 = vrot.lane.b32.xlu0 %v310, 18
        %v599 = vpop.permute.xlu0 %598
        %600 = vrot.lane.b32.xlu0 %v316, 18
        %v601 = vpop.permute.xlu0 %600
        %602 = vrot.lane.b32.xlu0 %v322, 18
        %v603 = vpop.permute.xlu0 %602
        %604 = vrot.lane.b32.xlu0 %v328, 18
        %v605 = vpop.permute.xlu0 %604
        %606 = vrot.lane.b32.xlu0 %v334, 18
        %v607 = vpop.permute.xlu0 %606
        %608 = vrot.lane.b32.xlu0 %v340, 18
        %v609 = vpop.permute.xlu0 %608
        %610 = vrot.lane.b32.xlu0 %v346, 18
        %v611 = vpop.permute.xlu0 %610
        %612 = vrot.lane.b32.xlu0 %v352, 18
        %v613 = vpop.permute.xlu0 %612
        %614 = vrot.lane.b32.xlu0 %v311, 18
        %v615 = vpop.permute.xlu0 %614
        %616 = vrot.lane.b32.xlu0 %v317, 18
        %v617 = vpop.permute.xlu0 %616
        %618 = vrot.lane.b32.xlu0 %v323, 18
        %v619 = vpop.permute.xlu0 %618
        %620 = vrot.lane.b32.xlu0 %v329, 18
        %v621 = vpop.permute.xlu0 %620
        %622 = vrot.lane.b32.xlu0 %v335, 18
        %v623 = vpop.permute.xlu0 %622
        %624 = vrot.lane.b32.xlu0 %v341, 18
        %v625 = vpop.permute.xlu0 %624
        %626 = vrot.lane.b32.xlu0 %v347, 18
        %v627 = vpop.permute.xlu0 %626
        %628 = vrot.lane.b32.xlu0 %v353, 18
        %v629 = vpop.permute.xlu0 %628
        %630 = vrot.lane.b32.xlu0 %v312, 18
        %v631 = vpop.permute.xlu0 %630
        %632 = vrot.lane.b32.xlu0 %v318, 18
        %v633 = vpop.permute.xlu0 %632
        %634 = vrot.lane.b32.xlu0 %v324, 18
        %v635 = vpop.permute.xlu0 %634
        %636 = vrot.lane.b32.xlu0 %v330, 18
        %v637 = vpop.permute.xlu0 %636
        %638 = vrot.lane.b32.xlu0 %v336, 18
        %v639 = vpop.permute.xlu0 %638
        %640 = vrot.lane.b32.xlu0 %v342, 18
        %v641 = vpop.permute.xlu0 %640
        %642 = vrot.lane.b32.xlu0 %v348, 18
        %v643 = vpop.permute.xlu0 %642
        %644 = vrot.lane.b32.xlu0 %v354, 18
        %v645 = vpop.permute.xlu0 %644
        %vm646 = vcmp.lt.s32.totalorder %v452, 18
        %v647 = vsel %vm646, %v615, %v631
        %v648 = vsel %vm646, %v617, %v633
        %v649 = vsel %vm646, %v619, %v635
        %v650 = vsel %vm646, %v621, %v637
        %v651 = vsel %vm646, %v623, %v639
        %v652 = vsel %vm646, %v625, %v641
        %v653 = vsel %vm646, %v627, %v643
        %v654 = vsel %vm646, %v629, %v645
        %v655 = vsel %vm646, %v599, %v615
        %v656 = vsel %vm646, %v601, %v617
        %v657 = vsel %vm646, %v603, %v619
        %v658 = vsel %vm646, %v605, %v621
        %v659 = vsel %vm646, %v607, %v623
        %v660 = vsel %vm646, %v609, %v625
        %v661 = vsel %vm646, %v611, %v627
        %v662 = vsel %vm646, %v613, %v629
        %v663 = vsel %vm646, %v583, %v599
        %v664 = vsel %vm646, %v585, %v601
        %v665 = vsel %vm646, %v587, %v603
        %v666 = vsel %vm646, %v589, %v605
        %v667 = vsel %vm646, %v591, %v607
        %v668 = vsel %vm646, %v593, %v609
        %v669 = vsel %vm646, %v595, %v611
        %v670 = vsel %vm646, %v597, %v613
        %v671 = vsel %vm646, %v567, %v583
        %v672 = vsel %vm646, %v569, %v585
        %v673 = vsel %vm646, %v571, %v587
        %v674 = vsel %vm646, %v573, %v589
        %v675 = vsel %vm646, %v575, %v591
        %v676 = vsel %vm646, %v577, %v593
        %v677 = vsel %vm646, %v579, %v595
        %v678 = vsel %vm646, %v581, %v597
        %v679 = vsel %vm646, %v551, %v567
        %v680 = vsel %vm646, %v553, %v569
        %v681 = vsel %vm646, %v555, %v571
        %v682 = vsel %vm646, %v557, %v573
        %v683 = vsel %vm646, %v559, %v575
        %v684 = vsel %vm646, %v561, %v577
        %v685 = vsel %vm646, %v563, %v579
        %v686 = vsel %vm646, %v565, %v581
        %v687 = vsel %vm646, %v631, %v551
        %v688 = vsel %vm646, %v633, %v553
        %v689 = vsel %vm646, %v635, %v555
        %v690 = vsel %vm646, %v637, %v557
        %v691 = vsel %vm646, %v639, %v559
        %v692 = vsel %vm646, %v641, %v561
        %v693 = vsel %vm646, %v643, %v563
        %v694 = vsel %vm646, %v645, %v565
        %695 = vst [vmem:[#allocation2 + $0x180] sm:$0xff] %v687
        %696 = vst [vmem:[#allocation2 + $0x188] sm:$0xff] %v679
        %697 = vst [vmem:[#allocation2 + $0x190] sm:$0xff] %v671
        %698 = vst [vmem:[#allocation2 + $0x198] sm:$0xff] %v663
        %699 = vst [vmem:[#allocation2 + $0x1a0] sm:$0xff] %v655
        %700 = vst [vmem:[#allocation2 + $0x1a8] sm:$0xff] %v647
        %701 = vst [vmem:[#allocation2 + $0x1b0] sm:$0xff] %v688
        %702 = vst [vmem:[#allocation2 + $0x1b8] sm:$0xff] %v680
        %703 = vst [vmem:[#allocation2 + $0x1c0] sm:$0xff] %v672
        %704 = vst [vmem:[#allocation2 + $0x1c8] sm:$0xff] %v664
        %705 = vst [vmem:[#allocation2 + $0x1d0] sm:$0xff] %v656
        %706 = vst [vmem:[#allocation2 + $0x1d8] sm:$0xff] %v648
        %707 = vst [vmem:[#allocation2 + $0x1e0] sm:$0xff] %v689
        %708 = vst [vmem:[#allocation2 + $0x1e8] sm:$0xff] %v681
        %709 = vst [vmem:[#allocation2 + $0x1f0] sm:$0xff] %v673
        %710 = vst [vmem:[#allocation2 + $0x1f8] sm:$0xff] %v665
        %711 = vst [vmem:[#allocation2 + $0x200] sm:$0xff] %v657
        %712 = vst [vmem:[#allocation2 + $0x208] sm:$0xff] %v649
        %713 = vst [vmem:[#allocation2 + $0x210] sm:$0xff] %v690
        %714 = vst [vmem:[#allocation2 + $0x218] sm:$0xff] %v682
        %715 = vst [vmem:[#allocation2 + $0x220] sm:$0xff] %v674
        %716 = vst [vmem:[#allocation2 + $0x228] sm:$0xff] %v666
        %717 = vst [vmem:[#allocation2 + $0x230] sm:$0xff] %v658
        %718 = vst [vmem:[#allocation2 + $0x238] sm:$0xff] %v650
        %719 = vst [vmem:[#allocation2 + $0x240] sm:$0xff] %v691
        %720 = vst [vmem:[#allocation2 + $0x248] sm:$0xff] %v683
        %721 = vst [vmem:[#allocation2 + $0x250] sm:$0xff] %v675
        %722 = vst [vmem:[#allocation2 + $0x258] sm:$0xff] %v667
        %723 = vst [vmem:[#allocation2 + $0x260] sm:$0xff] %v659
        %724 = vst [vmem:[#allocation2 + $0x268] sm:$0xff] %v651
        %725 = vst [vmem:[#allocation2 + $0x270] sm:$0xff] %v692
        %726 = vst [vmem:[#allocation2 + $0x278] sm:$0xff] %v684
        %727 = vst [vmem:[#allocation2 + $0x280] sm:$0xff] %v676
        %728 = vst [vmem:[#allocation2 + $0x288] sm:$0xff] %v668
        %729 = vst [vmem:[#allocation2 + $0x290] sm:$0xff] %v660
        %730 = vst [vmem:[#allocation2 + $0x298] sm:$0xff] %v652
        %731 = vst [vmem:[#allocation2 + $0x2a0] sm:$0xff] %v693
        %732 = vst [vmem:[#allocation2 + $0x2a8] sm:$0xff] %v685
        %733 = vst [vmem:[#allocation2 + $0x2b0] sm:$0xff] %v677
        %734 = vst [vmem:[#allocation2 + $0x2b8] sm:$0xff] %v669
        %735 = vst [vmem:[#allocation2 + $0x2c0] sm:$0xff] %v661
        %736 = vst [vmem:[#allocation2 + $0x2c8] sm:$0xff] %v653
        %737 = vst [vmem:[#allocation2 + $0x2d0] sm:$0xff] %v694
        %738 = vst [vmem:[#allocation2 + $0x2d8] sm:$0xff] %v686
        %739 = vst [vmem:[#allocation2 + $0x2e0] sm:$0xff] %v678
        %740 = vst [vmem:[#allocation2 + $0x2e8] sm:$0xff] %v670
        %741 = vst [vmem:[#allocation2 + $0x2f0] sm:$0xff] %v662
        %742 = vst [vmem:[#allocation2 + $0x2f8] sm:$0xff] %v654
        %743 = vrot.lane.b32.xlu0 %v307, 17
        %v744 = vpop.permute.xlu0 %743
        %745 = vrot.lane.b32.xlu0 %v313, 17
        %v746 = vpop.permute.xlu0 %745
        %747 = vrot.lane.b32.xlu0 %v319, 17
        %v748 = vpop.permute.xlu0 %747
        %749 = vrot.lane.b32.xlu0 %v325, 17
        %v750 = vpop.permute.xlu0 %749
        %751 = vrot.lane.b32.xlu0 %v331, 17
        %v752 = vpop.permute.xlu0 %751
        %753 = vrot.lane.b32.xlu0 %v337, 17
        %v754 = vpop.permute.xlu0 %753
        %755 = vrot.lane.b32.xlu0 %v343, 17
        %v756 = vpop.permute.xlu0 %755
        %757 = vrot.lane.b32.xlu0 %v349, 17
        %v758 = vpop.permute.xlu0 %757
        %759 = vrot.lane.b32.xlu0 %v308, 17
        %v760 = vpop.permute.xlu0 %759
        %761 = vrot.lane.b32.xlu0 %v314, 17
        %v762 = vpop.permute.xlu0 %761
        %763 = vrot.lane.b32.xlu0 %v320, 17
        %v764 = vpop.permute.xlu0 %763
        %765 = vrot.lane.b32.xlu0 %v326, 17
        %v766 = vpop.permute.xlu0 %765
        %767 = vrot.lane.b32.xlu0 %v332, 17
        %v768 = vpop.permute.xlu0 %767
        %769 = vrot.lane.b32.xlu0 %v338, 17
        %v770 = vpop.permute.xlu0 %769
        %771 = vrot.lane.b32.xlu0 %v344, 17
        %v772 = vpop.permute.xlu0 %771
        %773 = vrot.lane.b32.xlu0 %v350, 17
        %v774 = vpop.permute.xlu0 %773
        %775 = vrot.lane.b32.xlu0 %v309, 17
        %v776 = vpop.permute.xlu0 %775
        %777 = vrot.lane.b32.xlu0 %v315, 17
        %v778 = vpop.permute.xlu0 %777
        %779 = vrot.lane.b32.xlu0 %v321, 17
        %v780 = vpop.permute.xlu0 %779
        %781 = vrot.lane.b32.xlu0 %v327, 17
        %v782 = vpop.permute.xlu0 %781
        %783 = vrot.lane.b32.xlu0 %v333, 17
        %v784 = vpop.permute.xlu0 %783
        %785 = vrot.lane.b32.xlu0 %v339, 17
        %v786 = vpop.permute.xlu0 %785
        %787 = vrot.lane.b32.xlu0 %v345, 17
        %v788 = vpop.permute.xlu0 %787
        %789 = vrot.lane.b32.xlu0 %v351, 17
        %v790 = vpop.permute.xlu0 %789
        %791 = vrot.lane.b32.xlu0 %v310, 17
        %v792 = vpop.permute.xlu0 %791
        %793 = vrot.lane.b32.xlu0 %v316, 17
        %v794 = vpop.permute.xlu0 %793
        %795 = vrot.lane.b32.xlu0 %v322, 17
        %v796 = vpop.permute.xlu0 %795
        %797 = vrot.lane.b32.xlu0 %v328, 17
        %v798 = vpop.permute.xlu0 %797
        %799 = vrot.lane.b32.xlu0 %v334, 17
        %v800 = vpop.permute.xlu0 %799
        %801 = vrot.lane.b32.xlu0 %v340, 17
        %v802 = vpop.permute.xlu0 %801
        %803 = vrot.lane.b32.xlu0 %v346, 17
        %v804 = vpop.permute.xlu0 %803
        %805 = vrot.lane.b32.xlu0 %v352, 17
        %v806 = vpop.permute.xlu0 %805
        %807 = vrot.lane.b32.xlu0 %v311, 17
        %v808 = vpop.permute.xlu0 %807
        %809 = vrot.lane.b32.xlu0 %v317, 17
        %v810 = vpop.permute.xlu0 %809
        %811 = vrot.lane.b32.xlu0 %v323, 17
        %v812 = vpop.permute.xlu0 %811
        %813 = vrot.lane.b32.xlu0 %v329, 17
        %v814 = vpop.permute.xlu0 %813
        %815 = vrot.lane.b32.xlu0 %v335, 17
        %v816 = vpop.permute.xlu0 %815
        %817 = vrot.lane.b32.xlu0 %v341, 17
        %v818 = vpop.permute.xlu0 %817
        %819 = vrot.lane.b32.xlu0 %v347, 17
        %v820 = vpop.permute.xlu0 %819
        %821 = vrot.lane.b32.xlu0 %v353, 17
        %v822 = vpop.permute.xlu0 %821
        %823 = vrot.lane.b32.xlu0 %v312, 17
        %v824 = vpop.permute.xlu0 %823
        %825 = vrot.lane.b32.xlu0 %v318, 17
        %v826 = vpop.permute.xlu0 %825
        %827 = vrot.lane.b32.xlu0 %v324, 17
        %v828 = vpop.permute.xlu0 %827
        %829 = vrot.lane.b32.xlu0 %v330, 17
        %v830 = vpop.permute.xlu0 %829
        %831 = vrot.lane.b32.xlu0 %v336, 17
        %v832 = vpop.permute.xlu0 %831
        %833 = vrot.lane.b32.xlu0 %v342, 17
        %v834 = vpop.permute.xlu0 %833
        %835 = vrot.lane.b32.xlu0 %v348, 17
        %v836 = vpop.permute.xlu0 %835
        %837 = vrot.lane.b32.xlu0 %v354, 17
        %v838 = vpop.permute.xlu0 %837
        %vm839 = vcmp.lt.s32.totalorder %v452, 17
        %v840 = vsel %vm839, %v808, %v824
        %v841 = vsel %vm839, %v810, %v826
        %v842 = vsel %vm839, %v812, %v828
        %v843 = vsel %vm839, %v814, %v830
        %v844 = vsel %vm839, %v816, %v832
        %v845 = vsel %vm839, %v818, %v834
        %v846 = vsel %vm839, %v820, %v836
        %v847 = vsel %vm839, %v822, %v838
        %v848 = vsel %vm839, %v792, %v808
        %v849 = vsel %vm839, %v794, %v810
        %v850 = vsel %vm839, %v796, %v812
        %v851 = vsel %vm839, %v798, %v814
        %v852 = vsel %vm839, %v800, %v816
        %v853 = vsel %vm839, %v802, %v818
        %v854 = vsel %vm839, %v804, %v820
        %v855 = vsel %vm839, %v806, %v822
        %v856 = vsel %vm839, %v776, %v792
        %v857 = vsel %vm839, %v778, %v794
        %v858 = vsel %vm839, %v780, %v796
        %v859 = vsel %vm839, %v782, %v798
        %v860 = vsel %vm839, %v784, %v800
        %v861 = vsel %vm839, %v786, %v802
        %v862 = vsel %vm839, %v788, %v804
        %v863 = vsel %vm839, %v790, %v806
        %v864 = vsel %vm839, %v760, %v776
        %v865 = vsel %vm839, %v762, %v778
        %v866 = vsel %vm839, %v764, %v780
        %v867 = vsel %vm839, %v766, %v782
        %v868 = vsel %vm839, %v768, %v784
        %v869 = vsel %vm839, %v770, %v786
        %v870 = vsel %vm839, %v772, %v788
        %v871 = vsel %vm839, %v774, %v790
        %v872 = vsel %vm839, %v744, %v760
        %v873 = vsel %vm839, %v746, %v762
        %v874 = vsel %vm839, %v748, %v764
        %v875 = vsel %vm839, %v750, %v766
        %v876 = vsel %vm839, %v752, %v768
        %v877 = vsel %vm839, %v754, %v770
        %v878 = vsel %vm839, %v756, %v772
        %v879 = vsel %vm839, %v758, %v774
        %v880 = vsel %vm839, %v824, %v744
        %v881 = vsel %vm839, %v826, %v746
        %v882 = vsel %vm839, %v828, %v748
        %v883 = vsel %vm839, %v830, %v750
        %v884 = vsel %vm839, %v832, %v752
        %v885 = vsel %vm839, %v834, %v754
        %v886 = vsel %vm839, %v836, %v756
        %v887 = vsel %vm839, %v838, %v758
        %888 = vst [vmem:[#allocation2 + $0x300] sm:$0xff] %v880
        %889 = vst [vmem:[#allocation2 + $0x308] sm:$0xff] %v872
        %890 = vst [vmem:[#allocation2 + $0x310] sm:$0xff] %v864
        %891 = vst [vmem:[#allocation2 + $0x318] sm:$0xff] %v856
        %892 = vst [vmem:[#allocation2 + $0x320] sm:$0xff] %v848
        %893 = vst [vmem:[#allocation2 + $0x328] sm:$0xff] %v840
        %894 = vst [vmem:[#allocation2 + $0x330] sm:$0xff] %v881
        %895 = vst [vmem:[#allocation2 + $0x338] sm:$0xff] %v873
        %896 = vst [vmem:[#allocation2 + $0x340] sm:$0xff] %v865
        %897 = vst [vmem:[#allocation2 + $0x348] sm:$0xff] %v857
        %898 = vst [vmem:[#allocation2 + $0x350] sm:$0xff] %v849
        %899 = vst [vmem:[#allocation2 + $0x358] sm:$0xff] %v841
        %900 = vst [vmem:[#allocation2 + $0x360] sm:$0xff] %v882
        %901 = vst [vmem:[#allocation2 + $0x368] sm:$0xff] %v874
        %902 = vst [vmem:[#allocation2 + $0x370] sm:$0xff] %v866
        %903 = vst [vmem:[#allocation2 + $0x378] sm:$0xff] %v858
        %904 = vst [vmem:[#allocation2 + $0x380] sm:$0xff] %v850
        %905 = vst [vmem:[#allocation2 + $0x388] sm:$0xff] %v842
        %906 = vst [vmem:[#allocation2 + $0x390] sm:$0xff] %v883
        %907 = vst [vmem:[#allocation2 + $0x398] sm:$0xff] %v875
        %908 = vst [vmem:[#allocation2 + $0x3a0] sm:$0xff] %v867
        %909 = vst [vmem:[#allocation2 + $0x3a8] sm:$0xff] %v859
        %910 = vst [vmem:[#allocation2 + $0x3b0] sm:$0xff] %v851
        %911 = vst [vmem:[#allocation2 + $0x3b8] sm:$0xff] %v843
        %912 = vst [vmem:[#allocation2 + $0x3c0] sm:$0xff] %v884
        %913 = vst [vmem:[#allocation2 + $0x3c8] sm:$0xff] %v876
        %914 = vst [vmem:[#allocation2 + $0x3d0] sm:$0xff] %v868
        %915 = vst [vmem:[#allocation2 + $0x3d8] sm:$0xff] %v860
        %916 = vst [vmem:[#allocation2 + $0x3e0] sm:$0xff] %v852
        %917 = vst [vmem:[#allocation2 + $0x3e8] sm:$0xff] %v844
        %918 = vst [vmem:[#allocation2 + $0x3f0] sm:$0xff] %v885
        %919 = vst [vmem:[#allocation2 + $0x3f8] sm:$0xff] %v877
        %920 = vst [vmem:[#allocation2 + $0x400] sm:$0xff] %v869
        %921 = vst [vmem:[#allocation2 + $0x408] sm:$0xff] %v861
        %922 = vst [vmem:[#allocation2 + $0x410] sm:$0xff] %v853
        %923 = vst [vmem:[#allocation2 + $0x418] sm:$0xff] %v845
        %924 = vst [vmem:[#allocation2 + $0x420] sm:$0xff] %v886
        %925 = vst [vmem:[#allocation2 + $0x428] sm:$0xff] %v878
        %926 = vst [vmem:[#allocation2 + $0x430] sm:$0xff] %v870
        %927 = vst [vmem:[#allocation2 + $0x438] sm:$0xff] %v862
        %928 = vst [vmem:[#allocation2 + $0x440] sm:$0xff] %v854
        %929 = vst [vmem:[#allocation2 + $0x448] sm:$0xff] %v846
        %930 = vst [vmem:[#allocation2 + $0x450] sm:$0xff] %v887
        %931 = vst [vmem:[#allocation2 + $0x458] sm:$0xff] %v879
        %932 = vst [vmem:[#allocation2 + $0x460] sm:$0xff] %v871
        %933 = vst [vmem:[#allocation2 + $0x468] sm:$0xff] %v863
        %934 = vst [vmem:[#allocation2 + $0x470] sm:$0xff] %v855
        %935 = vst [vmem:[#allocation2 + $0x478] sm:$0xff] %v847
        %936 = vrot.lane.b32.xlu0 %v307, 1
        %v937 = vpop.permute.xlu0 %936
        %938 = vrot.lane.b32.xlu0 %v313, 1
        %v939 = vpop.permute.xlu0 %938
        %940 = vrot.lane.b32.xlu0 %v319, 1
        %v941 = vpop.permute.xlu0 %940
        %942 = vrot.lane.b32.xlu0 %v325, 1
        %v943 = vpop.permute.xlu0 %942
        %944 = vrot.lane.b32.xlu0 %v331, 1
        %v945 = vpop.permute.xlu0 %944
        %946 = vrot.lane.b32.xlu0 %v337, 1
        %v947 = vpop.permute.xlu0 %946
        %948 = vrot.lane.b32.xlu0 %v343, 1
        %v949 = vpop.permute.xlu0 %948
        %950 = vrot.lane.b32.xlu0 %v349, 1
        %v951 = vpop.permute.xlu0 %950
        %952 = vrot.lane.b32.xlu0 %v308, 1
        %v953 = vpop.permute.xlu0 %952
        %954 = vrot.lane.b32.xlu0 %v314, 1
        %v955 = vpop.permute.xlu0 %954
        %956 = vrot.lane.b32.xlu0 %v320, 1
        %v957 = vpop.permute.xlu0 %956
        %958 = vrot.lane.b32.xlu0 %v326, 1
        %v959 = vpop.permute.xlu0 %958
        %960 = vrot.lane.b32.xlu0 %v332, 1
        %v961 = vpop.permute.xlu0 %960
        %962 = vrot.lane.b32.xlu0 %v338, 1
        %v963 = vpop.permute.xlu0 %962
        %964 = vrot.lane.b32.xlu0 %v344, 1
        %v965 = vpop.permute.xlu0 %964
        %966 = vrot.lane.b32.xlu0 %v350, 1
        %v967 = vpop.permute.xlu0 %966
        %968 = vrot.lane.b32.xlu0 %v309, 1
        %v969 = vpop.permute.xlu0 %968
        %970 = vrot.lane.b32.xlu0 %v315, 1
        %v971 = vpop.permute.xlu0 %970
        %972 = vrot.lane.b32.xlu0 %v321, 1
        %v973 = vpop.permute.xlu0 %972
        %974 = vrot.lane.b32.xlu0 %v327, 1
        %v975 = vpop.permute.xlu0 %974
        %976 = vrot.lane.b32.xlu0 %v333, 1
        %v977 = vpop.permute.xlu0 %976
        %978 = vrot.lane.b32.xlu0 %v339, 1
        %v979 = vpop.permute.xlu0 %978
        %980 = vrot.lane.b32.xlu0 %v345, 1
        %v981 = vpop.permute.xlu0 %980
        %982 = vrot.lane.b32.xlu0 %v351, 1
        %v983 = vpop.permute.xlu0 %982
        %984 = vrot.lane.b32.xlu0 %v310, 1
        %v985 = vpop.permute.xlu0 %984
        %986 = vrot.lane.b32.xlu0 %v316, 1
        %v987 = vpop.permute.xlu0 %986
        %988 = vrot.lane.b32.xlu0 %v322, 1
        %v989 = vpop.permute.xlu0 %988
        %990 = vrot.lane.b32.xlu0 %v328, 1
        %v991 = vpop.permute.xlu0 %990
        %992 = vrot.lane.b32.xlu0 %v334, 1
        %v993 = vpop.permute.xlu0 %992
        %994 = vrot.lane.b32.xlu0 %v340, 1
        %v995 = vpop.permute.xlu0 %994
        %996 = vrot.lane.b32.xlu0 %v346, 1
        %v997 = vpop.permute.xlu0 %996
        %998 = vrot.lane.b32.xlu0 %v352, 1
        %v999 = vpop.permute.xlu0 %998
        %1000 = vrot.lane.b32.xlu0 %v311, 1
        %v1001 = vpop.permute.xlu0 %1000
        %1002 = vrot.lane.b32.xlu0 %v317, 1
        %v1003 = vpop.permute.xlu0 %1002
        %1004 = vrot.lane.b32.xlu0 %v323, 1
        %v1005 = vpop.permute.xlu0 %1004
        %1006 = vrot.lane.b32.xlu0 %v329, 1
        %v1007 = vpop.permute.xlu0 %1006
        %1008 = vrot.lane.b32.xlu0 %v335, 1
        %v1009 = vpop.permute.xlu0 %1008
        %1010 = vrot.lane.b32.xlu0 %v341, 1
        %v1011 = vpop.permute.xlu0 %1010
        %1012 = vrot.lane.b32.xlu0 %v347, 1
        %v1013 = vpop.permute.xlu0 %1012
        %1014 = vrot.lane.b32.xlu0 %v353, 1
        %v1015 = vpop.permute.xlu0 %1014
        %1016 = vrot.lane.b32.xlu0 %v312, 1
        %v1017 = vpop.permute.xlu0 %1016
        %1018 = vrot.lane.b32.xlu0 %v318, 1
        %v1019 = vpop.permute.xlu0 %1018
        %1020 = vrot.lane.b32.xlu0 %v324, 1
        %v1021 = vpop.permute.xlu0 %1020
        %1022 = vrot.lane.b32.xlu0 %v330, 1
        %v1023 = vpop.permute.xlu0 %1022
        %1024 = vrot.lane.b32.xlu0 %v336, 1
        %v1025 = vpop.permute.xlu0 %1024
        %1026 = vrot.lane.b32.xlu0 %v342, 1
        %v1027 = vpop.permute.xlu0 %1026
        %1028 = vrot.lane.b32.xlu0 %v348, 1
        %v1029 = vpop.permute.xlu0 %1028
        %1030 = vrot.lane.b32.xlu0 %v354, 1
        %v1031 = vpop.permute.xlu0 %1030
        %vm1032 = vcmp.lt.s32.totalorder %v452, 1
        %v1033 = vsel %vm1032, %v1001, %v1017
        %v1034 = vsel %vm1032, %v1003, %v1019
        %v1035 = vsel %vm1032, %v1005, %v1021
        %v1036 = vsel %vm1032, %v1007, %v1023
        %v1037 = vsel %vm1032, %v1009, %v1025
        %v1038 = vsel %vm1032, %v1011, %v1027
        %v1039 = vsel %vm1032, %v1013, %v1029
        %v1040 = vsel %vm1032, %v1015, %v1031
        %v1041 = vsel %vm1032, %v985, %v1001
        %v1042 = vsel %vm1032, %v987, %v1003
        %v1043 = vsel %vm1032, %v989, %v1005
        %v1044 = vsel %vm1032, %v991, %v1007
        %v1045 = vsel %vm1032, %v993, %v1009
        %v1046 = vsel %vm1032, %v995, %v1011
        %v1047 = vsel %vm1032, %v997, %v1013
        %v1048 = vsel %vm1032, %v999, %v1015
        %v1049 = vsel %vm1032, %v969, %v985
        %v1050 = vsel %vm1032, %v971, %v987
        %v1051 = vsel %vm1032, %v973, %v989
        %v1052 = vsel %vm1032, %v975, %v991
        %v1053 = vsel %vm1032, %v977, %v993
        %v1054 = vsel %vm1032, %v979, %v995
        %v1055 = vsel %vm1032, %v981, %v997
        %v1056 = vsel %vm1032, %v983, %v999
        %v1057 = vsel %vm1032, %v953, %v969
        %v1058 = vsel %vm1032, %v955, %v971
        %v1059 = vsel %vm1032, %v957, %v973
        %v1060 = vsel %vm1032, %v959, %v975
        %v1061 = vsel %vm1032, %v961, %v977
        %v1062 = vsel %vm1032, %v963, %v979
        %v1063 = vsel %vm1032, %v965, %v981
        %v1064 = vsel %vm1032, %v967, %v983
        %v1065 = vsel %vm1032, %v937, %v953
        %v1066 = vsel %vm1032, %v939, %v955
        %v1067 = vsel %vm1032, %v941, %v957
        %v1068 = vsel %vm1032, %v943, %v959
        %v1069 = vsel %vm1032, %v945, %v961
        %v1070 = vsel %vm1032, %v947, %v963
        %v1071 = vsel %vm1032, %v949, %v965
        %v1072 = vsel %vm1032, %v951, %v967
        %v1073 = vsel %vm1032, %v1017, %v937
        %v1074 = vsel %vm1032, %v1019, %v939
        %v1075 = vsel %vm1032, %v1021, %v941
        %v1076 = vsel %vm1032, %v1023, %v943
        %v1077 = vsel %vm1032, %v1025, %v945
        %v1078 = vsel %vm1032, %v1027, %v947
        %v1079 = vsel %vm1032, %v1029, %v949
        %v1080 = vsel %vm1032, %v1031, %v951
        %1081 = vst [vmem:[#allocation2 + $0x480] sm:$0xff] %v1073
        %1082 = vst [vmem:[#allocation2 + $0x488] sm:$0xff] %v1065
        %1083 = vst [vmem:[#allocation2 + $0x490] sm:$0xff] %v1057
        %1084 = vst [vmem:[#allocation2 + $0x498] sm:$0xff] %v1049
        %1085 = vst [vmem:[#allocation2 + $0x4a0] sm:$0xff] %v1041
        %1086 = vst [vmem:[#allocation2 + $0x4a8] sm:$0xff] %v1033
        %1087 = vst [vmem:[#allocation2 + $0x4b0] sm:$0xff] %v1074
        %1088 = vst [vmem:[#allocation2 + $0x4b8] sm:$0xff] %v1066
        %1089 = vst [vmem:[#allocation2 + $0x4c0] sm:$0xff] %v1058
        %1090 = vst [vmem:[#allocation2 + $0x4c8] sm:$0xff] %v1050
        %1091 = vst [vmem:[#allocation2 + $0x4d0] sm:$0xff] %v1042
        %1092 = vst [vmem:[#allocation2 + $0x4d8] sm:$0xff] %v1034
        %1093 = vst [vmem:[#allocation2 + $0x4e0] sm:$0xff] %v1075
        %1094 = vst [vmem:[#allocation2 + $0x4e8] sm:$0xff] %v1067
        %1095 = vst [vmem:[#allocation2 + $0x4f0] sm:$0xff] %v1059
        %1096 = vst [vmem:[#allocation2 + $0x4f8] sm:$0xff] %v1051
        %1097 = vst [vmem:[#allocation2 + $0x500] sm:$0xff] %v1043
        %1098 = vst [vmem:[#allocation2 + $0x508] sm:$0xff] %v1035
        %1099 = vst [vmem:[#allocation2 + $0x510] sm:$0xff] %v1076
        %1100 = vst [vmem:[#allocation2 + $0x518] sm:$0xff] %v1068
        %1101 = vst [vmem:[#allocation2 + $0x520] sm:$0xff] %v1060
        %1102 = vst [vmem:[#allocation2 + $0x528] sm:$0xff] %v1052
        %1103 = vst [vmem:[#allocation2 + $0x530] sm:$0xff] %v1044
        %1104 = vst [vmem:[#allocation2 + $0x538] sm:$0xff] %v1036
        %1105 = vst [vmem:[#allocation2 + $0x540] sm:$0xff] %v1077
        %1106 = vst [vmem:[#allocation2 + $0x548] sm:$0xff] %v1069
        %1107 = vst [vmem:[#allocation2 + $0x550] sm:$0xff] %v1061
        %1108 = vst [vmem:[#allocation2 + $0x558] sm:$0xff] %v1053
        %1109 = vst [vmem:[#allocation2 + $0x560] sm:$0xff] %v1045
        %1110 = vst [vmem:[#allocation2 + $0x568] sm:$0xff] %v1037
        %1111 = vst [vmem:[#allocation2 + $0x570] sm:$0xff] %v1078
        %1112 = vst [vmem:[#allocation2 + $0x578] sm:$0xff] %v1070
        %1113 = vst [vmem:[#allocation2 + $0x580] sm:$0xff] %v1062
        %1114 = vst [vmem:[#allocation2 + $0x588] sm:$0xff] %v1054
        %1115 = vst [vmem:[#allocation2 + $0x590] sm:$0xff] %v1046
        %1116 = vst [vmem:[#allocation2 + $0x598] sm:$0xff] %v1038
        %1117 = vst [vmem:[#allocation2 + $0x5a0] sm:$0xff] %v1079
        %1118 = vst [vmem:[#allocation2 + $0x5a8] sm:$0xff] %v1071
        %1119 = vst [vmem:[#allocation2 + $0x5b0] sm:$0xff] %v1063
        %1120 = vst [vmem:[#allocation2 + $0x5b8] sm:$0xff] %v1055
        %1121 = vst [vmem:[#allocation2 + $0x5c0] sm:$0xff] %v1047
        %1122 = vst [vmem:[#allocation2 + $0x5c8] sm:$0xff] %v1039
        %1123 = vst [vmem:[#allocation2 + $0x5d0] sm:$0xff] %v1080
        %1124 = vst [vmem:[#allocation2 + $0x5d8] sm:$0xff] %v1072
        %1125 = vst [vmem:[#allocation2 + $0x5e0] sm:$0xff] %v1064
        %1126 = vst [vmem:[#allocation2 + $0x5e8] sm:$0xff] %v1056
        %1127 = vst [vmem:[#allocation2 + $0x5f0] sm:$0xff] %v1048
        %1128 = vst [vmem:[#allocation2 + $0x5f8] sm:$0xff] %v1040
        %1129 = vst [vmem:[#allocation2 + $0x600] sm:$0xff] %v307
        %1130 = vst [vmem:[#allocation2 + $0x608] sm:$0xff] %v308
        %1131 = vst [vmem:[#allocation2 + $0x610] sm:$0xff] %v309
        %1132 = vst [vmem:[#allocation2 + $0x618] sm:$0xff] %v310
        %1133 = vst [vmem:[#allocation2 + $0x620] sm:$0xff] %v311
        %1134 = vst [vmem:[#allocation2 + $0x628] sm:$0xff] %v312
        %1135 = vst [vmem:[#allocation2 + $0x630] sm:$0xff] %v313
        %1136 = vst [vmem:[#allocation2 + $0x638] sm:$0xff] %v314
        %1137 = vst [vmem:[#allocation2 + $0x640] sm:$0xff] %v315
        %1138 = vst [vmem:[#allocation2 + $0x648] sm:$0xff] %v316
        %1139 = vst [vmem:[#allocation2 + $0x650] sm:$0xff] %v317
        %1140 = vst [vmem:[#allocation2 + $0x658] sm:$0xff] %v318
        %1141 = vst [vmem:[#allocation2 + $0x660] sm:$0xff] %v319
        %1142 = vst [vmem:[#allocation2 + $0x668] sm:$0xff] %v320
        %1143 = vst [vmem:[#allocation2 + $0x670] sm:$0xff] %v321
        %1144 = vst [vmem:[#allocation2 + $0x678] sm:$0xff] %v322
        %1145 = vst [vmem:[#allocation2 + $0x680] sm:$0xff] %v323
        %1146 = vst [vmem:[#allocation2 + $0x688] sm:$0xff] %v324
        %1147 = vst [vmem:[#allocation2 + $0x690] sm:$0xff] %v325
        %1148 = vst [vmem:[#allocation2 + $0x698] sm:$0xff] %v326
        %1149 = vst [vmem:[#allocation2 + $0x6a0] sm:$0xff] %v327
        %1150 = vst [vmem:[#allocation2 + $0x6a8] sm:$0xff] %v328
        %1151 = vst [vmem:[#allocation2 + $0x6b0] sm:$0xff] %v329
        %1152 = vst [vmem:[#allocation2 + $0x6b8] sm:$0xff] %v330
        %1153 = vst [vmem:[#allocation2 + $0x6c0] sm:$0xff] %v331
        %1154 = vst [vmem:[#allocation2 + $0x6c8] sm:$0xff] %v332
        %1155 = vst [vmem:[#allocation2 + $0x6d0] sm:$0xff] %v333
        %1156 = vst [vmem:[#allocation2 + $0x6d8] sm:$0xff] %v334
        %1157 = vst [vmem:[#allocation2 + $0x6e0] sm:$0xff] %v335
        %1158 = vst [vmem:[#allocation2 + $0x6e8] sm:$0xff] %v336
        %1159 = vst [vmem:[#allocation2 + $0x6f0] sm:$0xff] %v337
        %1160 = vst [vmem:[#allocation2 + $0x6f8] sm:$0xff] %v338
        %1161 = vst [vmem:[#allocation2 + $0x700] sm:$0xff] %v339
        %1162 = vst [vmem:[#allocation2 + $0x708] sm:$0xff] %v340
        %1163 = vst [vmem:[#allocation2 + $0x710] sm:$0xff] %v341
        %1164 = vst [vmem:[#allocation2 + $0x718] sm:$0xff] %v342
        %1165 = vst [vmem:[#allocation2 + $0x720] sm:$0xff] %v343
        %1166 = vst [vmem:[#allocation2 + $0x728] sm:$0xff] %v344
        %1167 = vst [vmem:[#allocation2 + $0x730] sm:$0xff] %v345
        %1168 = vst [vmem:[#allocation2 + $0x738] sm:$0xff] %v346
        %1169 = vst [vmem:[#allocation2 + $0x740] sm:$0xff] %v347
        %1170 = vst [vmem:[#allocation2 + $0x748] sm:$0xff] %v348
        %1171 = vst [vmem:[#allocation2 + $0x750] sm:$0xff] %v349
        %1172 = vst [vmem:[#allocation2 + $0x758] sm:$0xff] %v350
        %1173 = vst [vmem:[#allocation2 + $0x760] sm:$0xff] %v351
        %1174 = vst [vmem:[#allocation2 + $0x768] sm:$0xff] %v352
        %1175 = vst [vmem:[#allocation2 + $0x770] sm:$0xff] %v353
        %1176 = vst [vmem:[#allocation2 + $0x778] sm:$0xff] %v354
        %1177 = vrot.lane.b32.xlu0 %v307, 127
        %v1178 = vpop.permute.xlu0 %1177
        %1179 = vrot.lane.b32.xlu0 %v313, 127
        %v1180 = vpop.permute.xlu0 %1179
        %1181 = vrot.lane.b32.xlu0 %v319, 127
        %v1182 = vpop.permute.xlu0 %1181
        %1183 = vrot.lane.b32.xlu0 %v325, 127
        %v1184 = vpop.permute.xlu0 %1183
        %1185 = vrot.lane.b32.xlu0 %v331, 127
        %v1186 = vpop.permute.xlu0 %1185
        %1187 = vrot.lane.b32.xlu0 %v337, 127
        %v1188 = vpop.permute.xlu0 %1187
        %1189 = vrot.lane.b32.xlu0 %v343, 127
        %v1190 = vpop.permute.xlu0 %1189
        %1191 = vrot.lane.b32.xlu0 %v349, 127
        %v1192 = vpop.permute.xlu0 %1191
        %1193 = vrot.lane.b32.xlu0 %v308, 127
        %v1194 = vpop.permute.xlu0 %1193
        %1195 = vrot.lane.b32.xlu0 %v314, 127
        %v1196 = vpop.permute.xlu0 %1195
        %1197 = vrot.lane.b32.xlu0 %v320, 127
        %v1198 = vpop.permute.xlu0 %1197
        %1199 = vrot.lane.b32.xlu0 %v326, 127
        %v1200 = vpop.permute.xlu0 %1199
        %1201 = vrot.lane.b32.xlu0 %v332, 127
        %v1202 = vpop.permute.xlu0 %1201
        %1203 = vrot.lane.b32.xlu0 %v338, 127
        %v1204 = vpop.permute.xlu0 %1203
        %1205 = vrot.lane.b32.xlu0 %v344, 127
        %v1206 = vpop.permute.xlu0 %1205
        %1207 = vrot.lane.b32.xlu0 %v350, 127
        %v1208 = vpop.permute.xlu0 %1207
        %1209 = vrot.lane.b32.xlu0 %v309, 127
        %v1210 = vpop.permute.xlu0 %1209
        %1211 = vrot.lane.b32.xlu0 %v315, 127
        %v1212 = vpop.permute.xlu0 %1211
        %1213 = vrot.lane.b32.xlu0 %v321, 127
        %v1214 = vpop.permute.xlu0 %1213
        %1215 = vrot.lane.b32.xlu0 %v327, 127
        %v1216 = vpop.permute.xlu0 %1215
        %1217 = vrot.lane.b32.xlu0 %v333, 127
        %v1218 = vpop.permute.xlu0 %1217
        %1219 = vrot.lane.b32.xlu0 %v339, 127
        %v1220 = vpop.permute.xlu0 %1219
        %1221 = vrot.lane.b32.xlu0 %v345, 127
        %v1222 = vpop.permute.xlu0 %1221
        %1223 = vrot.lane.b32.xlu0 %v351, 127
        %v1224 = vpop.permute.xlu0 %1223
        %1225 = vrot.lane.b32.xlu0 %v310, 127
        %v1226 = vpop.permute.xlu0 %1225
        %1227 = vrot.lane.b32.xlu0 %v316, 127
        %v1228 = vpop.permute.xlu0 %1227
        %1229 = vrot.lane.b32.xlu0 %v322, 127
        %v1230 = vpop.permute.xlu0 %1229
        %1231 = vrot.lane.b32.xlu0 %v328, 127
        %v1232 = vpop.permute.xlu0 %1231
        %1233 = vrot.lane.b32.xlu0 %v334, 127
        %v1234 = vpop.permute.xlu0 %1233
        %1235 = vrot.lane.b32.xlu0 %v340, 127
        %v1236 = vpop.permute.xlu0 %1235
        %1237 = vrot.lane.b32.xlu0 %v346, 127
        %v1238 = vpop.permute.xlu0 %1237
        %1239 = vrot.lane.b32.xlu0 %v352, 127
        %v1240 = vpop.permute.xlu0 %1239
        %1241 = vrot.lane.b32.xlu0 %v311, 127
        %v1242 = vpop.permute.xlu0 %1241
        %1243 = vrot.lane.b32.xlu0 %v317, 127
        %v1244 = vpop.permute.xlu0 %1243
        %1245 = vrot.lane.b32.xlu0 %v323, 127
        %v1246 = vpop.permute.xlu0 %1245
        %1247 = vrot.lane.b32.xlu0 %v329, 127
        %v1248 = vpop.permute.xlu0 %1247
        %1249 = vrot.lane.b32.xlu0 %v335, 127
        %v1250 = vpop.permute.xlu0 %1249
        %1251 = vrot.lane.b32.xlu0 %v341, 127
        %v1252 = vpop.permute.xlu0 %1251
        %1253 = vrot.lane.b32.xlu0 %v347, 127
        %v1254 = vpop.permute.xlu0 %1253
        %1255 = vrot.lane.b32.xlu0 %v353, 127
        %v1256 = vpop.permute.xlu0 %1255
        %1257 = vrot.lane.b32.xlu0 %v312, 127
        %v1258 = vpop.permute.xlu0 %1257
        %1259 = vrot.lane.b32.xlu0 %v318, 127
        %v1260 = vpop.permute.xlu0 %1259
        %1261 = vrot.lane.b32.xlu0 %v324, 127
        %v1262 = vpop.permute.xlu0 %1261
        %1263 = vrot.lane.b32.xlu0 %v330, 127
        %v1264 = vpop.permute.xlu0 %1263
        %1265 = vrot.lane.b32.xlu0 %v336, 127
        %v1266 = vpop.permute.xlu0 %1265
        %1267 = vrot.lane.b32.xlu0 %v342, 127
        %v1268 = vpop.permute.xlu0 %1267
        %1269 = vrot.lane.b32.xlu0 %v348, 127
        %v1270 = vpop.permute.xlu0 %1269
        %1271 = vrot.lane.b32.xlu0 %v354, 127
        %v1272 = vpop.permute.xlu0 %1271
        %vm1273 = vcmp.lt.s32.totalorder %v452, 127
        %v1274 = vsel %vm1273, %v1242, %v1258
        %v1275 = vsel %vm1273, %v1244, %v1260
        %v1276 = vsel %vm1273, %v1246, %v1262
        %v1277 = vsel %vm1273, %v1248, %v1264
        %v1278 = vsel %vm1273, %v1250, %v1266
        %v1279 = vsel %vm1273, %v1252, %v1268
        %v1280 = vsel %vm1273, %v1254, %v1270
        %v1281 = vsel %vm1273, %v1256, %v1272
        %v1282 = vsel %vm1273, %v1226, %v1242
        %v1283 = vsel %vm1273, %v1228, %v1244
        %v1284 = vsel %vm1273, %v1230, %v1246
        %v1285 = vsel %vm1273, %v1232, %v1248
        %v1286 = vsel %vm1273, %v1234, %v1250
        %v1287 = vsel %vm1273, %v1236, %v1252
        %v1288 = vsel %vm1273, %v1238, %v1254
        %v1289 = vsel %vm1273, %v1240, %v1256
        %v1290 = vsel %vm1273, %v1210, %v1226
        %v1291 = vsel %vm1273, %v1212, %v1228
        %v1292 = vsel %vm1273, %v1214, %v1230
        %v1293 = vsel %vm1273, %v1216, %v1232
        %v1294 = vsel %vm1273, %v1218, %v1234
        %v1295 = vsel %vm1273, %v1220, %v1236
        %v1296 = vsel %vm1273, %v1222, %v1238
        %v1297 = vsel %vm1273, %v1224, %v1240
        %v1298 = vsel %vm1273, %v1194, %v1210
        %v1299 = vsel %vm1273, %v1196, %v1212
        %v1300 = vsel %vm1273, %v1198, %v1214
        %v1301 = vsel %vm1273, %v1200, %v1216
        %v1302 = vsel %vm1273, %v1202, %v1218
        %v1303 = vsel %vm1273, %v1204, %v1220
        %v1304 = vsel %vm1273, %v1206, %v1222
        %v1305 = vsel %vm1273, %v1208, %v1224
        %v1306 = vsel %vm1273, %v1178, %v1194
        %v1307 = vsel %vm1273, %v1180, %v1196
        %v1308 = vsel %vm1273, %v1182, %v1198
        %v1309 = vsel %vm1273, %v1184, %v1200
        %v1310 = vsel %vm1273, %v1186, %v1202
        %v1311 = vsel %vm1273, %v1188, %v1204
        %v1312 = vsel %vm1273, %v1190, %v1206
        %v1313 = vsel %vm1273, %v1192, %v1208
        %v1314 = vsel %vm1273, %v1258, %v1178
        %v1315 = vsel %vm1273, %v1260, %v1180
        %v1316 = vsel %vm1273, %v1262, %v1182
        %v1317 = vsel %vm1273, %v1264, %v1184
        %v1318 = vsel %vm1273, %v1266, %v1186
        %v1319 = vsel %vm1273, %v1268, %v1188
        %v1320 = vsel %vm1273, %v1270, %v1190
        %v1321 = vsel %vm1273, %v1272, %v1192
        %1322 = vst [vmem:[#allocation2 + $0x780] sm:$0xff] %v1306
        %1323 = vst [vmem:[#allocation2 + $0x788] sm:$0xff] %v1298
        %1324 = vst [vmem:[#allocation2 + $0x790] sm:$0xff] %v1290
        %1325 = vst [vmem:[#allocation2 + $0x798] sm:$0xff] %v1282
        %1326 = vst [vmem:[#allocation2 + $0x7a0] sm:$0xff] %v1274
        %1327 = vst [vmem:[#allocation2 + $0x7a8] sm:$0xff] %v1314
        %1328 = vst [vmem:[#allocation2 + $0x7b0] sm:$0xff] %v1307
        %1329 = vst [vmem:[#allocation2 + $0x7b8] sm:$0xff] %v1299
        %1330 = vst [vmem:[#allocation2 + $0x7c0] sm:$0xff] %v1291
        %1331 = vst [vmem:[#allocation2 + $0x7c8] sm:$0xff] %v1283
        %1332 = vst [vmem:[#allocation2 + $0x7d0] sm:$0xff] %v1275
        %1333 = vst [vmem:[#allocation2 + $0x7d8] sm:$0xff] %v1315
        %1334 = vst [vmem:[#allocation2 + $0x7e0] sm:$0xff] %v1308
        %1335 = vst [vmem:[#allocation2 + $0x7e8] sm:$0xff] %v1300
        %1336 = vst [vmem:[#allocation2 + $0x7f0] sm:$0xff] %v1292
        %1337 = vst [vmem:[#allocation2 + $0x7f8] sm:$0xff] %v1284
        %1338 = vst [vmem:[#allocation2 + $0x800] sm:$0xff] %v1276
        %1339 = vst [vmem:[#allocation2 + $0x808] sm:$0xff] %v1316
        %1340 = vst [vmem:[#allocation2 + $0x810] sm:$0xff] %v1309
        %1341 = vst [vmem:[#allocation2 + $0x818] sm:$0xff] %v1301
        %1342 = vst [vmem:[#allocation2 + $0x820] sm:$0xff] %v1293
        %1343 = vst [vmem:[#allocation2 + $0x828] sm:$0xff] %v1285
        %1344 = vst [vmem:[#allocation2 + $0x830] sm:$0xff] %v1277
        %1345 = vst [vmem:[#allocation2 + $0x838] sm:$0xff] %v1317
        %1346 = vst [vmem:[#allocation2 + $0x840] sm:$0xff] %v1310
        %1347 = vst [vmem:[#allocation2 + $0x848] sm:$0xff] %v1302
        %1348 = vst [vmem:[#allocation2 + $0x850] sm:$0xff] %v1294
        %1349 = vst [vmem:[#allocation2 + $0x858] sm:$0xff] %v1286
        %1350 = vst [vmem:[#allocation2 + $0x860] sm:$0xff] %v1278
        %1351 = vst [vmem:[#allocation2 + $0x868] sm:$0xff] %v1318
        %1352 = vst [vmem:[#allocation2 + $0x870] sm:$0xff] %v1311
        %1353 = vst [vmem:[#allocation2 + $0x878] sm:$0xff] %v1303
        %1354 = vst [vmem:[#allocation2 + $0x880] sm:$0xff] %v1295
        %1355 = vst [vmem:[#allocation2 + $0x888] sm:$0xff] %v1287
        %1356 = vst [vmem:[#allocation2 + $0x890] sm:$0xff] %v1279
        %1357 = vst [vmem:[#allocation2 + $0x898] sm:$0xff] %v1319
        %1358 = vst [vmem:[#allocation2 + $0x8a0] sm:$0xff] %v1312
        %1359 = vst [vmem:[#allocation2 + $0x8a8] sm:$0xff] %v1304
        %1360 = vst [vmem:[#allocation2 + $0x8b0] sm:$0xff] %v1296
        %1361 = vst [vmem:[#allocation2 + $0x8b8] sm:$0xff] %v1288
        %1362 = vst [vmem:[#allocation2 + $0x8c0] sm:$0xff] %v1280
        %1363 = vst [vmem:[#allocation2 + $0x8c8] sm:$0xff] %v1320
        %1364 = vst [vmem:[#allocation2 + $0x8d0] sm:$0xff] %v1313
        %1365 = vst [vmem:[#allocation2 + $0x8d8] sm:$0xff] %v1305
        %1366 = vst [vmem:[#allocation2 + $0x8e0] sm:$0xff] %v1297
        %1367 = vst [vmem:[#allocation2 + $0x8e8] sm:$0xff] %v1289
        %1368 = vst [vmem:[#allocation2 + $0x8f0] sm:$0xff] %v1281
        %1369 = vst [vmem:[#allocation2 + $0x8f8] sm:$0xff] %v1321
        %1370 = vrot.lane.b32.xlu0 %v307, 111
        %v1371 = vpop.permute.xlu0 %1370
        %1372 = vrot.lane.b32.xlu0 %v313, 111
        %v1373 = vpop.permute.xlu0 %1372
        %1374 = vrot.lane.b32.xlu0 %v319, 111
        %v1375 = vpop.permute.xlu0 %1374
        %1376 = vrot.lane.b32.xlu0 %v325, 111
        %v1377 = vpop.permute.xlu0 %1376
        %1378 = vrot.lane.b32.xlu0 %v331, 111
        %v1379 = vpop.permute.xlu0 %1378
        %1380 = vrot.lane.b32.xlu0 %v337, 111
        %v1381 = vpop.permute.xlu0 %1380
        %1382 = vrot.lane.b32.xlu0 %v343, 111
        %v1383 = vpop.permute.xlu0 %1382
        %1384 = vrot.lane.b32.xlu0 %v349, 111
        %v1385 = vpop.permute.xlu0 %1384
        %1386 = vrot.lane.b32.xlu0 %v308, 111
        %v1387 = vpop.permute.xlu0 %1386
        %1388 = vrot.lane.b32.xlu0 %v314, 111
        %v1389 = vpop.permute.xlu0 %1388
        %1390 = vrot.lane.b32.xlu0 %v320, 111
        %v1391 = vpop.permute.xlu0 %1390
        %1392 = vrot.lane.b32.xlu0 %v326, 111
        %v1393 = vpop.permute.xlu0 %1392
        %1394 = vrot.lane.b32.xlu0 %v332, 111
        %v1395 = vpop.permute.xlu0 %1394
        %1396 = vrot.lane.b32.xlu0 %v338, 111
        %v1397 = vpop.permute.xlu0 %1396
        %1398 = vrot.lane.b32.xlu0 %v344, 111
        %v1399 = vpop.permute.xlu0 %1398
        %1400 = vrot.lane.b32.xlu0 %v350, 111
        %v1401 = vpop.permute.xlu0 %1400
        %1402 = vrot.lane.b32.xlu0 %v309, 111
        %v1403 = vpop.permute.xlu0 %1402
        %1404 = vrot.lane.b32.xlu0 %v315, 111
        %v1405 = vpop.permute.xlu0 %1404
        %1406 = vrot.lane.b32.xlu0 %v321, 111
        %v1407 = vpop.permute.xlu0 %1406
        %1408 = vrot.lane.b32.xlu0 %v327, 111
        %v1409 = vpop.permute.xlu0 %1408
        %1410 = vrot.lane.b32.xlu0 %v333, 111
        %v1411 = vpop.permute.xlu0 %1410
        %1412 = vrot.lane.b32.xlu0 %v339, 111
        %v1413 = vpop.permute.xlu0 %1412
        %1414 = vrot.lane.b32.xlu0 %v345, 111
        %v1415 = vpop.permute.xlu0 %1414
        %1416 = vrot.lane.b32.xlu0 %v351, 111
        %v1417 = vpop.permute.xlu0 %1416
        %1418 = vrot.lane.b32.xlu0 %v310, 111
        %v1419 = vpop.permute.xlu0 %1418
        %1420 = vrot.lane.b32.xlu0 %v316, 111
        %v1421 = vpop.permute.xlu0 %1420
        %1422 = vrot.lane.b32.xlu0 %v322, 111
        %v1423 = vpop.permute.xlu0 %1422
        %1424 = vrot.lane.b32.xlu0 %v328, 111
        %v1425 = vpop.permute.xlu0 %1424
        %1426 = vrot.lane.b32.xlu0 %v334, 111
        %v1427 = vpop.permute.xlu0 %1426
        %1428 = vrot.lane.b32.xlu0 %v340, 111
        %v1429 = vpop.permute.xlu0 %1428
        %1430 = vrot.lane.b32.xlu0 %v346, 111
        %v1431 = vpop.permute.xlu0 %1430
        %1432 = vrot.lane.b32.xlu0 %v352, 111
        %v1433 = vpop.permute.xlu0 %1432
        %1434 = vrot.lane.b32.xlu0 %v311, 111
        %v1435 = vpop.permute.xlu0 %1434
        %1436 = vrot.lane.b32.xlu0 %v317, 111
        %v1437 = vpop.permute.xlu0 %1436
        %1438 = vrot.lane.b32.xlu0 %v323, 111
        %v1439 = vpop.permute.xlu0 %1438
        %1440 = vrot.lane.b32.xlu0 %v329, 111
        %v1441 = vpop.permute.xlu0 %1440
        %1442 = vrot.lane.b32.xlu0 %v335, 111
        %v1443 = vpop.permute.xlu0 %1442
        %1444 = vrot.lane.b32.xlu0 %v341, 111
        %v1445 = vpop.permute.xlu0 %1444
        %1446 = vrot.lane.b32.xlu0 %v347, 111
        %v1447 = vpop.permute.xlu0 %1446
        %1448 = vrot.lane.b32.xlu0 %v353, 111
        %v1449 = vpop.permute.xlu0 %1448
        %1450 = vrot.lane.b32.xlu0 %v312, 111
        %v1451 = vpop.permute.xlu0 %1450
        %1452 = vrot.lane.b32.xlu0 %v318, 111
        %v1453 = vpop.permute.xlu0 %1452
        %1454 = vrot.lane.b32.xlu0 %v324, 111
        %v1455 = vpop.permute.xlu0 %1454
        %1456 = vrot.lane.b32.xlu0 %v330, 111
        %v1457 = vpop.permute.xlu0 %1456
        %1458 = vrot.lane.b32.xlu0 %v336, 111
        %v1459 = vpop.permute.xlu0 %1458
        %1460 = vrot.lane.b32.xlu0 %v342, 111
        %v1461 = vpop.permute.xlu0 %1460
        %1462 = vrot.lane.b32.xlu0 %v348, 111
        %v1463 = vpop.permute.xlu0 %1462
        %1464 = vrot.lane.b32.xlu0 %v354, 111
        %v1465 = vpop.permute.xlu0 %1464
        %vm1466 = vcmp.lt.s32.totalorder %v452, 111
        %v1467 = vsel %vm1466, %v1435, %v1451
        %v1468 = vsel %vm1466, %v1437, %v1453
        %v1469 = vsel %vm1466, %v1439, %v1455
        %v1470 = vsel %vm1466, %v1441, %v1457
        %v1471 = vsel %vm1466, %v1443, %v1459
        %v1472 = vsel %vm1466, %v1445, %v1461
        %v1473 = vsel %vm1466, %v1447, %v1463
        %v1474 = vsel %vm1466, %v1449, %v1465
        %v1475 = vsel %vm1466, %v1419, %v1435
        %v1476 = vsel %vm1466, %v1421, %v1437
        %v1477 = vsel %vm1466, %v1423, %v1439
        %v1478 = vsel %vm1466, %v1425, %v1441
        %v1479 = vsel %vm1466, %v1427, %v1443
        %v1480 = vsel %vm1466, %v1429, %v1445
        %v1481 = vsel %vm1466, %v1431, %v1447
        %v1482 = vsel %vm1466, %v1433, %v1449
        %v1483 = vsel %vm1466, %v1403, %v1419
        %v1484 = vsel %vm1466, %v1405, %v1421
        %v1485 = vsel %vm1466, %v1407, %v1423
        %v1486 = vsel %vm1466, %v1409, %v1425
        %v1487 = vsel %vm1466, %v1411, %v1427
        %v1488 = vsel %vm1466, %v1413, %v1429
        %v1489 = vsel %vm1466, %v1415, %v1431
        %v1490 = vsel %vm1466, %v1417, %v1433
        %v1491 = vsel %vm1466, %v1387, %v1403
        %v1492 = vsel %vm1466, %v1389, %v1405
        %v1493 = vsel %vm1466, %v1391, %v1407
        %v1494 = vsel %vm1466, %v1393, %v1409
        %v1495 = vsel %vm1466, %v1395, %v1411
        %v1496 = vsel %vm1466, %v1397, %v1413
        %v1497 = vsel %vm1466, %v1399, %v1415
        %v1498 = vsel %vm1466, %v1401, %v1417
        %v1499 = vsel %vm1466, %v1371, %v1387
        %v1500 = vsel %vm1466, %v1373, %v1389
        %v1501 = vsel %vm1466, %v1375, %v1391
        %v1502 = vsel %vm1466, %v1377, %v1393
        %v1503 = vsel %vm1466, %v1379, %v1395
        %v1504 = vsel %vm1466, %v1381, %v1397
        %v1505 = vsel %vm1466, %v1383, %v1399
        %v1506 = vsel %vm1466, %v1385, %v1401
        %v1507 = vsel %vm1466, %v1451, %v1371
        %v1508 = vsel %vm1466, %v1453, %v1373
        %v1509 = vsel %vm1466, %v1455, %v1375
        %v1510 = vsel %vm1466, %v1457, %v1377
        %v1511 = vsel %vm1466, %v1459, %v1379
        %v1512 = vsel %vm1466, %v1461, %v1381
        %v1513 = vsel %vm1466, %v1463, %v1383
        %v1514 = vsel %vm1466, %v1465, %v1385
        %1515 = vst [vmem:[#allocation2 + $0x900] sm:$0xff] %v1499
        %1516 = vst [vmem:[#allocation2 + $0x908] sm:$0xff] %v1491
        %1517 = vst [vmem:[#allocation2 + $0x910] sm:$0xff] %v1483
        %1518 = vst [vmem:[#allocation2 + $0x918] sm:$0xff] %v1475
        %1519 = vst [vmem:[#allocation2 + $0x920] sm:$0xff] %v1467
        %1520 = vst [vmem:[#allocation2 + $0x928] sm:$0xff] %v1507
        %1521 = vst [vmem:[#allocation2 + $0x930] sm:$0xff] %v1500
        %1522 = vst [vmem:[#allocation2 + $0x938] sm:$0xff] %v1492
        %1523 = vst [vmem:[#allocation2 + $0x940] sm:$0xff] %v1484
        %1524 = vst [vmem:[#allocation2 + $0x948] sm:$0xff] %v1476
        %1525 = vst [vmem:[#allocation2 + $0x950] sm:$0xff] %v1468
        %1526 = vst [vmem:[#allocation2 + $0x958] sm:$0xff] %v1508
        %1527 = vst [vmem:[#allocation2 + $0x960] sm:$0xff] %v1501
        %1528 = vst [vmem:[#allocation2 + $0x968] sm:$0xff] %v1493
        %1529 = vst [vmem:[#allocation2 + $0x970] sm:$0xff] %v1485
        %1530 = vst [vmem:[#allocation2 + $0x978] sm:$0xff] %v1477
        %1531 = vst [vmem:[#allocation2 + $0x980] sm:$0xff] %v1469
        %1532 = vst [vmem:[#allocation2 + $0x988] sm:$0xff] %v1509
        %1533 = vst [vmem:[#allocation2 + $0x990] sm:$0xff] %v1502
        %1534 = vst [vmem:[#allocation2 + $0x998] sm:$0xff] %v1494
        %1535 = vst [vmem:[#allocation2 + $0x9a0] sm:$0xff] %v1486
        %1536 = vst [vmem:[#allocation2 + $0x9a8] sm:$0xff] %v1478
        %1537 = vst [vmem:[#allocation2 + $0x9b0] sm:$0xff] %v1470
        %1538 = vst [vmem:[#allocation2 + $0x9b8] sm:$0xff] %v1510
        %1539 = vst [vmem:[#allocation2 + $0x9c0] sm:$0xff] %v1503
        %1540 = vst [vmem:[#allocation2 + $0x9c8] sm:$0xff] %v1495
        %1541 = vst [vmem:[#allocation2 + $0x9d0] sm:$0xff] %v1487
        %1542 = vst [vmem:[#allocation2 + $0x9d8] sm:$0xff] %v1479
        %1543 = vst [vmem:[#allocation2 + $0x9e0] sm:$0xff] %v1471
        %1544 = vst [vmem:[#allocation2 + $0x9e8] sm:$0xff] %v1511
        %1545 = vst [vmem:[#allocation2 + $0x9f0] sm:$0xff] %v1504
        %1546 = vst [vmem:[#allocation2 + $0x9f8] sm:$0xff] %v1496
        %1547 = vst [vmem:[#allocation2 + $0xa00] sm:$0xff] %v1488
        %1548 = vst [vmem:[#allocation2 + $0xa08] sm:$0xff] %v1480
        %1549 = vst [vmem:[#allocation2 + $0xa10] sm:$0xff] %v1472
        %1550 = vst [vmem:[#allocation2 + $0xa18] sm:$0xff] %v1512
        %1551 = vst [vmem:[#allocation2 + $0xa20] sm:$0xff] %v1505
        %1552 = vst [vmem:[#allocation2 + $0xa28] sm:$0xff] %v1497
        %1553 = vst [vmem:[#allocation2 + $0xa30] sm:$0xff] %v1489
        %1554 = vst [vmem:[#allocation2 + $0xa38] sm:$0xff] %v1481
        %1555 = vst [vmem:[#allocation2 + $0xa40] sm:$0xff] %v1473
        %1556 = vst [vmem:[#allocation2 + $0xa48] sm:$0xff] %v1513
        %1557 = vst [vmem:[#allocation2 + $0xa50] sm:$0xff] %v1506
        %1558 = vst [vmem:[#allocation2 + $0xa58] sm:$0xff] %v1498
        %1559 = vst [vmem:[#allocation2 + $0xa60] sm:$0xff] %v1490
        %1560 = vst [vmem:[#allocation2 + $0xa68] sm:$0xff] %v1482
        %1561 = vst [vmem:[#allocation2 + $0xa70] sm:$0xff] %v1474
        %1562 = vst [vmem:[#allocation2 + $0xa78] sm:$0xff] %v1514
        %1563 = vrot.lane.b32.xlu0 %v307, 110
        %v1564 = vpop.permute.xlu0 %1563
        %1565 = vrot.lane.b32.xlu0 %v313, 110
        %v1566 = vpop.permute.xlu0 %1565
        %1567 = vrot.lane.b32.xlu0 %v319, 110
        %v1568 = vpop.permute.xlu0 %1567
        %1569 = vrot.lane.b32.xlu0 %v325, 110
        %v1570 = vpop.permute.xlu0 %1569
        %1571 = vrot.lane.b32.xlu0 %v331, 110
        %v1572 = vpop.permute.xlu0 %1571
        %1573 = vrot.lane.b32.xlu0 %v337, 110
        %v1574 = vpop.permute.xlu0 %1573
        %1575 = vrot.lane.b32.xlu0 %v343, 110
        %v1576 = vpop.permute.xlu0 %1575
        %1577 = vrot.lane.b32.xlu0 %v349, 110
        %v1578 = vpop.permute.xlu0 %1577
        %1579 = vrot.lane.b32.xlu0 %v308, 110
        %v1580 = vpop.permute.xlu0 %1579
        %1581 = vrot.lane.b32.xlu0 %v314, 110
        %v1582 = vpop.permute.xlu0 %1581
        %1583 = vrot.lane.b32.xlu0 %v320, 110
        %v1584 = vpop.permute.xlu0 %1583
        %1585 = vrot.lane.b32.xlu0 %v326, 110
        %v1586 = vpop.permute.xlu0 %1585
        %1587 = vrot.lane.b32.xlu0 %v332, 110
        %v1588 = vpop.permute.xlu0 %1587
        %1589 = vrot.lane.b32.xlu0 %v338, 110
        %v1590 = vpop.permute.xlu0 %1589
        %1591 = vrot.lane.b32.xlu0 %v344, 110
        %v1592 = vpop.permute.xlu0 %1591
        %1593 = vrot.lane.b32.xlu0 %v350, 110
        %v1594 = vpop.permute.xlu0 %1593
        %1595 = vrot.lane.b32.xlu0 %v309, 110
        %v1596 = vpop.permute.xlu0 %1595
        %1597 = vrot.lane.b32.xlu0 %v315, 110
        %v1598 = vpop.permute.xlu0 %1597
        %1599 = vrot.lane.b32.xlu0 %v321, 110
        %v1600 = vpop.permute.xlu0 %1599
        %1601 = vrot.lane.b32.xlu0 %v327, 110
        %v1602 = vpop.permute.xlu0 %1601
        %1603 = vrot.lane.b32.xlu0 %v333, 110
        %v1604 = vpop.permute.xlu0 %1603
        %1605 = vrot.lane.b32.xlu0 %v339, 110
        %v1606 = vpop.permute.xlu0 %1605
        %1607 = vrot.lane.b32.xlu0 %v345, 110
        %v1608 = vpop.permute.xlu0 %1607
        %1609 = vrot.lane.b32.xlu0 %v351, 110
        %v1610 = vpop.permute.xlu0 %1609
        %1611 = vrot.lane.b32.xlu0 %v310, 110
        %v1612 = vpop.permute.xlu0 %1611
        %1613 = vrot.lane.b32.xlu0 %v316, 110
        %v1614 = vpop.permute.xlu0 %1613
        %1615 = vrot.lane.b32.xlu0 %v322, 110
        %v1616 = vpop.permute.xlu0 %1615
        %1617 = vrot.lane.b32.xlu0 %v328, 110
        %v1618 = vpop.permute.xlu0 %1617
        %1619 = vrot.lane.b32.xlu0 %v334, 110
        %v1620 = vpop.permute.xlu0 %1619
        %1621 = vrot.lane.b32.xlu0 %v340, 110
        %v1622 = vpop.permute.xlu0 %1621
        %1623 = vrot.lane.b32.xlu0 %v346, 110
        %v1624 = vpop.permute.xlu0 %1623
        %1625 = vrot.lane.b32.xlu0 %v352, 110
        %v1626 = vpop.permute.xlu0 %1625
        %1627 = vrot.lane.b32.xlu0 %v311, 110
        %v1628 = vpop.permute.xlu0 %1627
        %1629 = vrot.lane.b32.xlu0 %v317, 110
        %v1630 = vpop.permute.xlu0 %1629
        %1631 = vrot.lane.b32.xlu0 %v323, 110
        %v1632 = vpop.permute.xlu0 %1631
        %1633 = vrot.lane.b32.xlu0 %v329, 110
        %v1634 = vpop.permute.xlu0 %1633
        %1635 = vrot.lane.b32.xlu0 %v335, 110
        %v1636 = vpop.permute.xlu0 %1635
        %1637 = vrot.lane.b32.xlu0 %v341, 110
        %v1638 = vpop.permute.xlu0 %1637
        %1639 = vrot.lane.b32.xlu0 %v347, 110
        %v1640 = vpop.permute.xlu0 %1639
        %1641 = vrot.lane.b32.xlu0 %v353, 110
        %v1642 = vpop.permute.xlu0 %1641
        %1643 = vrot.lane.b32.xlu0 %v312, 110
        %v1644 = vpop.permute.xlu0 %1643
        %1645 = vrot.lane.b32.xlu0 %v318, 110
        %v1646 = vpop.permute.xlu0 %1645
        %1647 = vrot.lane.b32.xlu0 %v324, 110
        %v1648 = vpop.permute.xlu0 %1647
        %1649 = vrot.lane.b32.xlu0 %v330, 110
        %v1650 = vpop.permute.xlu0 %1649
        %1651 = vrot.lane.b32.xlu0 %v336, 110
        %v1652 = vpop.permute.xlu0 %1651
        %1653 = vrot.lane.b32.xlu0 %v342, 110
        %v1654 = vpop.permute.xlu0 %1653
        %1655 = vrot.lane.b32.xlu0 %v348, 110
        %v1656 = vpop.permute.xlu0 %1655
        %1657 = vrot.lane.b32.xlu0 %v354, 110
        %v1658 = vpop.permute.xlu0 %1657
        %vm1659 = vcmp.lt.s32.totalorder %v452, 110
        %v1660 = vsel %vm1659, %v1628, %v1644
        %v1661 = vsel %vm1659, %v1630, %v1646
        %v1662 = vsel %vm1659, %v1632, %v1648
        %v1663 = vsel %vm1659, %v1634, %v1650
        %v1664 = vsel %vm1659, %v1636, %v1652
        %v1665 = vsel %vm1659, %v1638, %v1654
        %v1666 = vsel %vm1659, %v1640, %v1656
        %v1667 = vsel %vm1659, %v1642, %v1658
        %v1668 = vsel %vm1659, %v1612, %v1628
        %v1669 = vsel %vm1659, %v1614, %v1630
        %v1670 = vsel %vm1659, %v1616, %v1632
        %v1671 = vsel %vm1659, %v1618, %v1634
        %v1672 = vsel %vm1659, %v1620, %v1636
        %v1673 = vsel %vm1659, %v1622, %v1638
        %v1674 = vsel %vm1659, %v1624, %v1640
        %v1675 = vsel %vm1659, %v1626, %v1642
        %v1676 = vsel %vm1659, %v1596, %v1612
        %v1677 = vsel %vm1659, %v1598, %v1614
        %v1678 = vsel %vm1659, %v1600, %v1616
        %v1679 = vsel %vm1659, %v1602, %v1618
        %v1680 = vsel %vm1659, %v1604, %v1620
        %v1681 = vsel %vm1659, %v1606, %v1622
        %v1682 = vsel %vm1659, %v1608, %v1624
        %v1683 = vsel %vm1659, %v1610, %v1626
        %v1684 = vsel %vm1659, %v1580, %v1596
        %v1685 = vsel %vm1659, %v1582, %v1598
        %v1686 = vsel %vm1659, %v1584, %v1600
        %v1687 = vsel %vm1659, %v1586, %v1602
        %v1688 = vsel %vm1659, %v1588, %v1604
        %v1689 = vsel %vm1659, %v1590, %v1606
        %v1690 = vsel %vm1659, %v1592, %v1608
        %v1691 = vsel %vm1659, %v1594, %v1610
        %v1692 = vsel %vm1659, %v1564, %v1580
        %v1693 = vsel %vm1659, %v1566, %v1582
        %v1694 = vsel %vm1659, %v1568, %v1584
        %v1695 = vsel %vm1659, %v1570, %v1586
        %v1696 = vsel %vm1659, %v1572, %v1588
        %v1697 = vsel %vm1659, %v1574, %v1590
        %v1698 = vsel %vm1659, %v1576, %v1592
        %v1699 = vsel %vm1659, %v1578, %v1594
        %v1700 = vsel %vm1659, %v1644, %v1564
        %v1701 = vsel %vm1659, %v1646, %v1566
        %v1702 = vsel %vm1659, %v1648, %v1568
        %v1703 = vsel %vm1659, %v1650, %v1570
        %v1704 = vsel %vm1659, %v1652, %v1572
        %v1705 = vsel %vm1659, %v1654, %v1574
        %v1706 = vsel %vm1659, %v1656, %v1576
        %v1707 = vsel %vm1659, %v1658, %v1578
        %1708 = vst [vmem:[#allocation2 + $0xa80] sm:$0xff] %v1692
        %1709 = vst [vmem:[#allocation2 + $0xa88] sm:$0xff] %v1684
        %1710 = vst [vmem:[#allocation2 + $0xa90] sm:$0xff] %v1676
        %1711 = vst [vmem:[#allocation2 + $0xa98] sm:$0xff] %v1668
        %1712 = vst [vmem:[#allocation2 + $0xaa0] sm:$0xff] %v1660
        %1713 = vst [vmem:[#allocation2 + $0xaa8] sm:$0xff] %v1700
        %1714 = vst [vmem:[#allocation2 + $0xab0] sm:$0xff] %v1693
        %1715 = vst [vmem:[#allocation2 + $0xab8] sm:$0xff] %v1685
        %1716 = vst [vmem:[#allocation2 + $0xac0] sm:$0xff] %v1677
        %1717 = vst [vmem:[#allocation2 + $0xac8] sm:$0xff] %v1669
        %1718 = vst [vmem:[#allocation2 + $0xad0] sm:$0xff] %v1661
        %1719 = vst [vmem:[#allocation2 + $0xad8] sm:$0xff] %v1701
        %1720 = vst [vmem:[#allocation2 + $0xae0] sm:$0xff] %v1694
        %1721 = vst [vmem:[#allocation2 + $0xae8] sm:$0xff] %v1686
        %1722 = vst [vmem:[#allocation2 + $0xaf0] sm:$0xff] %v1678
        %1723 = vst [vmem:[#allocation2 + $0xaf8] sm:$0xff] %v1670
        %1724 = vst [vmem:[#allocation2 + $0xb00] sm:$0xff] %v1662
        %1725 = vst [vmem:[#allocation2 + $0xb08] sm:$0xff] %v1702
        %1726 = vst [vmem:[#allocation2 + $0xb10] sm:$0xff] %v1695
        %1727 = vst [vmem:[#allocation2 + $0xb18] sm:$0xff] %v1687
        %1728 = vst [vmem:[#allocation2 + $0xb20] sm:$0xff] %v1679
        %1729 = vst [vmem:[#allocation2 + $0xb28] sm:$0xff] %v1671
        %1730 = vst [vmem:[#allocation2 + $0xb30] sm:$0xff] %v1663
        %1731 = vst [vmem:[#allocation2 + $0xb38] sm:$0xff] %v1703
        %1732 = vst [vmem:[#allocation2 + $0xb40] sm:$0xff] %v1696
        %1733 = vst [vmem:[#allocation2 + $0xb48] sm:$0xff] %v1688
        %1734 = vst [vmem:[#allocation2 + $0xb50] sm:$0xff] %v1680
        %1735 = vst [vmem:[#allocation2 + $0xb58] sm:$0xff] %v1672
        %1736 = vst [vmem:[#allocation2 + $0xb60] sm:$0xff] %v1664
        %1737 = vst [vmem:[#allocation2 + $0xb68] sm:$0xff] %v1704
        %1738 = vst [vmem:[#allocation2 + $0xb70] sm:$0xff] %v1697
        %1739 = vst [vmem:[#allocation2 + $0xb78] sm:$0xff] %v1689
        %1740 = vst [vmem:[#allocation2 + $0xb80] sm:$0xff] %v1681
        %1741 = vst [vmem:[#allocation2 + $0xb88] sm:$0xff] %v1673
        %1742 = vst [vmem:[#allocation2 + $0xb90] sm:$0xff] %v1665
        %1743 = vst [vmem:[#allocation2 + $0xb98] sm:$0xff] %v1705
        %1744 = vst [vmem:[#allocation2 + $0xba0] sm:$0xff] %v1698
        %1745 = vst [vmem:[#allocation2 + $0xba8] sm:$0xff] %v1690
        %1746 = vst [vmem:[#allocation2 + $0xbb0] sm:$0xff] %v1682
        %1747 = vst [vmem:[#allocation2 + $0xbb8] sm:$0xff] %v1674
        %1748 = vst [vmem:[#allocation2 + $0xbc0] sm:$0xff] %v1666
        %1749 = vst [vmem:[#allocation2 + $0xbc8] sm:$0xff] %v1706
        %1750 = vst [vmem:[#allocation2 + $0xbd0] sm:$0xff] %v1699
        %1751 = vst [vmem:[#allocation2 + $0xbd8] sm:$0xff] %v1691
        %1752 = vst [vmem:[#allocation2 + $0xbe0] sm:$0xff] %v1683
        %1753 = vst [vmem:[#allocation2 + $0xbe8] sm:$0xff] %v1675
        %1754 = vst [vmem:[#allocation2 + $0xbf0] sm:$0xff] %v1667
        %1755 = vst [vmem:[#allocation2 + $0xbf8] sm:$0xff] %v1707
        %1756 = vrot.lane.b32.xlu0 %v307, 109
        %v1757 = vpop.permute.xlu0 %1756
        %1758 = vrot.lane.b32.xlu0 %v313, 109
        %v1759 = vpop.permute.xlu0 %1758
        %1760 = vrot.lane.b32.xlu0 %v319, 109
        %v1761 = vpop.permute.xlu0 %1760
        %1762 = vrot.lane.b32.xlu0 %v325, 109
        %v1763 = vpop.permute.xlu0 %1762
        %1764 = vrot.lane.b32.xlu0 %v331, 109
        %v1765 = vpop.permute.xlu0 %1764
        %1766 = vrot.lane.b32.xlu0 %v337, 109
        %v1767 = vpop.permute.xlu0 %1766
        %1768 = vrot.lane.b32.xlu0 %v343, 109
        %v1769 = vpop.permute.xlu0 %1768
        %1770 = vrot.lane.b32.xlu0 %v349, 109
        %v1771 = vpop.permute.xlu0 %1770
        %1772 = vrot.lane.b32.xlu0 %v308, 109
        %v1773 = vpop.permute.xlu0 %1772
        %1774 = vrot.lane.b32.xlu0 %v314, 109
        %v1775 = vpop.permute.xlu0 %1774
        %1776 = vrot.lane.b32.xlu0 %v320, 109
        %v1777 = vpop.permute.xlu0 %1776
        %1778 = vrot.lane.b32.xlu0 %v326, 109
        %v1779 = vpop.permute.xlu0 %1778
        %1780 = vrot.lane.b32.xlu0 %v332, 109
        %v1781 = vpop.permute.xlu0 %1780
        %1782 = vrot.lane.b32.xlu0 %v338, 109
        %v1783 = vpop.permute.xlu0 %1782
        %1784 = vrot.lane.b32.xlu0 %v344, 109
        %v1785 = vpop.permute.xlu0 %1784
        %1786 = vrot.lane.b32.xlu0 %v350, 109
        %v1787 = vpop.permute.xlu0 %1786
        %1788 = vrot.lane.b32.xlu0 %v309, 109
        %v1789 = vpop.permute.xlu0 %1788
        %1790 = vrot.lane.b32.xlu0 %v315, 109
        %v1791 = vpop.permute.xlu0 %1790
        %1792 = vrot.lane.b32.xlu0 %v321, 109
        %v1793 = vpop.permute.xlu0 %1792
        %1794 = vrot.lane.b32.xlu0 %v327, 109
        %v1795 = vpop.permute.xlu0 %1794
        %1796 = vrot.lane.b32.xlu0 %v333, 109
        %v1797 = vpop.permute.xlu0 %1796
        %1798 = vrot.lane.b32.xlu0 %v339, 109
        %v1799 = vpop.permute.xlu0 %1798
        %1800 = vrot.lane.b32.xlu0 %v345, 109
        %v1801 = vpop.permute.xlu0 %1800
        %1802 = vrot.lane.b32.xlu0 %v351, 109
        %v1803 = vpop.permute.xlu0 %1802
        %1804 = vrot.lane.b32.xlu0 %v310, 109
        %v1805 = vpop.permute.xlu0 %1804
        %1806 = vrot.lane.b32.xlu0 %v316, 109
        %v1807 = vpop.permute.xlu0 %1806
        %1808 = vrot.lane.b32.xlu0 %v322, 109
        %v1809 = vpop.permute.xlu0 %1808
        %1810 = vrot.lane.b32.xlu0 %v328, 109
        %v1811 = vpop.permute.xlu0 %1810
        %1812 = vrot.lane.b32.xlu0 %v334, 109
        %v1813 = vpop.permute.xlu0 %1812
        %1814 = vrot.lane.b32.xlu0 %v340, 109
        %v1815 = vpop.permute.xlu0 %1814
        %1816 = vrot.lane.b32.xlu0 %v346, 109
        %v1817 = vpop.permute.xlu0 %1816
        %1818 = vrot.lane.b32.xlu0 %v352, 109
        %v1819 = vpop.permute.xlu0 %1818
        %1820 = vrot.lane.b32.xlu0 %v311, 109
        %v1821 = vpop.permute.xlu0 %1820
        %1822 = vrot.lane.b32.xlu0 %v317, 109
        %v1823 = vpop.permute.xlu0 %1822
        %1824 = vrot.lane.b32.xlu0 %v323, 109
        %v1825 = vpop.permute.xlu0 %1824
        %1826 = vrot.lane.b32.xlu0 %v329, 109
        %v1827 = vpop.permute.xlu0 %1826
        %1828 = vrot.lane.b32.xlu0 %v335, 109
        %v1829 = vpop.permute.xlu0 %1828
        %1830 = vrot.lane.b32.xlu0 %v341, 109
        %v1831 = vpop.permute.xlu0 %1830
        %1832 = vrot.lane.b32.xlu0 %v347, 109
        %v1833 = vpop.permute.xlu0 %1832
        %1834 = vrot.lane.b32.xlu0 %v353, 109
        %v1835 = vpop.permute.xlu0 %1834
        %1836 = vrot.lane.b32.xlu0 %v312, 109
        %v1837 = vpop.permute.xlu0 %1836
        %1838 = vrot.lane.b32.xlu0 %v318, 109
        %v1839 = vpop.permute.xlu0 %1838
        %1840 = vrot.lane.b32.xlu0 %v324, 109
        %v1841 = vpop.permute.xlu0 %1840
        %1842 = vrot.lane.b32.xlu0 %v330, 109
        %v1843 = vpop.permute.xlu0 %1842
        %1844 = vrot.lane.b32.xlu0 %v336, 109
        %v1845 = vpop.permute.xlu0 %1844
        %1846 = vrot.lane.b32.xlu0 %v342, 109
        %v1847 = vpop.permute.xlu0 %1846
        %1848 = vrot.lane.b32.xlu0 %v348, 109
        %v1849 = vpop.permute.xlu0 %1848
        %1850 = vrot.lane.b32.xlu0 %v354, 109
        %v1851 = vpop.permute.xlu0 %1850
        %vm1852 = vcmp.lt.s32.totalorder %v452, 109
        %v1853 = vsel %vm1852, %v1821, %v1837
        %v1854 = vsel %vm1852, %v1823, %v1839
        %v1855 = vsel %vm1852, %v1825, %v1841
        %v1856 = vsel %vm1852, %v1827, %v1843
        %v1857 = vsel %vm1852, %v1829, %v1845
        %v1858 = vsel %vm1852, %v1831, %v1847
        %v1859 = vsel %vm1852, %v1833, %v1849
        %v1860 = vsel %vm1852, %v1835, %v1851
        %v1861 = vsel %vm1852, %v1805, %v1821
        %v1862 = vsel %vm1852, %v1807, %v1823
        %v1863 = vsel %vm1852, %v1809, %v1825
        %v1864 = vsel %vm1852, %v1811, %v1827
        %v1865 = vsel %vm1852, %v1813, %v1829
        %v1866 = vsel %vm1852, %v1815, %v1831
        %v1867 = vsel %vm1852, %v1817, %v1833
        %v1868 = vsel %vm1852, %v1819, %v1835
        %v1869 = vsel %vm1852, %v1789, %v1805
        %v1870 = vsel %vm1852, %v1791, %v1807
        %v1871 = vsel %vm1852, %v1793, %v1809
        %v1872 = vsel %vm1852, %v1795, %v1811
        %v1873 = vsel %vm1852, %v1797, %v1813
        %v1874 = vsel %vm1852, %v1799, %v1815
        %v1875 = vsel %vm1852, %v1801, %v1817
        %v1876 = vsel %vm1852, %v1803, %v1819
        %v1877 = vsel %vm1852, %v1773, %v1789
        %v1878 = vsel %vm1852, %v1775, %v1791
        %v1879 = vsel %vm1852, %v1777, %v1793
        %v1880 = vsel %vm1852, %v1779, %v1795
        %v1881 = vsel %vm1852, %v1781, %v1797
        %v1882 = vsel %vm1852, %v1783, %v1799
        %v1883 = vsel %vm1852, %v1785, %v1801
        %v1884 = vsel %vm1852, %v1787, %v1803
        %v1885 = vsel %vm1852, %v1757, %v1773
        %v1886 = vsel %vm1852, %v1759, %v1775
        %v1887 = vsel %vm1852, %v1761, %v1777
        %v1888 = vsel %vm1852, %v1763, %v1779
        %v1889 = vsel %vm1852, %v1765, %v1781
        %v1890 = vsel %vm1852, %v1767, %v1783
        %v1891 = vsel %vm1852, %v1769, %v1785
        %v1892 = vsel %vm1852, %v1771, %v1787
        %v1893 = vsel %vm1852, %v1837, %v1757
        %v1894 = vsel %vm1852, %v1839, %v1759
        %v1895 = vsel %vm1852, %v1841, %v1761
        %v1896 = vsel %vm1852, %v1843, %v1763
        %v1897 = vsel %vm1852, %v1845, %v1765
        %v1898 = vsel %vm1852, %v1847, %v1767
        %v1899 = vsel %vm1852, %v1849, %v1769
        %v1900 = vsel %vm1852, %v1851, %v1771
        %1901 = vst [vmem:[#allocation2 + $0xc00] sm:$0xff] %v1885
        %1902 = vst [vmem:[#allocation2 + $0xc08] sm:$0xff] %v1877
        %1903 = vst [vmem:[#allocation2 + $0xc10] sm:$0xff] %v1869
        %1904 = vst [vmem:[#allocation2 + $0xc18] sm:$0xff] %v1861
        %1905 = vst [vmem:[#allocation2 + $0xc20] sm:$0xff] %v1853
        %1906 = vst [vmem:[#allocation2 + $0xc28] sm:$0xff] %v1893
        %1907 = vst [vmem:[#allocation2 + $0xc30] sm:$0xff] %v1886
        %1908 = vst [vmem:[#allocation2 + $0xc38] sm:$0xff] %v1878
        %1909 = vst [vmem:[#allocation2 + $0xc40] sm:$0xff] %v1870
        %1910 = vst [vmem:[#allocation2 + $0xc48] sm:$0xff] %v1862
        %1911 = vst [vmem:[#allocation2 + $0xc50] sm:$0xff] %v1854
        %1912 = vst [vmem:[#allocation2 + $0xc58] sm:$0xff] %v1894
        %1913 = vst [vmem:[#allocation2 + $0xc60] sm:$0xff] %v1887
        %1914 = vst [vmem:[#allocation2 + $0xc68] sm:$0xff] %v1879
        %1915 = vst [vmem:[#allocation2 + $0xc70] sm:$0xff] %v1871
        %1916 = vst [vmem:[#allocation2 + $0xc78] sm:$0xff] %v1863
        %1917 = vst [vmem:[#allocation2 + $0xc80] sm:$0xff] %v1855
        %1918 = vst [vmem:[#allocation2 + $0xc88] sm:$0xff] %v1895
        %1919 = vst [vmem:[#allocation2 + $0xc90] sm:$0xff] %v1888
        %1920 = vst [vmem:[#allocation2 + $0xc98] sm:$0xff] %v1880
        %1921 = vst [vmem:[#allocation2 + $0xca0] sm:$0xff] %v1872
        %1922 = vst [vmem:[#allocation2 + $0xca8] sm:$0xff] %v1864
        %1923 = vst [vmem:[#allocation2 + $0xcb0] sm:$0xff] %v1856
        %1924 = vst [vmem:[#allocation2 + $0xcb8] sm:$0xff] %v1896
        %1925 = vst [vmem:[#allocation2 + $0xcc0] sm:$0xff] %v1889
        %1926 = vst [vmem:[#allocation2 + $0xcc8] sm:$0xff] %v1881
        %1927 = vst [vmem:[#allocation2 + $0xcd0] sm:$0xff] %v1873
        %1928 = vst [vmem:[#allocation2 + $0xcd8] sm:$0xff] %v1865
        %1929 = vst [vmem:[#allocation2 + $0xce0] sm:$0xff] %v1857
        %1930 = vst [vmem:[#allocation2 + $0xce8] sm:$0xff] %v1897
        %1931 = vst [vmem:[#allocation2 + $0xcf0] sm:$0xff] %v1890
        %1932 = vst [vmem:[#allocation2 + $0xcf8] sm:$0xff] %v1882
        %1933 = vst [vmem:[#allocation2 + $0xd00] sm:$0xff] %v1874
        %1934 = vst [vmem:[#allocation2 + $0xd08] sm:$0xff] %v1866
        %1935 = vst [vmem:[#allocation2 + $0xd10] sm:$0xff] %v1858
        %1936 = vst [vmem:[#allocation2 + $0xd18] sm:$0xff] %v1898
        %1937 = vst [vmem:[#allocation2 + $0xd20] sm:$0xff] %v1891
        %1938 = vst [vmem:[#allocation2 + $0xd28] sm:$0xff] %v1883
        %1939 = vst [vmem:[#allocation2 + $0xd30] sm:$0xff] %v1875
        %1940 = vst [vmem:[#allocation2 + $0xd38] sm:$0xff] %v1867
        %1941 = vst [vmem:[#allocation2 + $0xd40] sm:$0xff] %v1859
        %1942 = vst [vmem:[#allocation2 + $0xd48] sm:$0xff] %v1899
        %1943 = vst [vmem:[#allocation2 + $0xd50] sm:$0xff] %v1892
        %1944 = vst [vmem:[#allocation2 + $0xd58] sm:$0xff] %v1884
        %1945 = vst [vmem:[#allocation2 + $0xd60] sm:$0xff] %v1876
        %1946 = vst [vmem:[#allocation2 + $0xd68] sm:$0xff] %v1868
        %1947 = vst [vmem:[#allocation2 + $0xd70] sm:$0xff] %v1860
        %1948 = vst [vmem:[#allocation2 + $0xd78] sm:$0xff] %v1900
        %v1949 = vld [vmem:[%s197] sm:$0xff]
        %v1950 = vld [vmem:[%s197 + $0x8] sm:$0xff]
        %v1951 = vld [vmem:[%s197 + $0x10] sm:$0xff]
        %v1952 = vld [vmem:[%s197 + $0x18] sm:$0xff]
        %v1953 = vld [vmem:[%s197 + $0x20] sm:$0xff]
        %v1954 = vld [vmem:[%s197 + $0x28] sm:$0xff]
        %v1955 = vld [vmem:[%s197 + $0x30] sm:$0xff]
        %v1956 = vld [vmem:[%s197 + $0x38] sm:$0xff]
        %v1957 = vld [vmem:[%s197 + $0x40] sm:$0xff]
        %v1958 = vld [vmem:[%s197 + $0x48] sm:$0xff]
        %v1959 = vld [vmem:[%s197 + $0x50] sm:$0xff]
        %v1960 = vld [vmem:[%s197 + $0x58] sm:$0xff]
        %v1961 = vld [vmem:[%s197 + $0x60] sm:$0xff]
        %v1962 = vld [vmem:[%s197 + $0x68] sm:$0xff]
        %v1963 = vld [vmem:[%s197 + $0x70] sm:$0xff]
        %v1964 = vld [vmem:[%s197 + $0x78] sm:$0xff]
        %v1965 = vld [vmem:[%s197 + $0x80] sm:$0xff]
        %v1966 = vld [vmem:[%s197 + $0x88] sm:$0xff]
        %v1967 = vld [vmem:[%s197 + $0x90] sm:$0xff]
        %v1968 = vld [vmem:[%s197 + $0x98] sm:$0xff]
        %v1969 = vld [vmem:[%s197 + $0xa0] sm:$0xff]
        %v1970 = vld [vmem:[%s197 + $0xa8] sm:$0xff]
        %v1971 = vld [vmem:[%s197 + $0xb0] sm:$0xff]
        %v1972 = vld [vmem:[%s197 + $0xb8] sm:$0xff]
        %v1973 = vld [vmem:[%s197 + $0xc0] sm:$0xff]
        %v1974 = vld [vmem:[%s197 + $0xc8] sm:$0xff]
        %v1975 = vld [vmem:[%s197 + $0xd0] sm:$0xff]
        %v1976 = vld [vmem:[%s197 + $0xd8] sm:$0xff]
        %v1977 = vld [vmem:[%s197 + $0xe0] sm:$0xff]
        %v1978 = vld [vmem:[%s197 + $0xe8] sm:$0xff]
        %v1979 = vld [vmem:[%s197 + $0xf0] sm:$0xff]
        %v1980 = vld [vmem:[%s197 + $0xf8] sm:$0xff]
        %v1981 = vld [vmem:[%s197 + $0x100] sm:$0xff]
        %v1982 = vld [vmem:[%s197 + $0x108] sm:$0xff]
        %v1983 = vld [vmem:[%s197 + $0x110] sm:$0xff]
        %v1984 = vld [vmem:[%s197 + $0x118] sm:$0xff]
        %v1985 = vld [vmem:[%s197 + $0x120] sm:$0xff]
        %v1986 = vld [vmem:[%s197 + $0x128] sm:$0xff]
        %v1987 = vld [vmem:[%s197 + $0x130] sm:$0xff]
        %v1988 = vld [vmem:[%s197 + $0x138] sm:$0xff]
        %v1989 = vld [vmem:[#allocation2] sm:$0xff]
        %v1990 = vld [vmem:[#allocation2 + $0x8] sm:$0xff]
        %v1991 = vld [vmem:[#allocation2 + $0x10] sm:$0xff]
        %v1992 = vld [vmem:[#allocation2 + $0x18] sm:$0xff]
        %v1993 = vld [vmem:[#allocation2 + $0x20] sm:$0xff]
        %v1994 = vld [vmem:[#allocation2 + $0x28] sm:$0xff]
        %v1995 = vld [vmem:[#allocation2 + $0x30] sm:$0xff]
        %v1996 = vld [vmem:[#allocation2 + $0x38] sm:$0xff]
        %v1997 = vld [vmem:[#allocation2 + $0x40] sm:$0xff]
        %v1998 = vld [vmem:[#allocation2 + $0x48] sm:$0xff]
        %v1999 = vld [vmem:[#allocation2 + $0x50] sm:$0xff]
        %v2000 = vld [vmem:[#allocation2 + $0x58] sm:$0xff]
        %v2001 = vld [vmem:[#allocation2 + $0x60] sm:$0xff]
        %v2002 = vld [vmem:[#allocation2 + $0x68] sm:$0xff]
        %v2003 = vld [vmem:[#allocation2 + $0x70] sm:$0xff]
        %v2004 = vld [vmem:[#allocation2 + $0x78] sm:$0xff]
        %v2005 = vld [vmem:[#allocation2 + $0x80] sm:$0xff]
        %v2006 = vld [vmem:[#allocation2 + $0x88] sm:$0xff]
        %v2007 = vld [vmem:[#allocation2 + $0x90] sm:$0xff]
        %v2008 = vld [vmem:[#allocation2 + $0x98] sm:$0xff]
        %v2009 = vld [vmem:[#allocation2 + $0xa0] sm:$0xff]
        %v2010 = vld [vmem:[#allocation2 + $0xa8] sm:$0xff]
        %v2011 = vld [vmem:[#allocation2 + $0xb0] sm:$0xff]
        %v2012 = vld [vmem:[#allocation2 + $0xb8] sm:$0xff]
        %v2013 = vld [vmem:[#allocation2 + $0xc0] sm:$0xff]
        %v2014 = vld [vmem:[#allocation2 + $0xc8] sm:$0xff]
        %v2015 = vld [vmem:[#allocation2 + $0xd0] sm:$0xff]
        %v2016 = vld [vmem:[#allocation2 + $0xd8] sm:$0xff]
        %v2017 = vld [vmem:[#allocation2 + $0xe0] sm:$0xff]
        %v2018 = vld [vmem:[#allocation2 + $0xe8] sm:$0xff]
        %v2019 = vld [vmem:[#allocation2 + $0xf0] sm:$0xff]
        %v2020 = vld [vmem:[#allocation2 + $0xf8] sm:$0xff]
        %v2021 = vld [vmem:[#allocation2 + $0x100] sm:$0xff]
        %v2022 = vld [vmem:[#allocation2 + $0x108] sm:$0xff]
        %v2023 = vld [vmem:[#allocation2 + $0x110] sm:$0xff]
        %v2024 = vld [vmem:[#allocation2 + $0x118] sm:$0xff]
        %v2025 = vld [vmem:[#allocation2 + $0x120] sm:$0xff]
        %v2026 = vld [vmem:[#allocation2 + $0x128] sm:$0xff]
        %v2027 = vld [vmem:[#allocation2 + $0x130] sm:$0xff]
        %v2028 = vld [vmem:[#allocation2 + $0x138] sm:$0xff]
        %v2029 = vld [vmem:[#allocation2 + $0x140] sm:$0xff]
        %v2030 = vld [vmem:[#allocation2 + $0x148] sm:$0xff]
        %v2031 = vld [vmem:[#allocation2 + $0x150] sm:$0xff]
        %v2032 = vld [vmem:[#allocation2 + $0x158] sm:$0xff]
        %v2033 = vld [vmem:[#allocation2 + $0x160] sm:$0xff]
        %v2034 = vld [vmem:[#allocation2 + $0x168] sm:$0xff]
        %v2035 = vld [vmem:[#allocation2 + $0x170] sm:$0xff]
        %v2036 = vld [vmem:[#allocation2 + $0x178] sm:$0xff]
        %v2037 = vld [vmem:[#allocation2 + $0x180] sm:$0xff]
        %v2038 = vld [vmem:[#allocation2 + $0x188] sm:$0xff]
        %v2039 = vld [vmem:[#allocation2 + $0x190] sm:$0xff]
        %v2040 = vld [vmem:[#allocation2 + $0x198] sm:$0xff]
        %v2041 = vld [vmem:[#allocation2 + $0x1a0] sm:$0xff]
        %v2042 = vld [vmem:[#allocation2 + $0x1a8] sm:$0xff]
        %v2043 = vld [vmem:[#allocation2 + $0x1b0] sm:$0xff]
        %v2044 = vld [vmem:[#allocation2 + $0x1b8] sm:$0xff]
        %v2045 = vld [vmem:[#allocation2 + $0x1c0] sm:$0xff]
        %v2046 = vld [vmem:[#allocation2 + $0x1c8] sm:$0xff]
        %v2047 = vld [vmem:[#allocation2 + $0x1d0] sm:$0xff]
        %v2048 = vld [vmem:[#allocation2 + $0x1d8] sm:$0xff]
        %v2049 = vld [vmem:[#allocation2 + $0x1e0] sm:$0xff]
        %v2050 = vld [vmem:[#allocation2 + $0x1e8] sm:$0xff]
        %v2051 = vld [vmem:[#allocation2 + $0x1f0] sm:$0xff]
        %v2052 = vld [vmem:[#allocation2 + $0x1f8] sm:$0xff]
        %v2053 = vld [vmem:[#allocation2 + $0x200] sm:$0xff]
        %v2054 = vld [vmem:[#allocation2 + $0x208] sm:$0xff]
        %v2055 = vld [vmem:[#allocation2 + $0x210] sm:$0xff]
        %v2056 = vld [vmem:[#allocation2 + $0x218] sm:$0xff]
        %v2057 = vld [vmem:[#allocation2 + $0x220] sm:$0xff]
        %v2058 = vld [vmem:[#allocation2 + $0x228] sm:$0xff]
        %v2059 = vld [vmem:[#allocation2 + $0x230] sm:$0xff]
        %v2060 = vld [vmem:[#allocation2 + $0x238] sm:$0xff]
        %v2061 = vld [vmem:[#allocation2 + $0x240] sm:$0xff]
        %v2062 = vld [vmem:[#allocation2 + $0x248] sm:$0xff]
        %v2063 = vld [vmem:[#allocation2 + $0x250] sm:$0xff]
        %v2064 = vld [vmem:[#allocation2 + $0x258] sm:$0xff]
        %v2065 = vld [vmem:[#allocation2 + $0x260] sm:$0xff]
        %v2066 = vld [vmem:[#allocation2 + $0x268] sm:$0xff]
        %v2067 = vld [vmem:[#allocation2 + $0x270] sm:$0xff]
        %v2068 = vld [vmem:[#allocation2 + $0x278] sm:$0xff]
        %v2069 = vld [vmem:[#allocation2 + $0x280] sm:$0xff]
        %v2070 = vld [vmem:[#allocation2 + $0x288] sm:$0xff]
        %v2071 = vld [vmem:[#allocation2 + $0x290] sm:$0xff]
        %v2072 = vld [vmem:[#allocation2 + $0x298] sm:$0xff]
        %v2073 = vld [vmem:[#allocation2 + $0x2a0] sm:$0xff]
        %v2074 = vld [vmem:[#allocation2 + $0x2a8] sm:$0xff]
        %v2075 = vld [vmem:[#allocation2 + $0x2b0] sm:$0xff]
        %v2076 = vld [vmem:[#allocation2 + $0x2b8] sm:$0xff]
        %v2077 = vld [vmem:[#allocation2 + $0x2c0] sm:$0xff]
        %v2078 = vld [vmem:[#allocation2 + $0x2c8] sm:$0xff]
        %v2079 = vld [vmem:[#allocation2 + $0x2d0] sm:$0xff]
        %v2080 = vld [vmem:[#allocation2 + $0x2d8] sm:$0xff]
        %v2081 = vld [vmem:[#allocation2 + $0x2e0] sm:$0xff]
        %v2082 = vld [vmem:[#allocation2 + $0x2e8] sm:$0xff]
        %v2083 = vld [vmem:[#allocation2 + $0x2f0] sm:$0xff]
        %v2084 = vld [vmem:[#allocation2 + $0x2f8] sm:$0xff]
        %v2085 = vld [vmem:[#allocation2 + $0x300] sm:$0xff]
        %v2086 = vld [vmem:[#allocation2 + $0x308] sm:$0xff]
        %v2087 = vld [vmem:[#allocation2 + $0x310] sm:$0xff]
        %v2088 = vld [vmem:[#allocation2 + $0x318] sm:$0xff]
        %v2089 = vld [vmem:[#allocation2 + $0x320] sm:$0xff]
        %v2090 = vld [vmem:[#allocation2 + $0x328] sm:$0xff]
        %v2091 = vld [vmem:[#allocation2 + $0x330] sm:$0xff]
        %v2092 = vld [vmem:[#allocation2 + $0x338] sm:$0xff]
        %v2093 = vld [vmem:[#allocation2 + $0x340] sm:$0xff]
        %v2094 = vld [vmem:[#allocation2 + $0x348] sm:$0xff]
        %v2095 = vld [vmem:[#allocation2 + $0x350] sm:$0xff]
        %v2096 = vld [vmem:[#allocation2 + $0x358] sm:$0xff]
        %v2097 = vld [vmem:[#allocation2 + $0x360] sm:$0xff]
        %v2098 = vld [vmem:[#allocation2 + $0x368] sm:$0xff]
        %v2099 = vld [vmem:[#allocation2 + $0x370] sm:$0xff]
        %v2100 = vld [vmem:[#allocation2 + $0x378] sm:$0xff]
        %v2101 = vld [vmem:[#allocation2 + $0x380] sm:$0xff]
        %v2102 = vld [vmem:[#allocation2 + $0x388] sm:$0xff]
        %v2103 = vld [vmem:[#allocation2 + $0x390] sm:$0xff]
        %v2104 = vld [vmem:[#allocation2 + $0x398] sm:$0xff]
        %v2105 = vld [vmem:[#allocation2 + $0x3a0] sm:$0xff]
        %v2106 = vld [vmem:[#allocation2 + $0x3a8] sm:$0xff]
        %v2107 = vld [vmem:[#allocation2 + $0x3b0] sm:$0xff]
        %v2108 = vld [vmem:[#allocation2 + $0x3b8] sm:$0xff]
        %v2109 = vld [vmem:[#allocation2 + $0x3c0] sm:$0xff]
        %v2110 = vld [vmem:[#allocation2 + $0x3c8] sm:$0xff]
        %v2111 = vld [vmem:[#allocation2 + $0x3d0] sm:$0xff]
        %v2112 = vld [vmem:[#allocation2 + $0x3d8] sm:$0xff]
        %v2113 = vld [vmem:[#allocation2 + $0x3e0] sm:$0xff]
        %v2114 = vld [vmem:[#allocation2 + $0x3e8] sm:$0xff]
        %v2115 = vld [vmem:[#allocation2 + $0x3f0] sm:$0xff]
        %v2116 = vld [vmem:[#allocation2 + $0x3f8] sm:$0xff]
        %v2117 = vld [vmem:[#allocation2 + $0x400] sm:$0xff]
        %v2118 = vld [vmem:[#allocation2 + $0x408] sm:$0xff]
        %v2119 = vld [vmem:[#allocation2 + $0x410] sm:$0xff]
        %v2120 = vld [vmem:[#allocation2 + $0x418] sm:$0xff]
        %v2121 = vld [vmem:[#allocation2 + $0x420] sm:$0xff]
        %v2122 = vld [vmem:[#allocation2 + $0x428] sm:$0xff]
        %v2123 = vld [vmem:[#allocation2 + $0x430] sm:$0xff]
        %v2124 = vld [vmem:[#allocation2 + $0x438] sm:$0xff]
        %v2125 = vld [vmem:[#allocation2 + $0x440] sm:$0xff]
        %v2126 = vld [vmem:[#allocation2 + $0x448] sm:$0xff]
        %v2127 = vld [vmem:[#allocation2 + $0x450] sm:$0xff]
        %v2128 = vld [vmem:[#allocation2 + $0x458] sm:$0xff]
        %v2129 = vld [vmem:[#allocation2 + $0x460] sm:$0xff]
        %v2130 = vld [vmem:[#allocation2 + $0x468] sm:$0xff]
        %v2131 = vld [vmem:[#allocation2 + $0x470] sm:$0xff]
        %v2132 = vld [vmem:[#allocation2 + $0x478] sm:$0xff]
        %v2133 = vld [vmem:[#allocation2 + $0x480] sm:$0xff]
        %v2134 = vld [vmem:[#allocation2 + $0x488] sm:$0xff]
        %v2135 = vld [vmem:[#allocation2 + $0x490] sm:$0xff]
        %v2136 = vld [vmem:[#allocation2 + $0x498] sm:$0xff]
        %v2137 = vld [vmem:[#allocation2 + $0x4a0] sm:$0xff]
        %v2138 = vld [vmem:[#allocation2 + $0x4a8] sm:$0xff]
        %v2139 = vld [vmem:[#allocation2 + $0x4b0] sm:$0xff]
        %v2140 = vld [vmem:[#allocation2 + $0x4b8] sm:$0xff]
        %v2141 = vld [vmem:[#allocation2 + $0x4c0] sm:$0xff]
        %v2142 = vld [vmem:[#allocation2 + $0x4c8] sm:$0xff]
        %v2143 = vld [vmem:[#allocation2 + $0x4d0] sm:$0xff]
        %v2144 = vld [vmem:[#allocation2 + $0x4d8] sm:$0xff]
        %v2145 = vld [vmem:[#allocation2 + $0x4e0] sm:$0xff]
        %v2146 = vld [vmem:[#allocation2 + $0x4e8] sm:$0xff]
        %v2147 = vld [vmem:[#allocation2 + $0x4f0] sm:$0xff]
        %v2148 = vld [vmem:[#allocation2 + $0x4f8] sm:$0xff]
        %v2149 = vld [vmem:[#allocation2 + $0x500] sm:$0xff]
        %v2150 = vld [vmem:[#allocation2 + $0x508] sm:$0xff]
        %v2151 = vld [vmem:[#allocation2 + $0x510] sm:$0xff]
        %v2152 = vld [vmem:[#allocation2 + $0x518] sm:$0xff]
        %v2153 = vld [vmem:[#allocation2 + $0x520] sm:$0xff]
        %v2154 = vld [vmem:[#allocation2 + $0x528] sm:$0xff]
        %v2155 = vld [vmem:[#allocation2 + $0x530] sm:$0xff]
        %v2156 = vld [vmem:[#allocation2 + $0x538] sm:$0xff]
        %v2157 = vld [vmem:[#allocation2 + $0x540] sm:$0xff]
        %v2158 = vld [vmem:[#allocation2 + $0x548] sm:$0xff]
        %v2159 = vld [vmem:[#allocation2 + $0x550] sm:$0xff]
        %v2160 = vld [vmem:[#allocation2 + $0x558] sm:$0xff]
        %v2161 = vld [vmem:[#allocation2 + $0x560] sm:$0xff]
        %v2162 = vld [vmem:[#allocation2 + $0x568] sm:$0xff]
        %v2163 = vld [vmem:[#allocation2 + $0x570] sm:$0xff]
        %v2164 = vld [vmem:[#allocation2 + $0x578] sm:$0xff]
        %v2165 = vld [vmem:[#allocation2 + $0x580] sm:$0xff]
        %v2166 = vld [vmem:[#allocation2 + $0x588] sm:$0xff]
        %v2167 = vld [vmem:[#allocation2 + $0x590] sm:$0xff]
        %v2168 = vld [vmem:[#allocation2 + $0x598] sm:$0xff]
        %v2169 = vld [vmem:[#allocation2 + $0x5a0] sm:$0xff]
        %v2170 = vld [vmem:[#allocation2 + $0x5a8] sm:$0xff]
        %v2171 = vld [vmem:[#allocation2 + $0x5b0] sm:$0xff]
        %v2172 = vld [vmem:[#allocation2 + $0x5b8] sm:$0xff]
        %v2173 = vld [vmem:[#allocation2 + $0x5c0] sm:$0xff]
        %v2174 = vld [vmem:[#allocation2 + $0x5c8] sm:$0xff]
        %v2175 = vld [vmem:[#allocation2 + $0x5d0] sm:$0xff]
        %v2176 = vld [vmem:[#allocation2 + $0x5d8] sm:$0xff]
        %v2177 = vld [vmem:[#allocation2 + $0x5e0] sm:$0xff]
        %v2178 = vld [vmem:[#allocation2 + $0x5e8] sm:$0xff]
        %v2179 = vld [vmem:[#allocation2 + $0x5f0] sm:$0xff]
        %v2180 = vld [vmem:[#allocation2 + $0x5f8] sm:$0xff]
        %v2181 = vld [vmem:[#allocation2 + $0x600] sm:$0xff]
        %v2182 = vld [vmem:[#allocation2 + $0x608] sm:$0xff]
        %v2183 = vld [vmem:[#allocation2 + $0x610] sm:$0xff]
        %v2184 = vld [vmem:[#allocation2 + $0x618] sm:$0xff]
        %v2185 = vld [vmem:[#allocation2 + $0x620] sm:$0xff]
        %v2186 = vld [vmem:[#allocation2 + $0x628] sm:$0xff]
        %v2187 = vld [vmem:[#allocation2 + $0x630] sm:$0xff]
        %v2188 = vld [vmem:[#allocation2 + $0x638] sm:$0xff]
        %v2189 = vld [vmem:[#allocation2 + $0x640] sm:$0xff]
        %v2190 = vld [vmem:[#allocation2 + $0x648] sm:$0xff]
        %v2191 = vld [vmem:[#allocation2 + $0x650] sm:$0xff]
        %v2192 = vld [vmem:[#allocation2 + $0x658] sm:$0xff]
        %v2193 = vld [vmem:[#allocation2 + $0x660] sm:$0xff]
        %v2194 = vld [vmem:[#allocation2 + $0x668] sm:$0xff]
        %v2195 = vld [vmem:[#allocation2 + $0x670] sm:$0xff]
        %v2196 = vld [vmem:[#allocation2 + $0x678] sm:$0xff]
        %v2197 = vld [vmem:[#allocation2 + $0x680] sm:$0xff]
        %v2198 = vld [vmem:[#allocation2 + $0x688] sm:$0xff]
        %v2199 = vld [vmem:[#allocation2 + $0x690] sm:$0xff]
        %v2200 = vld [vmem:[#allocation2 + $0x698] sm:$0xff]
        %v2201 = vld [vmem:[#allocation2 + $0x6a0] sm:$0xff]
        %v2202 = vld [vmem:[#allocation2 + $0x6a8] sm:$0xff]
        %v2203 = vld [vmem:[#allocation2 + $0x6b0] sm:$0xff]
        %v2204 = vld [vmem:[#allocation2 + $0x6b8] sm:$0xff]
        %v2205 = vld [vmem:[#allocation2 + $0x6c0] sm:$0xff]
        %v2206 = vld [vmem:[#allocation2 + $0x6c8] sm:$0xff]
        %v2207 = vld [vmem:[#allocation2 + $0x6d0] sm:$0xff]
        %v2208 = vld [vmem:[#allocation2 + $0x6d8] sm:$0xff]
        %v2209 = vld [vmem:[#allocation2 + $0x6e0] sm:$0xff]
        %v2210 = vld [vmem:[#allocation2 + $0x6e8] sm:$0xff]
        %v2211 = vld [vmem:[#allocation2 + $0x6f0] sm:$0xff]
        %v2212 = vld [vmem:[#allocation2 + $0x6f8] sm:$0xff]
        %v2213 = vld [vmem:[#allocation2 + $0x700] sm:$0xff]
        %v2214 = vld [vmem:[#allocation2 + $0x708] sm:$0xff]
        %v2215 = vld [vmem:[#allocation2 + $0x710] sm:$0xff]
        %v2216 = vld [vmem:[#allocation2 + $0x718] sm:$0xff]
        %v2217 = vld [vmem:[#allocation2 + $0x720] sm:$0xff]
        %v2218 = vld [vmem:[#allocation2 + $0x728] sm:$0xff]
        %v2219 = vld [vmem:[#allocation2 + $0x730] sm:$0xff]
        %v2220 = vld [vmem:[#allocation2 + $0x738] sm:$0xff]
        %v2221 = vld [vmem:[#allocation2 + $0x740] sm:$0xff]
        %v2222 = vld [vmem:[#allocation2 + $0x748] sm:$0xff]
        %v2223 = vld [vmem:[#allocation2 + $0x750] sm:$0xff]
        %v2224 = vld [vmem:[#allocation2 + $0x758] sm:$0xff]
        %v2225 = vld [vmem:[#allocation2 + $0x760] sm:$0xff]
        %v2226 = vld [vmem:[#allocation2 + $0x768] sm:$0xff]
        %v2227 = vld [vmem:[#allocation2 + $0x770] sm:$0xff]
        %v2228 = vld [vmem:[#allocation2 + $0x778] sm:$0xff]
        %v2229 = vld [vmem:[#allocation2 + $0x780] sm:$0xff]
        %v2230 = vld [vmem:[#allocation2 + $0x788] sm:$0xff]
        %v2231 = vld [vmem:[#allocation2 + $0x790] sm:$0xff]
        %v2232 = vld [vmem:[#allocation2 + $0x798] sm:$0xff]
        %v2233 = vld [vmem:[#allocation2 + $0x7a0] sm:$0xff]
        %v2234 = vld [vmem:[#allocation2 + $0x7a8] sm:$0xff]
        %v2235 = vld [vmem:[#allocation2 + $0x7b0] sm:$0xff]
        %v2236 = vld [vmem:[#allocation2 + $0x7b8] sm:$0xff]
        %v2237 = vld [vmem:[#allocation2 + $0x7c0] sm:$0xff]
        %v2238 = vld [vmem:[#allocation2 + $0x7c8] sm:$0xff]
        %v2239 = vld [vmem:[#allocation2 + $0x7d0] sm:$0xff]
        %v2240 = vld [vmem:[#allocation2 + $0x7d8] sm:$0xff]
        %v2241 = vld [vmem:[#allocation2 + $0x7e0] sm:$0xff]
        %v2242 = vld [vmem:[#allocation2 + $0x7e8] sm:$0xff]
        %v2243 = vld [vmem:[#allocation2 + $0x7f0] sm:$0xff]
        %v2244 = vld [vmem:[#allocation2 + $0x7f8] sm:$0xff]
        %v2245 = vld [vmem:[#allocation2 + $0x800] sm:$0xff]
        %v2246 = vld [vmem:[#allocation2 + $0x808] sm:$0xff]
        %v2247 = vld [vmem:[#allocation2 + $0x810] sm:$0xff]
        %v2248 = vld [vmem:[#allocation2 + $0x818] sm:$0xff]
        %v2249 = vld [vmem:[#allocation2 + $0x820] sm:$0xff]
        %v2250 = vld [vmem:[#allocation2 + $0x828] sm:$0xff]
        %v2251 = vld [vmem:[#allocation2 + $0x830] sm:$0xff]
        %v2252 = vld [vmem:[#allocation2 + $0x838] sm:$0xff]
        %v2253 = vld [vmem:[#allocation2 + $0x840] sm:$0xff]
        %v2254 = vld [vmem:[#allocation2 + $0x848] sm:$0xff]
        %v2255 = vld [vmem:[#allocation2 + $0x850] sm:$0xff]
        %v2256 = vld [vmem:[#allocation2 + $0x858] sm:$0xff]
        %v2257 = vld [vmem:[#allocation2 + $0x860] sm:$0xff]
        %v2258 = vld [vmem:[#allocation2 + $0x868] sm:$0xff]
        %v2259 = vld [vmem:[#allocation2 + $0x870] sm:$0xff]
        %v2260 = vld [vmem:[#allocation2 + $0x878] sm:$0xff]
        %v2261 = vld [vmem:[#allocation2 + $0x880] sm:$0xff]
        %v2262 = vld [vmem:[#allocation2 + $0x888] sm:$0xff]
        %v2263 = vld [vmem:[#allocation2 + $0x890] sm:$0xff]
        %v2264 = vld [vmem:[#allocation2 + $0x898] sm:$0xff]
        %v2265 = vld [vmem:[#allocation2 + $0x8a0] sm:$0xff]
        %v2266 = vld [vmem:[#allocation2 + $0x8a8] sm:$0xff]
        %v2267 = vld [vmem:[#allocation2 + $0x8b0] sm:$0xff]
        %v2268 = vld [vmem:[#allocation2 + $0x8b8] sm:$0xff]
        %v2269 = vld [vmem:[#allocation2 + $0x8c0] sm:$0xff]
        %v2270 = vld [vmem:[#allocation2 + $0x8c8] sm:$0xff]
        %v2271 = vld [vmem:[#allocation2 + $0x8d0] sm:$0xff]
        %v2272 = vld [vmem:[#allocation2 + $0x8d8] sm:$0xff]
        %v2273 = vld [vmem:[#allocation2 + $0x8e0] sm:$0xff]
        %v2274 = vld [vmem:[#allocation2 + $0x8e8] sm:$0xff]
        %v2275 = vld [vmem:[#allocation2 + $0x8f0] sm:$0xff]
        %v2276 = vld [vmem:[#allocation2 + $0x8f8] sm:$0xff]
        %v2277 = vld [vmem:[#allocation2 + $0x900] sm:$0xff]
        %v2278 = vld [vmem:[#allocation2 + $0x908] sm:$0xff]
        %v2279 = vld [vmem:[#allocation2 + $0x910] sm:$0xff]
        %v2280 = vld [vmem:[#allocation2 + $0x918] sm:$0xff]
        %v2281 = vld [vmem:[#allocation2 + $0x920] sm:$0xff]
        %v2282 = vld [vmem:[#allocation2 + $0x928] sm:$0xff]
        %v2283 = vld [vmem:[#allocation2 + $0x930] sm:$0xff]
        %v2284 = vld [vmem:[#allocation2 + $0x938] sm:$0xff]
        %v2285 = vld [vmem:[#allocation2 + $0x940] sm:$0xff]
        %v2286 = vld [vmem:[#allocation2 + $0x948] sm:$0xff]
        %v2287 = vld [vmem:[#allocation2 + $0x950] sm:$0xff]
        %v2288 = vld [vmem:[#allocation2 + $0x958] sm:$0xff]
        %v2289 = vld [vmem:[#allocation2 + $0x960] sm:$0xff]
        %v2290 = vld [vmem:[#allocation2 + $0x968] sm:$0xff]
        %v2291 = vld [vmem:[#allocation2 + $0x970] sm:$0xff]
        %v2292 = vld [vmem:[#allocation2 + $0x978] sm:$0xff]
        %v2293 = vld [vmem:[#allocation2 + $0x980] sm:$0xff]
        %v2294 = vld [vmem:[#allocation2 + $0x988] sm:$0xff]
        %v2295 = vld [vmem:[#allocation2 + $0x990] sm:$0xff]
        %v2296 = vld [vmem:[#allocation2 + $0x998] sm:$0xff]
        %v2297 = vld [vmem:[#allocation2 + $0x9a0] sm:$0xff]
        %v2298 = vld [vmem:[#allocation2 + $0x9a8] sm:$0xff]
        %v2299 = vld [vmem:[#allocation2 + $0x9b0] sm:$0xff]
        %v2300 = vld [vmem:[#allocation2 + $0x9b8] sm:$0xff]
        %v2301 = vld [vmem:[#allocation2 + $0x9c0] sm:$0xff]
        %v2302 = vld [vmem:[#allocation2 + $0x9c8] sm:$0xff]
        %v2303 = vld [vmem:[#allocation2 + $0x9d0] sm:$0xff]
        %v2304 = vld [vmem:[#allocation2 + $0x9d8] sm:$0xff]
        %v2305 = vld [vmem:[#allocation2 + $0x9e0] sm:$0xff]
        %v2306 = vld [vmem:[#allocation2 + $0x9e8] sm:$0xff]
        %v2307 = vld [vmem:[#allocation2 + $0x9f0] sm:$0xff]
        %v2308 = vld [vmem:[#allocation2 + $0x9f8] sm:$0xff]
        %v2309 = vld [vmem:[#allocation2 + $0xa00] sm:$0xff]
        %v2310 = vld [vmem:[#allocation2 + $0xa08] sm:$0xff]
        %v2311 = vld [vmem:[#allocation2 + $0xa10] sm:$0xff]
        %v2312 = vld [vmem:[#allocation2 + $0xa18] sm:$0xff]
        %v2313 = vld [vmem:[#allocation2 + $0xa20] sm:$0xff]
        %v2314 = vld [vmem:[#allocation2 + $0xa28] sm:$0xff]
        %v2315 = vld [vmem:[#allocation2 + $0xa30] sm:$0xff]
        %v2316 = vld [vmem:[#allocation2 + $0xa38] sm:$0xff]
        %v2317 = vld [vmem:[#allocation2 + $0xa40] sm:$0xff]
        %v2318 = vld [vmem:[#allocation2 + $0xa48] sm:$0xff]
        %v2319 = vld [vmem:[#allocation2 + $0xa50] sm:$0xff]
        %v2320 = vld [vmem:[#allocation2 + $0xa58] sm:$0xff]
        %v2321 = vld [vmem:[#allocation2 + $0xa60] sm:$0xff]
        %v2322 = vld [vmem:[#allocation2 + $0xa68] sm:$0xff]
        %v2323 = vld [vmem:[#allocation2 + $0xa70] sm:$0xff]
        %v2324 = vld [vmem:[#allocation2 + $0xa78] sm:$0xff]
        %v2325 = vld [vmem:[#allocation2 + $0xa80] sm:$0xff]
        %v2326 = vld [vmem:[#allocation2 + $0xa88] sm:$0xff]
        %v2327 = vld [vmem:[#allocation2 + $0xa90] sm:$0xff]
        %v2328 = vld [vmem:[#allocation2 + $0xa98] sm:$0xff]
        %v2329 = vld [vmem:[#allocation2 + $0xaa0] sm:$0xff]
        %v2330 = vld [vmem:[#allocation2 + $0xaa8] sm:$0xff]
        %v2331 = vld [vmem:[#allocation2 + $0xab0] sm:$0xff]
        %v2332 = vld [vmem:[#allocation2 + $0xab8] sm:$0xff]
        %v2333 = vld [vmem:[#allocation2 + $0xac0] sm:$0xff]
        %v2334 = vld [vmem:[#allocation2 + $0xac8] sm:$0xff]
        %v2335 = vld [vmem:[#allocation2 + $0xad0] sm:$0xff]
        %v2336 = vld [vmem:[#allocation2 + $0xad8] sm:$0xff]
        %v2337 = vld [vmem:[#allocation2 + $0xae0] sm:$0xff]
        %v2338 = vld [vmem:[#allocation2 + $0xae8] sm:$0xff]
        %v2339 = vld [vmem:[#allocation2 + $0xaf0] sm:$0xff]
        %v2340 = vld [vmem:[#allocation2 + $0xaf8] sm:$0xff]
        %v2341 = vld [vmem:[#allocation2 + $0xb00] sm:$0xff]
        %v2342 = vld [vmem:[#allocation2 + $0xb08] sm:$0xff]
        %v2343 = vld [vmem:[#allocation2 + $0xb10] sm:$0xff]
        %v2344 = vld [vmem:[#allocation2 + $0xb18] sm:$0xff]
        %v2345 = vld [vmem:[#allocation2 + $0xb20] sm:$0xff]
        %v2346 = vld [vmem:[#allocation2 + $0xb28] sm:$0xff]
        %v2347 = vld [vmem:[#allocation2 + $0xb30] sm:$0xff]
        %v2348 = vld [vmem:[#allocation2 + $0xb38] sm:$0xff]
        %v2349 = vld [vmem:[#allocation2 + $0xb40] sm:$0xff]
        %v2350 = vld [vmem:[#allocation2 + $0xb48] sm:$0xff]
        %v2351 = vld [vmem:[#allocation2 + $0xb50] sm:$0xff]
        %v2352 = vld [vmem:[#allocation2 + $0xb58] sm:$0xff]
        %v2353 = vld [vmem:[#allocation2 + $0xb60] sm:$0xff]
        %v2354 = vld [vmem:[#allocation2 + $0xb68] sm:$0xff]
        %v2355 = vld [vmem:[#allocation2 + $0xb70] sm:$0xff]
        %v2356 = vld [vmem:[#allocation2 + $0xb78] sm:$0xff]
        %v2357 = vld [vmem:[#allocation2 + $0xb80] sm:$0xff]
        %v2358 = vld [vmem:[#allocation2 + $0xb88] sm:$0xff]
        %v2359 = vld [vmem:[#allocation2 + $0xb90] sm:$0xff]
        %v2360 = vld [vmem:[#allocation2 + $0xb98] sm:$0xff]
        %v2361 = vld [vmem:[#allocation2 + $0xba0] sm:$0xff]
        %v2362 = vld [vmem:[#allocation2 + $0xba8] sm:$0xff]
        %v2363 = vld [vmem:[#allocation2 + $0xbb0] sm:$0xff]
        %v2364 = vld [vmem:[#allocation2 + $0xbb8] sm:$0xff]
        %v2365 = vld [vmem:[#allocation2 + $0xbc0] sm:$0xff]
        %v2366 = vld [vmem:[#allocation2 + $0xbc8] sm:$0xff]
        %v2367 = vld [vmem:[#allocation2 + $0xbd0] sm:$0xff]
        %v2368 = vld [vmem:[#allocation2 + $0xbd8] sm:$0xff]
        %v2369 = vld [vmem:[#allocation2 + $0xbe0] sm:$0xff]
        %v2370 = vld [vmem:[#allocation2 + $0xbe8] sm:$0xff]
        %v2371 = vld [vmem:[#allocation2 + $0xbf0] sm:$0xff]
        %v2372 = vld [vmem:[#allocation2 + $0xbf8] sm:$0xff]
        %v2373 = vld [vmem:[#allocation2 + $0xc00] sm:$0xff]
        %v2374 = vld [vmem:[#allocation2 + $0xc08] sm:$0xff]
        %v2375 = vld [vmem:[#allocation2 + $0xc10] sm:$0xff]
        %v2376 = vld [vmem:[#allocation2 + $0xc18] sm:$0xff]
        %v2377 = vld [vmem:[#allocation2 + $0xc20] sm:$0xff]
        %v2378 = vld [vmem:[#allocation2 + $0xc28] sm:$0xff]
        %v2379 = vld [vmem:[#allocation2 + $0xc30] sm:$0xff]
        %v2380 = vld [vmem:[#allocation2 + $0xc38] sm:$0xff]
        %v2381 = vld [vmem:[#allocation2 + $0xc40] sm:$0xff]
        %v2382 = vld [vmem:[#allocation2 + $0xc48] sm:$0xff]
        %v2383 = vld [vmem:[#allocation2 + $0xc50] sm:$0xff]
        %v2384 = vld [vmem:[#allocation2 + $0xc58] sm:$0xff]
        %v2385 = vld [vmem:[#allocation2 + $0xc60] sm:$0xff]
        %v2386 = vld [vmem:[#allocation2 + $0xc68] sm:$0xff]
        %v2387 = vld [vmem:[#allocation2 + $0xc70] sm:$0xff]
        %v2388 = vld [vmem:[#allocation2 + $0xc78] sm:$0xff]
        %v2389 = vld [vmem:[#allocation2 + $0xc80] sm:$0xff]
        %v2390 = vld [vmem:[#allocation2 + $0xc88] sm:$0xff]
        %v2391 = vld [vmem:[#allocation2 + $0xc90] sm:$0xff]
        %v2392 = vld [vmem:[#allocation2 + $0xc98] sm:$0xff]
        %v2393 = vld [vmem:[#allocation2 + $0xca0] sm:$0xff]
        %v2394 = vld [vmem:[#allocation2 + $0xca8] sm:$0xff]
        %v2395 = vld [vmem:[#allocation2 + $0xcb0] sm:$0xff]
        %v2396 = vld [vmem:[#allocation2 + $0xcb8] sm:$0xff]
        %v2397 = vld [vmem:[#allocation2 + $0xcc0] sm:$0xff]
        %v2398 = vld [vmem:[#allocation2 + $0xcc8] sm:$0xff]
        %v2399 = vld [vmem:[#allocation2 + $0xcd0] sm:$0xff]
        %v2400 = vld [vmem:[#allocation2 + $0xcd8] sm:$0xff]
        %v2401 = vld [vmem:[#allocation2 + $0xce0] sm:$0xff]
        %v2402 = vld [vmem:[#allocation2 + $0xce8] sm:$0xff]
        %v2403 = vld [vmem:[#allocation2 + $0xcf0] sm:$0xff]
        %v2404 = vld [vmem:[#allocation2 + $0xcf8] sm:$0xff]
        %v2405 = vld [vmem:[#allocation2 + $0xd00] sm:$0xff]
        %v2406 = vld [vmem:[#allocation2 + $0xd08] sm:$0xff]
        %v2407 = vld [vmem:[#allocation2 + $0xd10] sm:$0xff]
        %v2408 = vld [vmem:[#allocation2 + $0xd18] sm:$0xff]
        %v2409 = vld [vmem:[#allocation2 + $0xd20] sm:$0xff]
        %v2410 = vld [vmem:[#allocation2 + $0xd28] sm:$0xff]
        %v2411 = vld [vmem:[#allocation2 + $0xd30] sm:$0xff]
        %v2412 = vld [vmem:[#allocation2 + $0xd38] sm:$0xff]
        %v2413 = vld [vmem:[#allocation2 + $0xd40] sm:$0xff]
        %v2414 = vld [vmem:[#allocation2 + $0xd48] sm:$0xff]
        %v2415 = vld [vmem:[#allocation2 + $0xd50] sm:$0xff]
        %v2416 = vld [vmem:[#allocation2 + $0xd58] sm:$0xff]
        %v2417 = vld [vmem:[#allocation2 + $0xd60] sm:$0xff]
        %v2418 = vld [vmem:[#allocation2 + $0xd68] sm:$0xff]
        %v2419 = vld [vmem:[#allocation2 + $0xd70] sm:$0xff]
        %v2420 = vld [vmem:[#allocation2 + $0xd78] sm:$0xff]
        %v2421 = vld [vmem:[%s202] sm:$0xff]
        %v2422 = vld [vmem:[%s202 + $0x8] sm:$0xff]
        %v2423 = vld [vmem:[%s202 + $0x10] sm:$0xff]
        %v2424 = vld [vmem:[%s202 + $0x18] sm:$0xff]
        %v2425 = vld [vmem:[%s202 + $0x20] sm:$0xff]
        %v2426 = vld [vmem:[%s202 + $0x28] sm:$0xff]
        %v2427 = vld [vmem:[%s202 + $0x30] sm:$0xff]
        %v2428 = vld [vmem:[%s202 + $0x38] sm:$0xff]
        %2430 = vset.pattern.permute.xlu0 0
        %2431 = vperm.xlu0 %2430, %v2421
        %v2432 = vpop.permute.xlu0 %2431
        %2435 = vset.pattern.permute.xlu0 0
        %2436 = vperm.xlu0 %2435, %v2422
        %v2437 = vpop.permute.xlu0 %2436
        %2440 = vset.pattern.permute.xlu0 0
        %2441 = vperm.xlu0 %2440, %v2423
        %v2442 = vpop.permute.xlu0 %2441
        %2445 = vset.pattern.permute.xlu0 0
        %2446 = vperm.xlu0 %2445, %v2424
        %v2447 = vpop.permute.xlu0 %2446
        %2450 = vset.pattern.permute.xlu0 0
        %2451 = vperm.xlu0 %2450, %v2425
        %v2452 = vpop.permute.xlu0 %2451
        %2455 = vset.pattern.permute.xlu0 0
        %2456 = vperm.xlu0 %2455, %v2426
        %v2457 = vpop.permute.xlu0 %2456
        %2460 = vset.pattern.permute.xlu0 0
        %2461 = vperm.xlu0 %2460, %v2427
        %v2462 = vpop.permute.xlu0 %2461
        %2465 = vset.pattern.permute.xlu0 0
        %2466 = vperm.xlu0 %2465, %v2428
        %v2467 = vpop.permute.xlu0 %2466
        %vm2469 = vcmask 523264
        %v2471 = vsel %vm2469, %v1953, 0
        %v2474 = vsel %vm2469, %v1958, 0
        %v2477 = vsel %vm2469, %v1963, 0
        %v2480 = vsel %vm2469, %v1968, 0
        %v2483 = vsel %vm2469, %v1973, 0
        %v2486 = vsel %vm2469, %v1978, 0
        %v2489 = vsel %vm2469, %v1983, 0
        %v2492 = vsel %vm2469, %v1988, 0
        %2494 = vmatprep.subr.mxu0 %v1990
        %2495 = vmatpush1.msra.mxu0 %v1989
        %2496 = vmatprep.subr.mxu0 %v1996
        %2497 = vmatpush1.msra.mxu0 %v1995
        %2498 = vmatprep.subr.mxu0 %v2002
        %2499 = vmatpush1.msra.mxu0 %v2001
        %2500 = vmatprep.subr.mxu0 %v2008
        %2501 = vmatpush1.msra.mxu0 %v2007
        %2502 = vmatprep.subr.mxu0 %v2014
        %2503 = vmatpush1.msra.mxu0 %v2013
        %2504 = vmatprep.subr.mxu0 %v2020
        %2505 = vmatpush1.msra.mxu0 %v2019
        %2506 = vmatprep.subr.mxu0 %v2026
        %2507 = vmatpush1.msra.mxu0 %v2025
        %2508 = vmatprep.subr.mxu0 %v2032
        %2509 = vmatpush1.msra.mxu0 %v2031
        %2510 = vmatprep.subr.mxu0 %v2038
        %2511 = vmatpush1.msra.mxu0 %v2037
        %2512 = vmatprep.subr.mxu0 %v2044
        %2513 = vmatpush1.msra.mxu0 %v2043
        %2514 = vmatprep.subr.mxu0 %v2050
        %2515 = vmatpush1.msra.mxu0 %v2049
        %2516 = vmatprep.subr.mxu0 %v2056
        %2517 = vmatpush1.msra.mxu0 %v2055
        %2518 = vmatprep.subr.mxu0 %v2062
        %2519 = vmatpush1.msra.mxu0 %v2061
        %2520 = vmatprep.subr.mxu0 %v2068
        %2521 = vmatpush1.msra.mxu0 %v2067
        %2522 = vmatprep.subr.mxu0 %v2074
        %2523 = vmatpush1.msra.mxu0 %v2073
        %2524 = vmatprep.subr.mxu0 %v2080
        %2525 = vmatpush1.msra.mxu0 %v2079
        %2526 = vmatprep.subr.mxu0 %v2086
        %2527 = vmatpush1.msra.mxu0 %v2085
        %2528 = vmatprep.subr.mxu0 %v2092
        %2529 = vmatpush1.msra.mxu0 %v2091
        %2530 = vmatprep.subr.mxu0 %v2098
        %2531 = vmatpush1.msra.mxu0 %v2097
        %2532 = vmatprep.subr.mxu0 %v2104
        %2533 = vmatpush1.msra.mxu0 %v2103
        %2534 = vmatprep.subr.mxu0 %v2110
        %2535 = vmatpush1.msra.mxu0 %v2109
        %2536 = vmatprep.subr.mxu0 %v2116
        %2537 = vmatpush1.msra.mxu0 %v2115
        %2538 = vmatprep.subr.mxu0 %v2122
        %2539 = vmatpush1.msra.mxu0 %v2121
        %2540 = vmatprep.subr.mxu0 %v2128
        %2541 = vmatpush1.msra.mxu0 %v2127
        %2542 = vmatprep.subr.mxu0 %v2134
        %2543 = vmatpush1.msra.mxu0 %v2133
        %2544 = vmatprep.subr.mxu0 %v2140
        %2545 = vmatpush1.msra.mxu0 %v2139
        %2546 = vmatprep.subr.mxu0 %v2146
        %2547 = vmatpush1.msra.mxu0 %v2145
        %2548 = vmatprep.subr.mxu0 %v2152
        %2549 = vmatpush1.msra.mxu0 %v2151
        %2550 = vmatprep.subr.mxu0 %v2158
        %2551 = vmatpush1.msra.mxu0 %v2157
        %2552 = vmatprep.subr.mxu0 %v2164
        %2553 = vmatpush1.msra.mxu0 %v2163
        %2554 = vmatprep.subr.mxu0 %v2170
        %2555 = vmatpush1.msra.mxu0 %v2169
        %2556 = vmatprep.subr.mxu0 %v2176
        %2557 = vmatpush1.msra.mxu0 %v2175
        %2558 = vmatprep.mubr.f32.mxu0 %v1950
        %2559 = vmatmul.mubr.f32.gmra.mrb[0].mxu0 %v1949
        %v2560 = vpop.f32.mrb[0].mxu0
        %v2561 = vadd.f32 %v2432, %v2560
        %v2562 = vpop.f32.mrb[0].mxu0
        %v2563 = vadd.f32 %v2432, %v2562
        %2564 = vmatprep.mubr.f32.mxu0 %v1955
        %2565 = vmatmul.mubr.f32.gmra.mrb[0].mxu0 %v1954
        %v2566 = vpop.f32.mrb[0].mxu0
        %v2567 = vadd.f32 %v2437, %v2566
        %v2568 = vpop.f32.mrb[0].mxu0
        %v2569 = vadd.f32 %v2437, %v2568
        %2570 = vmatprep.mubr.f32.mxu0 %v1960
        %2571 = vmatmul.mubr.f32.gmra.mrb[0].mxu0 %v1959
        %v2572 = vpop.f32.mrb[0].mxu0
        %v2573 = vadd.f32 %v2442, %v2572
        %v2574 = vpop.f32.mrb[0].mxu0
        %v2575 = vadd.f32 %v2442, %v2574
        %2576 = vmatprep.mubr.f32.mxu0 %v1965
        %2577 = vmatmul.mubr.f32.gmra.mrb[0].mxu0 %v1964
        %v2578 = vpop.f32.mrb[0].mxu0
        %v2579 = vadd.f32 %v2447, %v2578
        %v2580 = vpop.f32.mrb[0].mxu0
        %v2581 = vadd.f32 %v2447, %v2580
        %2582 = vmatprep.mubr.f32.mxu0 %v1970
        %2583 = vmatmul.mubr.f32.gmra.mrb[0].mxu0 %v1969
        %v2584 = vpop.f32.mrb[0].mxu0
        %v2585 = vadd.f32 %v2452, %v2584
        %v2586 = vpop.f32.mrb[0].mxu0
        %v2587 = vadd.f32 %v2452, %v2586
        %2588 = vmatprep.mubr.f32.mxu0 %v1975
        %2589 = vmatmul.mubr.f32.gmra.mrb[0].mxu0 %v1974
        %v2590 = vpop.f32.mrb[0].mxu0
        %v2591 = vadd.f32 %v2457, %v2590
        %v2592 = vpop.f32.mrb[0].mxu0
        %v2593 = vadd.f32 %v2457, %v2592
        %2594 = vmatprep.mubr.f32.mxu0 %v1980
        %2595 = vmatmul.mubr.f32.gmra.mrb[0].mxu0 %v1979
        %v2596 = vpop.f32.mrb[0].mxu0
        %v2597 = vadd.f32 %v2462, %v2596
        %v2598 = vpop.f32.mrb[0].mxu0
        %v2599 = vadd.f32 %v2462, %v2598
        %2600 = vmatprep.mubr.f32.mxu0 %v1985
        %2601 = vmatmul.mubr.f32.gmra.mrb[0].mxu0 %v1984
        %v2602 = vpop.f32.mrb[0].mxu0
        %v2603 = vadd.f32 %v2467, %v2602
        %v2604 = vpop.f32.mrb[0].mxu0
        %v2605 = vadd.f32 %v2467, %v2604
        %2606 = vdwg.mxu0
        %2607 = vmatprep.subr.mxu0 %v2182
        %2608 = vmatpush1.msra.mxu0 %v2181
        %2609 = vmatprep.subr.mxu0 %v2188
        %2610 = vmatpush1.msra.mxu0 %v2187
        %2611 = vmatprep.subr.mxu0 %v2194
        %2612 = vmatpush1.msra.mxu0 %v2193
        %2613 = vmatprep.subr.mxu0 %v2200
        %2614 = vmatpush1.msra.mxu0 %v2199
        %2615 = vmatprep.subr.mxu0 %v2206
        %2616 = vmatpush1.msra.mxu0 %v2205
        %2617 = vmatprep.subr.mxu0 %v2212
        %2618 = vmatpush1.msra.mxu0 %v2211
        %2619 = vmatprep.subr.mxu0 %v2218
        %2620 = vmatpush1.msra.mxu0 %v2217
        %2621 = vmatprep.subr.mxu0 %v2224
        %2622 = vmatpush1.msra.mxu0 %v2223
        %2623 = vmatprep.subr.mxu0 %v2230
        %2624 = vmatpush1.msra.mxu0 %v2229
        %2625 = vmatprep.subr.mxu0 %v2236
        %2626 = vmatpush1.msra.mxu0 %v2235
        %2627 = vmatprep.subr.mxu0 %v2242
        %2628 = vmatpush1.msra.mxu0 %v2241
        %2629 = vmatprep.subr.mxu0 %v2248
        %2630 = vmatpush1.msra.mxu0 %v2247
        %2631 = vmatprep.subr.mxu0 %v2254
        %2632 = vmatpush1.msra.mxu0 %v2253
        %2633 = vmatprep.subr.mxu0 %v2260
        %2634 = vmatpush1.msra.mxu0 %v2259
        %2635 = vmatprep.subr.mxu0 %v2266
        %2636 = vmatpush1.msra.mxu0 %v2265
        %2637 = vmatprep.subr.mxu0 %v2272
        %2638 = vmatpush1.msra.mxu0 %v2271
        %2639 = vmatprep.subr.mxu0 %v2278
        %2640 = vmatpush1.msra.mxu0 %v2277
        %2641 = vmatprep.subr.mxu0 %v2284
        %2642 = vmatpush1.msra.mxu0 %v2283
        %2643 = vmatprep.subr.mxu0 %v2290
        %2644 = vmatpush1.msra.mxu0 %v2289
        %2645 = vmatprep.subr.mxu0 %v2296
        %2646 = vmatpush1.msra.mxu0 %v2295
        %2647 = vmatprep.subr.mxu0 %v2302
        %2648 = vmatpush1.msra.mxu0 %v2301
        %2649 = vmatprep.subr.mxu0 %v2308
        %2650 = vmatpush1.msra.mxu0 %v2307
        %2651 = vmatprep.subr.mxu0 %v2314
        %2652 = vmatpush1.msra.mxu0 %v2313
        %2653 = vmatprep.subr.mxu0 %v2320
        %2654 = vmatpush1.msra.mxu0 %v2319
        %2655 = vmatprep.subr.mxu0 %v2326
        %2656 = vmatpush1.msra.mxu0 %v2325
        %2657 = vmatprep.subr.mxu0 %v2332
        %2658 = vmatpush1.msra.mxu0 %v2331
        %2659 = vmatprep.subr.mxu0 %v2338
        %2660 = vmatpush1.msra.mxu0 %v2337
        %2661 = vmatprep.subr.mxu0 %v2344
        %2662 = vmatpush1.msra.mxu0 %v2343
        %2663 = vmatprep.subr.mxu0 %v2350
        %2664 = vmatpush1.msra.mxu0 %v2349
        %2665 = vmatprep.subr.mxu0 %v2356
        %2666 = vmatpush1.msra.mxu0 %v2355
        %2667 = vmatprep.subr.mxu0 %v2362
        %2668 = vmatpush1.msra.mxu0 %v2361
        %2669 = vmatprep.subr.mxu0 %v2368
        %2670 = vmatpush1.msra.mxu0 %v2367
        %2671 = vmatprep.mubr.f32.mxu0 %v1952
        %2672 = vmatmul.mubr.f32.gmra.mrb[0].mxu0 %v1951
        %v2673 = vpop.f32.mrb[0].mxu0
        %v2674 = vadd.f32 %v2561, %v2673
        %v2675 = vpop.f32.mrb[0].mxu0
        %v2676 = vadd.f32 %v2563, %v2675
        %2677 = vmatprep.mubr.f32.mxu0 %v1957
        %2678 = vmatmul.mubr.f32.gmra.mrb[0].mxu0 %v1956
        %v2679 = vpop.f32.mrb[0].mxu0
        %v2680 = vadd.f32 %v2567, %v2679
        %v2681 = vpop.f32.mrb[0].mxu0
        %v2682 = vadd.f32 %v2569, %v2681
        %2683 = vmatprep.mubr.f32.mxu0 %v1962
        %2684 = vmatmul.mubr.f32.gmra.mrb[0].mxu0 %v1961
        %v2685 = vpop.f32.mrb[0].mxu0
        %v2686 = vadd.f32 %v2573, %v2685
        %v2687 = vpop.f32.mrb[0].mxu0
        %v2688 = vadd.f32 %v2575, %v2687
        %2689 = vmatprep.mubr.f32.mxu0 %v1967
        %2690 = vmatmul.mubr.f32.gmra.mrb[0].mxu0 %v1966
        %v2691 = vpop.f32.mrb[0].mxu0
        %v2692 = vadd.f32 %v2579, %v2691
        %v2693 = vpop.f32.mrb[0].mxu0
        %v2694 = vadd.f32 %v2581, %v2693
        %2695 = vmatprep.mubr.f32.mxu0 %v1972
        %2696 = vmatmul.mubr.f32.gmra.mrb[0].mxu0 %v1971
        %v2697 = vpop.f32.mrb[0].mxu0
        %v2698 = vadd.f32 %v2585, %v2697
        %v2699 = vpop.f32.mrb[0].mxu0
        %v2700 = vadd.f32 %v2587, %v2699
        %2701 = vmatprep.mubr.f32.mxu0 %v1977
        %2702 = vmatmul.mubr.f32.gmra.mrb[0].mxu0 %v1976
        %v2703 = vpop.f32.mrb[0].mxu0
        %v2704 = vadd.f32 %v2591, %v2703
        %v2705 = vpop.f32.mrb[0].mxu0
        %v2706 = vadd.f32 %v2593, %v2705
        %2707 = vmatprep.mubr.f32.mxu0 %v1982
        %2708 = vmatmul.mubr.f32.gmra.mrb[0].mxu0 %v1981
        %v2709 = vpop.f32.mrb[0].mxu0
        %v2710 = vadd.f32 %v2597, %v2709
        %v2711 = vpop.f32.mrb[0].mxu0
        %v2712 = vadd.f32 %v2599, %v2711
        %2713 = vmatprep.mubr.f32.mxu0 %v1987
        %2714 = vmatmul.mubr.f32.gmra.mrb[0].mxu0 %v1986
        %v2715 = vpop.f32.mrb[0].mxu0
        %v2716 = vadd.f32 %v2603, %v2715
        %v2717 = vpop.f32.mrb[0].mxu0
        %v2718 = vadd.f32 %v2605, %v2717
        %2719 = vdwg.mxu0
        %2720 = vmatprep.subr.mxu0 %v2374
        %2721 = vmatpush1.msra.mxu0 %v2373
        %2722 = vmatprep.subr.mxu0 %v2380
        %2723 = vmatpush1.msra.mxu0 %v2379
        %2724 = vmatprep.subr.mxu0 %v2386
        %2725 = vmatpush1.msra.mxu0 %v2385
        %2726 = vmatprep.subr.mxu0 %v2392
        %2727 = vmatpush1.msra.mxu0 %v2391
        %2728 = vmatprep.subr.mxu0 %v2398
        %2729 = vmatpush1.msra.mxu0 %v2397
        %2730 = vmatprep.subr.mxu0 %v2404
        %2731 = vmatpush1.msra.mxu0 %v2403
        %2732 = vmatprep.subr.mxu0 %v2410
        %2733 = vmatpush1.msra.mxu0 %v2409
        %2734 = vmatprep.subr.mxu0 %v2416
        %2735 = vmatpush1.msra.mxu0 %v2415
        %2736 = vmatprep.subr.mxu0 0.0
        %2737 = vmatpush1.msra.mxu0 0.0
        %2738 = vmatprep.subr.mxu0 0.0
        %2739 = vmatpush1.msra.mxu0 0.0
        %2740 = vmatprep.subr.mxu0 0.0
        %2741 = vmatpush1.msra.mxu0 0.0
        %2742 = vmatprep.subr.mxu0 0.0
        %2743 = vmatpush1.msra.mxu0 0.0
        %2744 = vmatprep.subr.mxu0 0.0
        %2745 = vmatpush1.msra.mxu0 0.0
        %2746 = vmatprep.subr.mxu0 0.0
        %2747 = vmatpush1.msra.mxu0 0.0
        %2748 = vmatprep.subr.mxu0 0.0
        %2749 = vmatpush1.msra.mxu0 0.0
        %2750 = vmatprep.subr.mxu0 0.0
        %2751 = vmatpush1.msra.mxu0 0.0
        %2752 = vmatprep.subr.mxu0 0.0
        %2753 = vmatpush1.msra.mxu0 0.0
        %2754 = vmatprep.subr.mxu0 0.0
        %2755 = vmatpush1.msra.mxu0 0.0
        %2756 = vmatprep.subr.mxu0 0.0
        %2757 = vmatpush1.msra.mxu0 0.0
        %2758 = vmatprep.subr.mxu0 0.0
        %2759 = vmatpush1.msra.mxu0 0.0
        %2760 = vmatprep.subr.mxu0 0.0
        %2761 = vmatpush1.msra.mxu0 0.0
        %2762 = vmatprep.subr.mxu0 0.0
        %2763 = vmatpush1.msra.mxu0 0.0
        %2764 = vmatprep.subr.mxu0 0.0
        %2765 = vmatpush1.msra.mxu0 0.0
        %2766 = vmatprep.subr.mxu0 0.0
        %2767 = vmatpush1.msra.mxu0 0.0
        %2768 = vmatprep.subr.mxu0 0.0
        %2769 = vmatpush1.msra.mxu0 0.0
        %2770 = vmatprep.subr.mxu0 0.0
        %2771 = vmatpush1.msra.mxu0 0.0
        %2772 = vmatprep.subr.mxu0 0.0
        %2773 = vmatpush1.msra.mxu0 0.0
        %2774 = vmatprep.subr.mxu0 0.0
        %2775 = vmatpush1.msra.mxu0 0.0
        %2776 = vmatprep.subr.mxu0 0.0
        %2777 = vmatpush1.msra.mxu0 0.0
        %2778 = vmatprep.subr.mxu0 0.0
        %2779 = vmatpush1.msra.mxu0 0.0
        %2780 = vmatprep.subr.mxu0 0.0
        %2781 = vmatpush1.msra.mxu0 0.0
        %2782 = vmatprep.subr.mxu0 0.0
        %2783 = vmatpush1.msra.mxu0 0.0
        %2784 = vmatprep.mubr.f32.mxu0 0.0
        %2785 = vmatmul.mubr.f32.gmra.mrb[0].mxu0 %v2471
        %v2786 = vpop.f32.mrb[0].mxu0
        %v2787 = vadd.f32 %v2674, %v2786
        %v2788 = vpop.f32.mrb[0].mxu0
        %v2789 = vadd.f32 %v2676, %v2788
        %2790 = vmatprep.mubr.f32.mxu0 0.0
        %2791 = vmatmul.mubr.f32.gmra.mrb[0].mxu0 %v2474
        %v2792 = vpop.f32.mrb[0].mxu0
        %v2793 = vadd.f32 %v2680, %v2792
        %v2794 = vpop.f32.mrb[0].mxu0
        %v2795 = vadd.f32 %v2682, %v2794
        %2796 = vmatprep.mubr.f32.mxu0 0.0
        %2797 = vmatmul.mubr.f32.gmra.mrb[0].mxu0 %v2477
        %v2798 = vpop.f32.mrb[0].mxu0
        %v2799 = vadd.f32 %v2686, %v2798
        %v2800 = vpop.f32.mrb[0].mxu0
        %v2801 = vadd.f32 %v2688, %v2800
        %2802 = vmatprep.mubr.f32.mxu0 0.0
        %2803 = vmatmul.mubr.f32.gmra.mrb[0].mxu0 %v2480
        %v2804 = vpop.f32.mrb[0].mxu0
        %v2805 = vadd.f32 %v2692, %v2804
        %v2806 = vpop.f32.mrb[0].mxu0
        %v2807 = vadd.f32 %v2694, %v2806
        %2808 = vmatprep.mubr.f32.mxu0 0.0
        %2809 = vmatmul.mubr.f32.gmra.mrb[0].mxu0 %v2483
        %v2810 = vpop.f32.mrb[0].mxu0
        %v2811 = vadd.f32 %v2698, %v2810
        %v2812 = vpop.f32.mrb[0].mxu0
        %v2813 = vadd.f32 %v2700, %v2812
        %2814 = vmatprep.mubr.f32.mxu0 0.0
        %2815 = vmatmul.mubr.f32.gmra.mrb[0].mxu0 %v2486
        %v2816 = vpop.f32.mrb[0].mxu0
        %v2817 = vadd.f32 %v2704, %v2816
        %v2818 = vpop.f32.mrb[0].mxu0
        %v2819 = vadd.f32 %v2706, %v2818
        %2820 = vmatprep.mubr.f32.mxu0 0.0
        %2821 = vmatmul.mubr.f32.gmra.mrb[0].mxu0 %v2489
        %v2822 = vpop.f32.mrb[0].mxu0
        %v2823 = vadd.f32 %v2710, %v2822
        %v2824 = vpop.f32.mrb[0].mxu0
        %v2825 = vadd.f32 %v2712, %v2824
        %2826 = vmatprep.mubr.f32.mxu0 0.0
        %2827 = vmatmul.mubr.f32.gmra.mrb[0].mxu0 %v2492
        %v2828 = vpop.f32.mrb[0].mxu0
        %v2829 = vadd.f32 %v2716, %v2828
        %v2830 = vpop.f32.mrb[0].mxu0
        %v2831 = vadd.f32 %v2718, %v2830
        %2832 = vdwg.mxu0
        %2833 = vmatprep.subr.mxu0 %v1992
        %2834 = vmatpush1.msra.mxu0 %v1991
        %2835 = vmatprep.subr.mxu0 %v1998
        %2836 = vmatpush1.msra.mxu0 %v1997
        %2837 = vmatprep.subr.mxu0 %v2004
        %2838 = vmatpush1.msra.mxu0 %v2003
        %2839 = vmatprep.subr.mxu0 %v2010
        %2840 = vmatpush1.msra.mxu0 %v2009
        %2841 = vmatprep.subr.mxu0 %v2016
        %2842 = vmatpush1.msra.mxu0 %v2015
        %2843 = vmatprep.subr.mxu0 %v2022
        %2844 = vmatpush1.msra.mxu0 %v2021
        %2845 = vmatprep.subr.mxu0 %v2028
        %2846 = vmatpush1.msra.mxu0 %v2027
        %2847 = vmatprep.subr.mxu0 %v2034
        %2848 = vmatpush1.msra.mxu0 %v2033
        %2849 = vmatprep.subr.mxu0 %v2040
        %2850 = vmatpush1.msra.mxu0 %v2039
        %2851 = vmatprep.subr.mxu0 %v2046
        %2852 = vmatpush1.msra.mxu0 %v2045
        %2853 = vmatprep.subr.mxu0 %v2052
        %2854 = vmatpush1.msra.mxu0 %v2051
        %2855 = vmatprep.subr.mxu0 %v2058
        %2856 = vmatpush1.msra.mxu0 %v2057
        %2857 = vmatprep.subr.mxu0 %v2064
        %2858 = vmatpush1.msra.mxu0 %v2063
        %2859 = vmatprep.subr.mxu0 %v2070
        %2860 = vmatpush1.msra.mxu0 %v2069
        %2861 = vmatprep.subr.mxu0 %v2076
        %2862 = vmatpush1.msra.mxu0 %v2075
        %2863 = vmatprep.subr.mxu0 %v2082
        %2864 = vmatpush1.msra.mxu0 %v2081
        %2865 = vmatprep.subr.mxu0 %v2088
        %2866 = vmatpush1.msra.mxu0 %v2087
        %2867 = vmatprep.subr.mxu0 %v2094
        %2868 = vmatpush1.msra.mxu0 %v2093
        %2869 = vmatprep.subr.mxu0 %v2100
        %2870 = vmatpush1.msra.mxu0 %v2099
        %2871 = vmatprep.subr.mxu0 %v2106
        %2872 = vmatpush1.msra.mxu0 %v2105
        %2873 = vmatprep.subr.mxu0 %v2112
        %2874 = vmatpush1.msra.mxu0 %v2111
        %2875 = vmatprep.subr.mxu0 %v2118
        %2876 = vmatpush1.msra.mxu0 %v2117
        %2877 = vmatprep.subr.mxu0 %v2124
        %2878 = vmatpush1.msra.mxu0 %v2123
        %2879 = vmatprep.subr.mxu0 %v2130
        %2880 = vmatpush1.msra.mxu0 %v2129
        %2881 = vmatprep.subr.mxu0 %v2136
        %2882 = vmatpush1.msra.mxu0 %v2135
        %2883 = vmatprep.subr.mxu0 %v2142
        %2884 = vmatpush1.msra.mxu0 %v2141
        %2885 = vmatprep.subr.mxu0 %v2148
        %2886 = vmatpush1.msra.mxu0 %v2147
        %2887 = vmatprep.subr.mxu0 %v2154
        %2888 = vmatpush1.msra.mxu0 %v2153
        %2889 = vmatprep.subr.mxu0 %v2160
        %2890 = vmatpush1.msra.mxu0 %v2159
        %2891 = vmatprep.subr.mxu0 %v2166
        %2892 = vmatpush1.msra.mxu0 %v2165
        %2893 = vmatprep.subr.mxu0 %v2172
        %2894 = vmatpush1.msra.mxu0 %v2171
        %2895 = vmatprep.subr.mxu0 %v2178
        %2896 = vmatpush1.msra.mxu0 %v2177
        %2897 = vmatprep.mubr.f32.mxu0 %v1950
        %2898 = vmatmul.mubr.f32.gmra.mrb[0].mxu0 %v1949
        %v2899 = vpop.f32.mrb[0].mxu0
        %v2900 = vadd.f32 %v2432, %v2899
        %v2901 = vpop.f32.mrb[0].mxu0
        %v2902 = vadd.f32 %v2432, %v2901
        %2903 = vmatprep.mubr.f32.mxu0 %v1955
        %2904 = vmatmul.mubr.f32.gmra.mrb[0].mxu0 %v1954
        %v2905 = vpop.f32.mrb[0].mxu0
        %v2906 = vadd.f32 %v2437, %v2905
        %v2907 = vpop.f32.mrb[0].mxu0
        %v2908 = vadd.f32 %v2437, %v2907
        %2909 = vmatprep.mubr.f32.mxu0 %v1960
        %2910 = vmatmul.mubr.f32.gmra.mrb[0].mxu0 %v1959
        %v2911 = vpop.f32.mrb[0].mxu0
        %v2912 = vadd.f32 %v2442, %v2911
        %v2913 = vpop.f32.mrb[0].mxu0
        %v2914 = vadd.f32 %v2442, %v2913
        %2915 = vmatprep.mubr.f32.mxu0 %v1965
        %2916 = vmatmul.mubr.f32.gmra.mrb[0].mxu0 %v1964
        %v2917 = vpop.f32.mrb[0].mxu0
        %v2918 = vadd.f32 %v2447, %v2917
        %v2919 = vpop.f32.mrb[0].mxu0
        %v2920 = vadd.f32 %v2447, %v2919
        %2921 = vmatprep.mubr.f32.mxu0 %v1970
        %2922 = vmatmul.mubr.f32.gmra.mrb[0].mxu0 %v1969
        %v2923 = vpop.f32.mrb[0].mxu0
        %v2924 = vadd.f32 %v2452, %v2923
        %v2925 = vpop.f32.mrb[0].mxu0
        %v2926 = vadd.f32 %v2452, %v2925
        %2927 = vmatprep.mubr.f32.mxu0 %v1975
        %2928 = vmatmul.mubr.f32.gmra.mrb[0].mxu0 %v1974
        %v2929 = vpop.f32.mrb[0].mxu0
        %v2930 = vadd.f32 %v2457, %v2929
        %v2931 = vpop.f32.mrb[0].mxu0
        %v2932 = vadd.f32 %v2457, %v2931
        %2933 = vmatprep.mubr.f32.mxu0 %v1980
        %2934 = vmatmul.mubr.f32.gmra.mrb[0].mxu0 %v1979
        %v2935 = vpop.f32.mrb[0].mxu0
        %v2936 = vadd.f32 %v2462, %v2935
        %v2937 = vpop.f32.mrb[0].mxu0
        %v2938 = vadd.f32 %v2462, %v2937
        %2939 = vmatprep.mubr.f32.mxu0 %v1985
        %2940 = vmatmul.mubr.f32.gmra.mrb[0].mxu0 %v1984
        %v2941 = vpop.f32.mrb[0].mxu0
        %v2942 = vadd.f32 %v2467, %v2941
        %v2943 = vpop.f32.mrb[0].mxu0
        %v2944 = vadd.f32 %v2467, %v2943
        %2945 = vdwg.mxu0
        %2946 = vmatprep.subr.mxu0 %v2184
        %2947 = vmatpush1.msra.mxu0 %v2183
        %2948 = vmatprep.subr.mxu0 %v2190
        %2949 = vmatpush1.msra.mxu0 %v2189
        %2950 = vmatprep.subr.mxu0 %v2196
        %2951 = vmatpush1.msra.mxu0 %v2195
        %2952 = vmatprep.subr.mxu0 %v2202
        %2953 = vmatpush1.msra.mxu0 %v2201
        %2954 = vmatprep.subr.mxu0 %v2208
        %2955 = vmatpush1.msra.mxu0 %v2207
        %2956 = vmatprep.subr.mxu0 %v2214
        %2957 = vmatpush1.msra.mxu0 %v2213
        %2958 = vmatprep.subr.mxu0 %v2220
        %2959 = vmatpush1.msra.mxu0 %v2219
        %2960 = vmatprep.subr.mxu0 %v2226
        %2961 = vmatpush1.msra.mxu0 %v2225
        %2962 = vmatprep.subr.mxu0 %v2232
        %2963 = vmatpush1.msra.mxu0 %v2231
        %2964 = vmatprep.subr.mxu0 %v2238
        %2965 = vmatpush1.msra.mxu0 %v2237
        %2966 = vmatprep.subr.mxu0 %v2244
        %2967 = vmatpush1.msra.mxu0 %v2243
        %2968 = vmatprep.subr.mxu0 %v2250
        %2969 = vmatpush1.msra.mxu0 %v2249
        %2970 = vmatprep.subr.mxu0 %v2256
        %2971 = vmatpush1.msra.mxu0 %v2255
        %2972 = vmatprep.subr.mxu0 %v2262
        %2973 = vmatpush1.msra.mxu0 %v2261
        %2974 = vmatprep.subr.mxu0 %v2268
        %2975 = vmatpush1.msra.mxu0 %v2267
        %2976 = vmatprep.subr.mxu0 %v2274
        %2977 = vmatpush1.msra.mxu0 %v2273
        %2978 = vmatprep.subr.mxu0 %v2280
        %2979 = vmatpush1.msra.mxu0 %v2279
        %2980 = vmatprep.subr.mxu0 %v2286
        %2981 = vmatpush1.msra.mxu0 %v2285
        %2982 = vmatprep.subr.mxu0 %v2292
        %2983 = vmatpush1.msra.mxu0 %v2291
        %2984 = vmatprep.subr.mxu0 %v2298
        %2985 = vmatpush1.msra.mxu0 %v2297
        %2986 = vmatprep.subr.mxu0 %v2304
        %2987 = vmatpush1.msra.mxu0 %v2303
        %2988 = vmatprep.subr.mxu0 %v2310
        %2989 = vmatpush1.msra.mxu0 %v2309
        %2990 = vmatprep.subr.mxu0 %v2316
        %2991 = vmatpush1.msra.mxu0 %v2315
        %2992 = vmatprep.subr.mxu0 %v2322
        %2993 = vmatpush1.msra.mxu0 %v2321
        %2994 = vmatprep.subr.mxu0 %v2328
        %2995 = vmatpush1.msra.mxu0 %v2327
        %2996 = vmatprep.subr.mxu0 %v2334
        %2997 = vmatpush1.msra.mxu0 %v2333
        %2998 = vmatprep.subr.mxu0 %v2340
        %2999 = vmatpush1.msra.mxu0 %v2339
        %3000 = vmatprep.subr.mxu0 %v2346
        %3001 = vmatpush1.msra.mxu0 %v2345
        %3002 = vmatprep.subr.mxu0 %v2352
        %3003 = vmatpush1.msra.mxu0 %v2351
        %3004 = vmatprep.subr.mxu0 %v2358
        %3005 = vmatpush1.msra.mxu0 %v2357
        %3006 = vmatprep.subr.mxu0 %v2364
        %3007 = vmatpush1.msra.mxu0 %v2363
        %3008 = vmatprep.subr.mxu0 %v2370
        %3009 = vmatpush1.msra.mxu0 %v2369
        %3010 = vmatprep.mubr.f32.mxu0 %v1952
        %3011 = vmatmul.mubr.f32.gmra.mrb[0].mxu0 %v1951
        %v3012 = vpop.f32.mrb[0].mxu0
        %v3013 = vadd.f32 %v2900, %v3012
        %v3014 = vpop.f32.mrb[0].mxu0
        %v3015 = vadd.f32 %v2902, %v3014
        %3016 = vmatprep.mubr.f32.mxu0 %v1957
        %3017 = vmatmul.mubr.f32.gmra.mrb[0].mxu0 %v1956
        %v3018 = vpop.f32.mrb[0].mxu0
        %v3019 = vadd.f32 %v2906, %v3018
        %v3020 = vpop.f32.mrb[0].mxu0
        %v3021 = vadd.f32 %v2908, %v3020
        %3022 = vmatprep.mubr.f32.mxu0 %v1962
        %3023 = vmatmul.mubr.f32.gmra.mrb[0].mxu0 %v1961
        %v3024 = vpop.f32.mrb[0].mxu0
        %v3025 = vadd.f32 %v2912, %v3024
        %v3026 = vpop.f32.mrb[0].mxu0
        %v3027 = vadd.f32 %v2914, %v3026
        %3028 = vmatprep.mubr.f32.mxu0 %v1967
        %3029 = vmatmul.mubr.f32.gmra.mrb[0].mxu0 %v1966
        %v3030 = vpop.f32.mrb[0].mxu0
        %v3031 = vadd.f32 %v2918, %v3030
        %v3032 = vpop.f32.mrb[0].mxu0
        %v3033 = vadd.f32 %v2920, %v3032
        %3034 = vmatprep.mubr.f32.mxu0 %v1972
        %3035 = vmatmul.mubr.f32.gmra.mrb[0].mxu0 %v1971
        %v3036 = vpop.f32.mrb[0].mxu0
        %v3037 = vadd.f32 %v2924, %v3036
        %v3038 = vpop.f32.mrb[0].mxu0
        %v3039 = vadd.f32 %v2926, %v3038
        %3040 = vmatprep.mubr.f32.mxu0 %v1977
        %3041 = vmatmul.mubr.f32.gmra.mrb[0].mxu0 %v1976
        %v3042 = vpop.f32.mrb[0].mxu0
        %v3043 = vadd.f32 %v2930, %v3042
        %v3044 = vpop.f32.mrb[0].mxu0
        %v3045 = vadd.f32 %v2932, %v3044
        %3046 = vmatprep.mubr.f32.mxu0 %v1982
        %3047 = vmatmul.mubr.f32.gmra.mrb[0].mxu0 %v1981
        %v3048 = vpop.f32.mrb[0].mxu0
        %v3049 = vadd.f32 %v2936, %v3048
        %v3050 = vpop.f32.mrb[0].mxu0
        %v3051 = vadd.f32 %v2938, %v3050
        %3052 = vmatprep.mubr.f32.mxu0 %v1987
        %3053 = vmatmul.mubr.f32.gmra.mrb[0].mxu0 %v1986
        %v3054 = vpop.f32.mrb[0].mxu0
        %v3055 = vadd.f32 %v2942, %v3054
        %v3056 = vpop.f32.mrb[0].mxu0
        %v3057 = vadd.f32 %v2944, %v3056
        %3058 = vdwg.mxu0
        %3059 = vmatprep.subr.mxu0 %v2376
        %3060 = vmatpush1.msra.mxu0 %v2375
        %3061 = vmatprep.subr.mxu0 %v2382
        %3062 = vmatpush1.msra.mxu0 %v2381
        %3063 = vmatprep.subr.mxu0 %v2388
        %3064 = vmatpush1.msra.mxu0 %v2387
        %3065 = vmatprep.subr.mxu0 %v2394
        %3066 = vmatpush1.msra.mxu0 %v2393
        %3067 = vmatprep.subr.mxu0 %v2400
        %3068 = vmatpush1.msra.mxu0 %v2399
        %3069 = vmatprep.subr.mxu0 %v2406
        %3070 = vmatpush1.msra.mxu0 %v2405
        %3071 = vmatprep.subr.mxu0 %v2412
        %3072 = vmatpush1.msra.mxu0 %v2411
        %3073 = vmatprep.subr.mxu0 %v2418
        %3074 = vmatpush1.msra.mxu0 %v2417
        %3075 = vmatprep.subr.mxu0 0.0
        %3076 = vmatpush1.msra.mxu0 0.0
        %3077 = vmatprep.subr.mxu0 0.0
        %3078 = vmatpush1.msra.mxu0 0.0
        %3079 = vmatprep.subr.mxu0 0.0
        %3080 = vmatpush1.msra.mxu0 0.0
        %3081 = vmatprep.subr.mxu0 0.0
        %3082 = vmatpush1.msra.mxu0 0.0
        %3083 = vmatprep.subr.mxu0 0.0
        %3084 = vmatpush1.msra.mxu0 0.0
        %3085 = vmatprep.subr.mxu0 0.0
        %3086 = vmatpush1.msra.mxu0 0.0
        %3087 = vmatprep.subr.mxu0 0.0
        %3088 = vmatpush1.msra.mxu0 0.0
        %3089 = vmatprep.subr.mxu0 0.0
        %3090 = vmatpush1.msra.mxu0 0.0
        %3091 = vmatprep.subr.mxu0 0.0
        %3092 = vmatpush1.msra.mxu0 0.0
        %3093 = vmatprep.subr.mxu0 0.0
        %3094 = vmatpush1.msra.mxu0 0.0
        %3095 = vmatprep.subr.mxu0 0.0
        %3096 = vmatpush1.msra.mxu0 0.0
        %3097 = vmatprep.subr.mxu0 0.0
        %3098 = vmatpush1.msra.mxu0 0.0
        %3099 = vmatprep.subr.mxu0 0.0
        %3100 = vmatpush1.msra.mxu0 0.0
        %3101 = vmatprep.subr.mxu0 0.0
        %3102 = vmatpush1.msra.mxu0 0.0
        %3103 = vmatprep.subr.mxu0 0.0
        %3104 = vmatpush1.msra.mxu0 0.0
        %3105 = vmatprep.subr.mxu0 0.0
        %3106 = vmatpush1.msra.mxu0 0.0
        %3107 = vmatprep.subr.mxu0 0.0
        %3108 = vmatpush1.msra.mxu0 0.0
        %3109 = vmatprep.subr.mxu0 0.0
        %3110 = vmatpush1.msra.mxu0 0.0
        %3111 = vmatprep.subr.mxu0 0.0
        %3112 = vmatpush1.msra.mxu0 0.0
        %3113 = vmatprep.subr.mxu0 0.0
        %3114 = vmatpush1.msra.mxu0 0.0
        %3115 = vmatprep.subr.mxu0 0.0
        %3116 = vmatpush1.msra.mxu0 0.0
        %3117 = vmatprep.subr.mxu0 0.0
        %3118 = vmatpush1.msra.mxu0 0.0
        %3119 = vmatprep.subr.mxu0 0.0
        %3120 = vmatpush1.msra.mxu0 0.0
        %3121 = vmatprep.subr.mxu0 0.0
        %3122 = vmatpush1.msra.mxu0 0.0
        %3123 = vmatprep.mubr.f32.mxu0 0.0
        %3124 = vmatmul.mubr.f32.gmra.mrb[0].mxu0 %v2471
        %v3125 = vpop.f32.mrb[0].mxu0
        %v3126 = vadd.f32 %v3013, %v3125
        %v3127 = vpop.f32.mrb[0].mxu0
        %v3128 = vadd.f32 %v3015, %v3127
        %3129 = vmatprep.mubr.f32.mxu0 0.0
        %3130 = vmatmul.mubr.f32.gmra.mrb[0].mxu0 %v2474
        %v3131 = vpop.f32.mrb[0].mxu0
        %v3132 = vadd.f32 %v3019, %v3131
        %v3133 = vpop.f32.mrb[0].mxu0
        %v3134 = vadd.f32 %v3021, %v3133
        %3135 = vmatprep.mubr.f32.mxu0 0.0
        %3136 = vmatmul.mubr.f32.gmra.mrb[0].mxu0 %v2477
        %v3137 = vpop.f32.mrb[0].mxu0
        %v3138 = vadd.f32 %v3025, %v3137
        %v3139 = vpop.f32.mrb[0].mxu0
        %v3140 = vadd.f32 %v3027, %v3139
        %3141 = vmatprep.mubr.f32.mxu0 0.0
        %3142 = vmatmul.mubr.f32.gmra.mrb[0].mxu0 %v2480
        %v3143 = vpop.f32.mrb[0].mxu0
        %v3144 = vadd.f32 %v3031, %v3143
        %v3145 = vpop.f32.mrb[0].mxu0
        %v3146 = vadd.f32 %v3033, %v3145
        %3147 = vmatprep.mubr.f32.mxu0 0.0
        %3148 = vmatmul.mubr.f32.gmra.mrb[0].mxu0 %v2483
        %v3149 = vpop.f32.mrb[0].mxu0
        %v3150 = vadd.f32 %v3037, %v3149
        %v3151 = vpop.f32.mrb[0].mxu0
        %v3152 = vadd.f32 %v3039, %v3151
        %3153 = vmatprep.mubr.f32.mxu0 0.0
        %3154 = vmatmul.mubr.f32.gmra.mrb[0].mxu0 %v2486
        %v3155 = vpop.f32.mrb[0].mxu0
        %v3156 = vadd.f32 %v3043, %v3155
        %v3157 = vpop.f32.mrb[0].mxu0
        %v3158 = vadd.f32 %v3045, %v3157
        %3159 = vmatprep.mubr.f32.mxu0 0.0
        %3160 = vmatmul.mubr.f32.gmra.mrb[0].mxu0 %v2489
        %v3161 = vpop.f32.mrb[0].mxu0
        %v3162 = vadd.f32 %v3049, %v3161
        %v3163 = vpop.f32.mrb[0].mxu0
        %v3164 = vadd.f32 %v3051, %v3163
        %3165 = vmatprep.mubr.f32.mxu0 0.0
        %3166 = vmatmul.mubr.f32.gmra.mrb[0].mxu0 %v2492
        %v3167 = vpop.f32.mrb[0].mxu0
        %v3168 = vadd.f32 %v3055, %v3167
        %v3169 = vpop.f32.mrb[0].mxu0
        %v3170 = vadd.f32 %v3057, %v3169
        %3171 = vdwg.mxu0
        %3172 = vmatprep.subr.mxu0 %v1994
        %3173 = vmatpush1.msra.mxu0 %v1993
        %3174 = vmatprep.subr.mxu0 %v2000
        %3175 = vmatpush1.msra.mxu0 %v1999
        %3176 = vmatprep.subr.mxu0 %v2006
        %3177 = vmatpush1.msra.mxu0 %v2005
        %3178 = vmatprep.subr.mxu0 %v2012
        %3179 = vmatpush1.msra.mxu0 %v2011
        %3180 = vmatprep.subr.mxu0 %v2018
        %3181 = vmatpush1.msra.mxu0 %v2017
        %3182 = vmatprep.subr.mxu0 %v2024
        %3183 = vmatpush1.msra.mxu0 %v2023
        %3184 = vmatprep.subr.mxu0 %v2030
        %3185 = vmatpush1.msra.mxu0 %v2029
        %3186 = vmatprep.subr.mxu0 %v2036
        %3187 = vmatpush1.msra.mxu0 %v2035
        %3188 = vmatprep.subr.mxu0 %v2042
        %3189 = vmatpush1.msra.mxu0 %v2041
        %3190 = vmatprep.subr.mxu0 %v2048
        %3191 = vmatpush1.msra.mxu0 %v2047
        %3192 = vmatprep.subr.mxu0 %v2054
        %3193 = vmatpush1.msra.mxu0 %v2053
        %3194 = vmatprep.subr.mxu0 %v2060
        %3195 = vmatpush1.msra.mxu0 %v2059
        %3196 = vmatprep.subr.mxu0 %v2066
        %3197 = vmatpush1.msra.mxu0 %v2065
        %3198 = vmatprep.subr.mxu0 %v2072
        %3199 = vmatpush1.msra.mxu0 %v2071
        %3200 = vmatprep.subr.mxu0 %v2078
        %3201 = vmatpush1.msra.mxu0 %v2077
        %3202 = vmatprep.subr.mxu0 %v2084
        %3203 = vmatpush1.msra.mxu0 %v2083
        %3204 = vmatprep.subr.mxu0 %v2090
        %3205 = vmatpush1.msra.mxu0 %v2089
        %3206 = vmatprep.subr.mxu0 %v2096
        %3207 = vmatpush1.msra.mxu0 %v2095
        %3208 = vmatprep.subr.mxu0 %v2102
        %3209 = vmatpush1.msra.mxu0 %v2101
        %3210 = vmatprep.subr.mxu0 %v2108
        %3211 = vmatpush1.msra.mxu0 %v2107
        %3212 = vmatprep.subr.mxu0 %v2114
        %3213 = vmatpush1.msra.mxu0 %v2113
        %3214 = vmatprep.subr.mxu0 %v2120
        %3215 = vmatpush1.msra.mxu0 %v2119
        %3216 = vmatprep.subr.mxu0 %v2126
        %3217 = vmatpush1.msra.mxu0 %v2125
        %3218 = vmatprep.subr.mxu0 %v2132
        %3219 = vmatpush1.msra.mxu0 %v2131
        %3220 = vmatprep.subr.mxu0 %v2138
        %3221 = vmatpush1.msra.mxu0 %v2137
        %3222 = vmatprep.subr.mxu0 %v2144
        %3223 = vmatpush1.msra.mxu0 %v2143
        %3224 = vmatprep.subr.mxu0 %v2150
        %3225 = vmatpush1.msra.mxu0 %v2149
        %3226 = vmatprep.subr.mxu0 %v2156
        %3227 = vmatpush1.msra.mxu0 %v2155
        %3228 = vmatprep.subr.mxu0 %v2162
        %3229 = vmatpush1.msra.mxu0 %v2161
        %3230 = vmatprep.subr.mxu0 %v2168
        %3231 = vmatpush1.msra.mxu0 %v2167
        %3232 = vmatprep.subr.mxu0 %v2174
        %3233 = vmatpush1.msra.mxu0 %v2173
        %3234 = vmatprep.subr.mxu0 %v2180
        %3235 = vmatpush1.msra.mxu0 %v2179
        %3236 = vmatprep.mubr.f32.mxu0 %v1950
        %3237 = vmatmul.mubr.f32.gmra.mrb[0].mxu0 %v1949
        %v3238 = vpop.f32.mrb[0].mxu0
        %v3239 = vadd.f32 %v2432, %v3238
        %v3240 = vpop.f32.mrb[0].mxu0
        %v3241 = vadd.f32 %v2432, %v3240
        %3242 = vmatprep.mubr.f32.mxu0 %v1955
        %3243 = vmatmul.mubr.f32.gmra.mrb[0].mxu0 %v1954
        %v3244 = vpop.f32.mrb[0].mxu0
        %v3245 = vadd.f32 %v2437, %v3244
        %v3246 = vpop.f32.mrb[0].mxu0
        %v3247 = vadd.f32 %v2437, %v3246
        %3248 = vmatprep.mubr.f32.mxu0 %v1960
        %3249 = vmatmul.mubr.f32.gmra.mrb[0].mxu0 %v1959
        %v3250 = vpop.f32.mrb[0].mxu0
        %v3251 = vadd.f32 %v2442, %v3250
        %v3252 = vpop.f32.mrb[0].mxu0
        %v3253 = vadd.f32 %v2442, %v3252
        %3254 = vmatprep.mubr.f32.mxu0 %v1965
        %3255 = vmatmul.mubr.f32.gmra.mrb[0].mxu0 %v1964
        %v3256 = vpop.f32.mrb[0].mxu0
        %v3257 = vadd.f32 %v2447, %v3256
        %v3258 = vpop.f32.mrb[0].mxu0
        %v3259 = vadd.f32 %v2447, %v3258
        %3260 = vmatprep.mubr.f32.mxu0 %v1970
        %3261 = vmatmul.mubr.f32.gmra.mrb[0].mxu0 %v1969
        %v3262 = vpop.f32.mrb[0].mxu0
        %v3263 = vadd.f32 %v2452, %v3262
        %v3264 = vpop.f32.mrb[0].mxu0
        %v3265 = vadd.f32 %v2452, %v3264
        %3266 = vmatprep.mubr.f32.mxu0 %v1975
        %3267 = vmatmul.mubr.f32.gmra.mrb[0].mxu0 %v1974
        %v3268 = vpop.f32.mrb[0].mxu0
        %v3269 = vadd.f32 %v2457, %v3268
        %v3270 = vpop.f32.mrb[0].mxu0
        %v3271 = vadd.f32 %v2457, %v3270
        %3272 = vmatprep.mubr.f32.mxu0 %v1980
        %3273 = vmatmul.mubr.f32.gmra.mrb[0].mxu0 %v1979
        %v3274 = vpop.f32.mrb[0].mxu0
        %v3275 = vadd.f32 %v2462, %v3274
        %v3276 = vpop.f32.mrb[0].mxu0
        %v3277 = vadd.f32 %v2462, %v3276
        %3278 = vmatprep.mubr.f32.mxu0 %v1985
        %3279 = vmatmul.mubr.f32.gmra.mrb[0].mxu0 %v1984
        %v3280 = vpop.f32.mrb[0].mxu0
        %v3281 = vadd.f32 %v2467, %v3280
        %v3282 = vpop.f32.mrb[0].mxu0
        %v3283 = vadd.f32 %v2467, %v3282
        %3284 = vdwg.mxu0
        %3285 = vmatprep.subr.mxu0 %v2186
        %3286 = vmatpush1.msra.mxu0 %v2185
        %3287 = vmatprep.subr.mxu0 %v2192
        %3288 = vmatpush1.msra.mxu0 %v2191
        %3289 = vmatprep.subr.mxu0 %v2198
        %3290 = vmatpush1.msra.mxu0 %v2197
        %3291 = vmatprep.subr.mxu0 %v2204
        %3292 = vmatpush1.msra.mxu0 %v2203
        %3293 = vmatprep.subr.mxu0 %v2210
        %3294 = vmatpush1.msra.mxu0 %v2209
        %3295 = vmatprep.subr.mxu0 %v2216
        %3296 = vmatpush1.msra.mxu0 %v2215
        %3297 = vmatprep.subr.mxu0 %v2222
        %3298 = vmatpush1.msra.mxu0 %v2221
        %3299 = vmatprep.subr.mxu0 %v2228
        %3300 = vmatpush1.msra.mxu0 %v2227
        %3301 = vmatprep.subr.mxu0 %v2234
        %3302 = vmatpush1.msra.mxu0 %v2233
        %3303 = vmatprep.subr.mxu0 %v2240
        %3304 = vmatpush1.msra.mxu0 %v2239
        %3305 = vmatprep.subr.mxu0 %v2246
        %3306 = vmatpush1.msra.mxu0 %v2245
        %3307 = vmatprep.subr.mxu0 %v2252
        %3308 = vmatpush1.msra.mxu0 %v2251
        %3309 = vmatprep.subr.mxu0 %v2258
        %3310 = vmatpush1.msra.mxu0 %v2257
        %3311 = vmatprep.subr.mxu0 %v2264
        %3312 = vmatpush1.msra.mxu0 %v2263
        %3313 = vmatprep.subr.mxu0 %v2270
        %3314 = vmatpush1.msra.mxu0 %v2269
        %3315 = vmatprep.subr.mxu0 %v2276
        %3316 = vmatpush1.msra.mxu0 %v2275
        %3317 = vmatprep.subr.mxu0 %v2282
        %3318 = vmatpush1.msra.mxu0 %v2281
        %3319 = vmatprep.subr.mxu0 %v2288
        %3320 = vmatpush1.msra.mxu0 %v2287
        %3321 = vmatprep.subr.mxu0 %v2294
        %3322 = vmatpush1.msra.mxu0 %v2293
        %3323 = vmatprep.subr.mxu0 %v2300
        %3324 = vmatpush1.msra.mxu0 %v2299
        %3325 = vmatprep.subr.mxu0 %v2306
        %3326 = vmatpush1.msra.mxu0 %v2305
        %3327 = vmatprep.subr.mxu0 %v2312
        %3328 = vmatpush1.msra.mxu0 %v2311
        %3329 = vmatprep.subr.mxu0 %v2318
        %3330 = vmatpush1.msra.mxu0 %v2317
        %3331 = vmatprep.subr.mxu0 %v2324
        %3332 = vmatpush1.msra.mxu0 %v2323
        %3333 = vmatprep.subr.mxu0 %v2330
        %3334 = vmatpush1.msra.mxu0 %v2329
        %3335 = vmatprep.subr.mxu0 %v2336
        %3336 = vmatpush1.msra.mxu0 %v2335
        %3337 = vmatprep.subr.mxu0 %v2342
        %3338 = vmatpush1.msra.mxu0 %v2341
        %3339 = vmatprep.subr.mxu0 %v2348
        %3340 = vmatpush1.msra.mxu0 %v2347
        %3341 = vmatprep.subr.mxu0 %v2354
        %3342 = vmatpush1.msra.mxu0 %v2353
        %3343 = vmatprep.subr.mxu0 %v2360
        %3344 = vmatpush1.msra.mxu0 %v2359
        %3345 = vmatprep.subr.mxu0 %v2366
        %3346 = vmatpush1.msra.mxu0 %v2365
        %3347 = vmatprep.subr.mxu0 %v2372
        %3348 = vmatpush1.msra.mxu0 %v2371
        %3349 = vmatprep.mubr.f32.mxu0 %v1952
        %3350 = vmatmul.mubr.f32.gmra.mrb[0].mxu0 %v1951
        %v3351 = vpop.f32.mrb[0].mxu0
        %v3352 = vadd.f32 %v3239, %v3351
        %v3353 = vpop.f32.mrb[0].mxu0
        %v3354 = vadd.f32 %v3241, %v3353
        %3355 = vmatprep.mubr.f32.mxu0 %v1957
        %3356 = vmatmul.mubr.f32.gmra.mrb[0].mxu0 %v1956
        %v3357 = vpop.f32.mrb[0].mxu0
        %v3358 = vadd.f32 %v3245, %v3357
        %v3359 = vpop.f32.mrb[0].mxu0
        %v3360 = vadd.f32 %v3247, %v3359
        %3361 = vmatprep.mubr.f32.mxu0 %v1962
        %3362 = vmatmul.mubr.f32.gmra.mrb[0].mxu0 %v1961
        %v3363 = vpop.f32.mrb[0].mxu0
        %v3364 = vadd.f32 %v3251, %v3363
        %v3365 = vpop.f32.mrb[0].mxu0
        %v3366 = vadd.f32 %v3253, %v3365
        %3367 = vmatprep.mubr.f32.mxu0 %v1967
        %3368 = vmatmul.mubr.f32.gmra.mrb[0].mxu0 %v1966
        %v3369 = vpop.f32.mrb[0].mxu0
        %v3370 = vadd.f32 %v3257, %v3369
        %v3371 = vpop.f32.mrb[0].mxu0
        %v3372 = vadd.f32 %v3259, %v3371
        %3373 = vmatprep.mubr.f32.mxu0 %v1972
        %3374 = vmatmul.mubr.f32.gmra.mrb[0].mxu0 %v1971
        %v3375 = vpop.f32.mrb[0].mxu0
        %v3376 = vadd.f32 %v3263, %v3375
        %v3377 = vpop.f32.mrb[0].mxu0
        %v3378 = vadd.f32 %v3265, %v3377
        %3379 = vmatprep.mubr.f32.mxu0 %v1977
        %3380 = vmatmul.mubr.f32.gmra.mrb[0].mxu0 %v1976
        %v3381 = vpop.f32.mrb[0].mxu0
        %v3382 = vadd.f32 %v3269, %v3381
        %v3383 = vpop.f32.mrb[0].mxu0
        %v3384 = vadd.f32 %v3271, %v3383
        %3385 = vmatprep.mubr.f32.mxu0 %v1982
        %3386 = vmatmul.mubr.f32.gmra.mrb[0].mxu0 %v1981
        %v3387 = vpop.f32.mrb[0].mxu0
        %v3388 = vadd.f32 %v3275, %v3387
        %v3389 = vpop.f32.mrb[0].mxu0
        %v3390 = vadd.f32 %v3277, %v3389
        %3391 = vmatprep.mubr.f32.mxu0 %v1987
        %3392 = vmatmul.mubr.f32.gmra.mrb[0].mxu0 %v1986
        %v3393 = vpop.f32.mrb[0].mxu0
        %v3394 = vadd.f32 %v3281, %v3393
        %v3395 = vpop.f32.mrb[0].mxu0
        %v3396 = vadd.f32 %v3283, %v3395
        %3397 = vdwg.mxu0
        %3398 = vmatprep.subr.mxu0 %v2378
        %3399 = vmatpush1.msra.mxu0 %v2377
        %3400 = vmatprep.subr.mxu0 %v2384
        %3401 = vmatpush1.msra.mxu0 %v2383
        %3402 = vmatprep.subr.mxu0 %v2390
        %3403 = vmatpush1.msra.mxu0 %v2389
        %3404 = vmatprep.subr.mxu0 %v2396
        %3405 = vmatpush1.msra.mxu0 %v2395
        %3406 = vmatprep.subr.mxu0 %v2402
        %3407 = vmatpush1.msra.mxu0 %v2401
        %3408 = vmatprep.subr.mxu0 %v2408
        %3409 = vmatpush1.msra.mxu0 %v2407
        %3410 = vmatprep.subr.mxu0 %v2414
        %3411 = vmatpush1.msra.mxu0 %v2413
        %3412 = vmatprep.subr.mxu0 %v2420
        %3413 = vmatpush1.msra.mxu0 %v2419
        %3414 = vmatprep.subr.mxu0 0.0
        %3415 = vmatpush1.msra.mxu0 0.0
        %3416 = vmatprep.subr.mxu0 0.0
        %3417 = vmatpush1.msra.mxu0 0.0
        %3418 = vmatprep.subr.mxu0 0.0
        %3419 = vmatpush1.msra.mxu0 0.0
        %3420 = vmatprep.subr.mxu0 0.0
        %3421 = vmatpush1.msra.mxu0 0.0
        %3422 = vmatprep.subr.mxu0 0.0
        %3423 = vmatpush1.msra.mxu0 0.0
        %3424 = vmatprep.subr.mxu0 0.0
        %3425 = vmatpush1.msra.mxu0 0.0
        %3426 = vmatprep.subr.mxu0 0.0
        %3427 = vmatpush1.msra.mxu0 0.0
        %3428 = vmatprep.subr.mxu0 0.0
        %3429 = vmatpush1.msra.mxu0 0.0
        %3430 = vmatprep.subr.mxu0 0.0
        %3431 = vmatpush1.msra.mxu0 0.0
        %3432 = vmatprep.subr.mxu0 0.0
        %3433 = vmatpush1.msra.mxu0 0.0
        %3434 = vmatprep.subr.mxu0 0.0
        %3435 = vmatpush1.msra.mxu0 0.0
        %3436 = vmatprep.subr.mxu0 0.0
        %3437 = vmatpush1.msra.mxu0 0.0
        %3438 = vmatprep.subr.mxu0 0.0
        %3439 = vmatpush1.msra.mxu0 0.0
        %3440 = vmatprep.subr.mxu0 0.0
        %3441 = vmatpush1.msra.mxu0 0.0
        %3442 = vmatprep.subr.mxu0 0.0
        %3443 = vmatpush1.msra.mxu0 0.0
        %3444 = vmatprep.subr.mxu0 0.0
        %3445 = vmatpush1.msra.mxu0 0.0
        %3446 = vmatprep.subr.mxu0 0.0
        %3447 = vmatpush1.msra.mxu0 0.0
        %3448 = vmatprep.subr.mxu0 0.0
        %3449 = vmatpush1.msra.mxu0 0.0
        %3450 = vmatprep.subr.mxu0 0.0
        %3451 = vmatpush1.msra.mxu0 0.0
        %3452 = vmatprep.subr.mxu0 0.0
        %3453 = vmatpush1.msra.mxu0 0.0
        %3454 = vmatprep.subr.mxu0 0.0
        %3455 = vmatpush1.msra.mxu0 0.0
        %3456 = vmatprep.subr.mxu0 0.0
        %3457 = vmatpush1.msra.mxu0 0.0
        %3458 = vmatprep.subr.mxu0 0.0
        %3459 = vmatpush1.msra.mxu0 0.0
        %3460 = vmatprep.subr.mxu0 0.0
        %3461 = vmatpush1.msra.mxu0 0.0
        %3462 = vmatprep.mubr.f32.mxu0 0.0
        %3463 = vmatmul.mubr.f32.gmra.mrb[0].mxu0 %v2471
        %v3464 = vpop.f32.mrb[0].mxu0
        %v3465 = vadd.f32 %v3352, %v3464
        %v3466 = vpop.f32.mrb[0].mxu0
        %v3467 = vadd.f32 %v3354, %v3466
        %3468 = vmatprep.mubr.f32.mxu0 0.0
        %3469 = vmatmul.mubr.f32.gmra.mrb[0].mxu0 %v2474
        %v3470 = vpop.f32.mrb[0].mxu0
        %v3471 = vadd.f32 %v3358, %v3470
        %v3472 = vpop.f32.mrb[0].mxu0
        %v3473 = vadd.f32 %v3360, %v3472
        %3474 = vmatprep.mubr.f32.mxu0 0.0
        %3475 = vmatmul.mubr.f32.gmra.mrb[0].mxu0 %v2477
        %v3476 = vpop.f32.mrb[0].mxu0
        %v3477 = vadd.f32 %v3364, %v3476
        %v3478 = vpop.f32.mrb[0].mxu0
        %v3479 = vadd.f32 %v3366, %v3478
        %3480 = vmatprep.mubr.f32.mxu0 0.0
        %3481 = vmatmul.mubr.f32.gmra.mrb[0].mxu0 %v2480
        %v3482 = vpop.f32.mrb[0].mxu0
        %v3483 = vadd.f32 %v3370, %v3482
        %v3484 = vpop.f32.mrb[0].mxu0
        %v3485 = vadd.f32 %v3372, %v3484
        %3486 = vmatprep.mubr.f32.mxu0 0.0
        %3487 = vmatmul.mubr.f32.gmra.mrb[0].mxu0 %v2483
        %v3488 = vpop.f32.mrb[0].mxu0
        %v3489 = vadd.f32 %v3376, %v3488
        %v3490 = vpop.f32.mrb[0].mxu0
        %v3491 = vadd.f32 %v3378, %v3490
        %3492 = vmatprep.mubr.f32.mxu0 0.0
        %3493 = vmatmul.mubr.f32.gmra.mrb[0].mxu0 %v2486
        %v3494 = vpop.f32.mrb[0].mxu0
        %v3495 = vadd.f32 %v3382, %v3494
        %v3496 = vpop.f32.mrb[0].mxu0
        %v3497 = vadd.f32 %v3384, %v3496
        %3498 = vmatprep.mubr.f32.mxu0 0.0
        %3499 = vmatmul.mubr.f32.gmra.mrb[0].mxu0 %v2489
        %v3500 = vpop.f32.mrb[0].mxu0
        %v3501 = vadd.f32 %v3388, %v3500
        %v3502 = vpop.f32.mrb[0].mxu0
        %v3503 = vadd.f32 %v3390, %v3502
        %3504 = vmatprep.mubr.f32.mxu0 0.0
        %3505 = vmatmul.mubr.f32.gmra.mrb[0].mxu0 %v2492
        %v3506 = vpop.f32.mrb[0].mxu0
        %v3507 = vadd.f32 %v3394, %v3506
        %v3508 = vpop.f32.mrb[0].mxu0
        %v3509 = vadd.f32 %v3396, %v3508
        %3510 = vdwg.mxu0
        %vm3511 = vcmp.ge.f32.partialorder %v2787, 0.0
        %vm3512 = vcmp.ge.f32.partialorder %v2789, 0.0
        %vm3513 = vcmp.ge.f32.partialorder %v3126, 0.0
        %vm3514 = vcmp.ge.f32.partialorder %v3128, 0.0
        %vm3515 = vcmp.ge.f32.partialorder %v3465, 0.0
        %vm3516 = vcmp.ge.f32.partialorder %v3467, 0.0
        %vm3517 = vcmp.ge.f32.partialorder %v2793, 0.0
        %vm3518 = vcmp.ge.f32.partialorder %v2795, 0.0
        %vm3519 = vcmp.ge.f32.partialorder %v3132, 0.0
        %vm3520 = vcmp.ge.f32.partialorder %v3134, 0.0
        %vm3521 = vcmp.ge.f32.partialorder %v3471, 0.0
        %vm3522 = vcmp.ge.f32.partialorder %v3473, 0.0
        %vm3523 = vcmp.ge.f32.partialorder %v2799, 0.0
        %vm3524 = vcmp.ge.f32.partialorder %v2801, 0.0
        %vm3525 = vcmp.ge.f32.partialorder %v3138, 0.0
        %vm3526 = vcmp.ge.f32.partialorder %v3140, 0.0
        %vm3527 = vcmp.ge.f32.partialorder %v3477, 0.0
        %vm3528 = vcmp.ge.f32.partialorder %v3479, 0.0
        %vm3529 = vcmp.ge.f32.partialorder %v2805, 0.0
        %vm3530 = vcmp.ge.f32.partialorder %v2807, 0.0
        %vm3531 = vcmp.ge.f32.partialorder %v3144, 0.0
        %vm3532 = vcmp.ge.f32.partialorder %v3146, 0.0
        %vm3533 = vcmp.ge.f32.partialorder %v3483, 0.0
        %vm3534 = vcmp.ge.f32.partialorder %v3485, 0.0
        %vm3535 = vcmp.ge.f32.partialorder %v2811, 0.0
        %vm3536 = vcmp.ge.f32.partialorder %v2813, 0.0
        %vm3537 = vcmp.ge.f32.partialorder %v3150, 0.0
        %vm3538 = vcmp.ge.f32.partialorder %v3152, 0.0
        %vm3539 = vcmp.ge.f32.partialorder %v3489, 0.0
        %vm3540 = vcmp.ge.f32.partialorder %v3491, 0.0
        %vm3541 = vcmp.ge.f32.partialorder %v2817, 0.0
        %vm3542 = vcmp.ge.f32.partialorder %v2819, 0.0
        %vm3543 = vcmp.ge.f32.partialorder %v3156, 0.0
        %vm3544 = vcmp.ge.f32.partialorder %v3158, 0.0
        %vm3545 = vcmp.ge.f32.partialorder %v3495, 0.0
        %vm3546 = vcmp.ge.f32.partialorder %v3497, 0.0
        %vm3547 = vcmp.ge.f32.partialorder %v2823, 0.0
        %vm3548 = vcmp.ge.f32.partialorder %v2825, 0.0
        %vm3549 = vcmp.ge.f32.partialorder %v3162, 0.0
        %vm3550 = vcmp.ge.f32.partialorder %v3164, 0.0
        %vm3551 = vcmp.ge.f32.partialorder %v3501, 0.0
        %vm3552 = vcmp.ge.f32.partialorder %v3503, 0.0
        %vm3553 = vcmp.ge.f32.partialorder %v2829, 0.0
        %vm3554 = vcmp.ge.f32.partialorder %v2831, 0.0
        %vm3555 = vcmp.ge.f32.partialorder %v3168, 0.0
        %vm3556 = vcmp.ge.f32.partialorder %v3170, 0.0
        %vm3557 = vcmp.ge.f32.partialorder %v3507, 0.0
        %vm3558 = vcmp.ge.f32.partialorder %v3509, 0.0
        %v3559 = vmul.f32 %v2787, 0.2
        %v3560 = vmul.f32 %v2789, 0.2
        %v3561 = vmul.f32 %v3126, 0.2
        %v3562 = vmul.f32 %v3128, 0.2
        %v3563 = vmul.f32 %v3465, 0.2
        %v3564 = vmul.f32 %v3467, 0.2
        %v3565 = vmul.f32 %v2793, 0.2
        %v3566 = vmul.f32 %v2795, 0.2
        %v3567 = vmul.f32 %v3132, 0.2
        %v3568 = vmul.f32 %v3134, 0.2
        %v3569 = vmul.f32 %v3471, 0.2
        %v3570 = vmul.f32 %v3473, 0.2
        %v3571 = vmul.f32 %v2799, 0.2
        %v3572 = vmul.f32 %v2801, 0.2
        %v3573 = vmul.f32 %v3138, 0.2
        %v3574 = vmul.f32 %v3140, 0.2
        %v3575 = vmul.f32 %v3477, 0.2
        %v3576 = vmul.f32 %v3479, 0.2
        %v3577 = vmul.f32 %v2805, 0.2
        %v3578 = vmul.f32 %v2807, 0.2
        %v3579 = vmul.f32 %v3144, 0.2
        %v3580 = vmul.f32 %v3146, 0.2
        %v3581 = vmul.f32 %v3483, 0.2
        %v3582 = vmul.f32 %v3485, 0.2
        %v3583 = vmul.f32 %v2811, 0.2
        %v3584 = vmul.f32 %v2813, 0.2
        %v3585 = vmul.f32 %v3150, 0.2
        %v3586 = vmul.f32 %v3152, 0.2
        %v3587 = vmul.f32 %v3489, 0.2
        %v3588 = vmul.f32 %v3491, 0.2
        %v3589 = vmul.f32 %v2817, 0.2
        %v3590 = vmul.f32 %v2819, 0.2
        %v3591 = vmul.f32 %v3156, 0.2
        %v3592 = vmul.f32 %v3158, 0.2
        %v3593 = vmul.f32 %v3495, 0.2
        %v3594 = vmul.f32 %v3497, 0.2
        %v3595 = vmul.f32 %v2823, 0.2
        %v3596 = vmul.f32 %v2825, 0.2
        %v3597 = vmul.f32 %v3162, 0.2
        %v3598 = vmul.f32 %v3164, 0.2
        %v3599 = vmul.f32 %v3501, 0.2
        %v3600 = vmul.f32 %v3503, 0.2
        %v3601 = vmul.f32 %v2829, 0.2
        %v3602 = vmul.f32 %v2831, 0.2
        %v3603 = vmul.f32 %v3168, 0.2
        %v3604 = vmul.f32 %v3170, 0.2
        %v3605 = vmul.f32 %v3507, 0.2
        %v3606 = vmul.f32 %v3509, 0.2
        %v3607 = vsel %vm3511, %v2787, %v3559
        %v3608 = vsel %vm3512, %v2789, %v3560
        %v3609 = vsel %vm3513, %v3126, %v3561
        %v3610 = vsel %vm3514, %v3128, %v3562
        %v3611 = vsel %vm3515, %v3465, %v3563
        %v3612 = vsel %vm3516, %v3467, %v3564
        %v3613 = vsel %vm3517, %v2793, %v3565
        %v3614 = vsel %vm3518, %v2795, %v3566
        %v3615 = vsel %vm3519, %v3132, %v3567
        %v3616 = vsel %vm3520, %v3134, %v3568
        %v3617 = vsel %vm3521, %v3471, %v3569
        %v3618 = vsel %vm3522, %v3473, %v3570
        %v3619 = vsel %vm3523, %v2799, %v3571
        %v3620 = vsel %vm3524, %v2801, %v3572
        %v3621 = vsel %vm3525, %v3138, %v3573
        %v3622 = vsel %vm3526, %v3140, %v3574
        %v3623 = vsel %vm3527, %v3477, %v3575
        %v3624 = vsel %vm3528, %v3479, %v3576
        %v3625 = vsel %vm3529, %v2805, %v3577
        %v3626 = vsel %vm3530, %v2807, %v3578
        %v3627 = vsel %vm3531, %v3144, %v3579
        %v3628 = vsel %vm3532, %v3146, %v3580
        %v3629 = vsel %vm3533, %v3483, %v3581
        %v3630 = vsel %vm3534, %v3485, %v3582
        %v3631 = vsel %vm3535, %v2811, %v3583
        %v3632 = vsel %vm3536, %v2813, %v3584
        %v3633 = vsel %vm3537, %v3150, %v3585
        %v3634 = vsel %vm3538, %v3152, %v3586
        %v3635 = vsel %vm3539, %v3489, %v3587
        %v3636 = vsel %vm3540, %v3491, %v3588
        %v3637 = vsel %vm3541, %v2817, %v3589
        %v3638 = vsel %vm3542, %v2819, %v3590
        %v3639 = vsel %vm3543, %v3156, %v3591
        %v3640 = vsel %vm3544, %v3158, %v3592
        %v3641 = vsel %vm3545, %v3495, %v3593
        %v3642 = vsel %vm3546, %v3497, %v3594
        %v3643 = vsel %vm3547, %v2823, %v3595
        %v3644 = vsel %vm3548, %v2825, %v3596
        %v3645 = vsel %vm3549, %v3162, %v3597
        %v3646 = vsel %vm3550, %v3164, %v3598
        %v3647 = vsel %vm3551, %v3501, %v3599
        %v3648 = vsel %vm3552, %v3503, %v3600
        %v3649 = vsel %vm3553, %v2829, %v3601
        %v3650 = vsel %vm3554, %v2831, %v3602
        %v3651 = vsel %vm3555, %v3168, %v3603
        %v3652 = vsel %vm3556, %v3170, %v3604
        %v3653 = vsel %vm3557, %v3507, %v3605
        %v3654 = vsel %vm3558, %v3509, %v3606
        %v3655 = vld [vmem:[%s3] sm:$0x3f]
        %v3657 = vlaneseq
        %v3658 = vshrl.u32 %v3657, 7
        %v3659 = vsub.s32 0, %v3658
        %v3660 = vrot.slane %v3655, %v3659
        %v3661 = vlaneseq
        %v3662 = vshrl.u32 %v3661, 7
        %v3663 = vsub.s32 1, %v3662
        %v3664 = vrot.slane %v3655, %v3663
        %v3665 = vlaneseq
        %v3666 = vshrl.u32 %v3665, 7
        %v3667 = vsub.s32 2, %v3666
        %v3668 = vrot.slane %v3655, %v3667
        %v3669 = vlaneseq
        %v3670 = vshrl.u32 %v3669, 7
        %v3671 = vsub.s32 3, %v3670
        %v3672 = vrot.slane %v3655, %v3671
        %v3673 = vlaneseq
        %v3674 = vshrl.u32 %v3673, 7
        %v3675 = vsub.s32 4, %v3674
        %v3676 = vrot.slane %v3655, %v3675
        %v3677 = vlaneseq
        %v3678 = vshrl.u32 %v3677, 7
        %v3679 = vsub.s32 5, %v3678
        %v3680 = vrot.slane %v3655, %v3679
        %v3687 = vmul.f32 %v3607, %v3660
        %v3688 = vmul.f32 %v3608, %v3664
        %v3689 = vmul.f32 %v3609, %v3668
        %v3690 = vmul.f32 %v3610, %v3672
        %v3691 = vmul.f32 %v3611, %v3676
        %v3692 = vmul.f32 %v3612, %v3680
        %v3693 = vmul.f32 %v3613, %v3660
        %v3694 = vmul.f32 %v3614, %v3664
        %v3695 = vmul.f32 %v3615, %v3668
        %v3696 = vmul.f32 %v3616, %v3672
        %v3697 = vmul.f32 %v3617, %v3676
        %v3698 = vmul.f32 %v3618, %v3680
        %v3699 = vmul.f32 %v3619, %v3660
        %v3700 = vmul.f32 %v3620, %v3664
        %v3701 = vmul.f32 %v3621, %v3668
        %v3702 = vmul.f32 %v3622, %v3672
        %v3703 = vmul.f32 %v3623, %v3676
        %v3704 = vmul.f32 %v3624, %v3680
        %v3705 = vmul.f32 %v3625, %v3660
        %v3706 = vmul.f32 %v3626, %v3664
        %v3707 = vmul.f32 %v3627, %v3668
        %v3708 = vmul.f32 %v3628, %v3672
        %v3709 = vmul.f32 %v3629, %v3676
        %v3710 = vmul.f32 %v3630, %v3680
        %v3711 = vmul.f32 %v3631, %v3660
        %v3712 = vmul.f32 %v3632, %v3664
        %v3713 = vmul.f32 %v3633, %v3668
        %v3714 = vmul.f32 %v3634, %v3672
        %v3715 = vmul.f32 %v3635, %v3676
        %v3716 = vmul.f32 %v3636, %v3680
        %v3717 = vmul.f32 %v3637, %v3660
        %v3718 = vmul.f32 %v3638, %v3664
        %v3719 = vmul.f32 %v3639, %v3668
        %v3720 = vmul.f32 %v3640, %v3672
        %v3721 = vmul.f32 %v3641, %v3676
        %v3722 = vmul.f32 %v3642, %v3680
        %v3723 = vmul.f32 %v3643, %v3660
        %v3724 = vmul.f32 %v3644, %v3664
        %v3725 = vmul.f32 %v3645, %v3668
        %v3726 = vmul.f32 %v3646, %v3672
        %v3727 = vmul.f32 %v3647, %v3676
        %v3728 = vmul.f32 %v3648, %v3680
        %v3729 = vmul.f32 %v3649, %v3660
        %v3730 = vmul.f32 %v3650, %v3664
        %v3731 = vmul.f32 %v3651, %v3668
        %v3732 = vmul.f32 %v3652, %v3672
        %v3733 = vmul.f32 %v3653, %v3676
        %v3734 = vmul.f32 %v3654, %v3680
        %3735 = vst [vmem:[%s4] sm:$0xff] %v3687
        %3736 = vst [vmem:[%s4 + $0x8] sm:$0xff] %v3688
        %3737 = vst [vmem:[%s4 + $0x10] sm:$0xff] %v3689
        %3738 = vst [vmem:[%s4 + $0x18] sm:$0xff] %v3690
        %3739 = vst [vmem:[%s4 + $0x20] sm:$0xff] %v3691
        %3740 = vst [vmem:[%s4 + $0x28] sm:$0xff] %v3692
        %3741 = vst [vmem:[%s4 + $0x30] sm:$0xff] %v3693
        %3742 = vst [vmem:[%s4 + $0x38] sm:$0xff] %v3694
        %3743 = vst [vmem:[%s4 + $0x40] sm:$0xff] %v3695
        %3744 = vst [vmem:[%s4 + $0x48] sm:$0xff] %v3696
        %3745 = vst [vmem:[%s4 + $0x50] sm:$0xff] %v3697
        %3746 = vst [vmem:[%s4 + $0x58] sm:$0xff] %v3698
        %3747 = vst [vmem:[%s4 + $0x60] sm:$0xff] %v3699
        %3748 = vst [vmem:[%s4 + $0x68] sm:$0xff] %v3700
        %3749 = vst [vmem:[%s4 + $0x70] sm:$0xff] %v3701
        %3750 = vst [vmem:[%s4 + $0x78] sm:$0xff] %v3702
        %3751 = vst [vmem:[%s4 + $0x80] sm:$0xff] %v3703
        %3752 = vst [vmem:[%s4 + $0x88] sm:$0xff] %v3704
        %3753 = vst [vmem:[%s4 + $0x90] sm:$0xff] %v3705
        %3754 = vst [vmem:[%s4 + $0x98] sm:$0xff] %v3706
        %3755 = vst [vmem:[%s4 + $0xa0] sm:$0xff] %v3707
        %3756 = vst [vmem:[%s4 + $0xa8] sm:$0xff] %v3708
        %3757 = vst [vmem:[%s4 + $0xb0] sm:$0xff] %v3709
        %3758 = vst [vmem:[%s4 + $0xb8] sm:$0xff] %v3710
        %3759 = vst [vmem:[%s4 + $0xc0] sm:$0xff] %v3711
        %3760 = vst [vmem:[%s4 + $0xc8] sm:$0xff] %v3712
        %3761 = vst [vmem:[%s4 + $0xd0] sm:$0xff] %v3713
        %3762 = vst [vmem:[%s4 + $0xd8] sm:$0xff] %v3714
        %3763 = vst [vmem:[%s4 + $0xe0] sm:$0xff] %v3715
        %3764 = vst [vmem:[%s4 + $0xe8] sm:$0xff] %v3716
        %3765 = vst [vmem:[%s4 + $0xf0] sm:$0xff] %v3717
        %3766 = vst [vmem:[%s4 + $0xf8] sm:$0xff] %v3718
        %3767 = vst [vmem:[%s4 + $0x100] sm:$0xff] %v3719
        %3768 = vst [vmem:[%s4 + $0x108] sm:$0xff] %v3720
        %3769 = vst [vmem:[%s4 + $0x110] sm:$0xff] %v3721
        %3770 = vst [vmem:[%s4 + $0x118] sm:$0xff] %v3722
        %3771 = vst [vmem:[%s4 + $0x120] sm:$0xff] %v3723
        %3772 = vst [vmem:[%s4 + $0x128] sm:$0xff] %v3724
        %3773 = vst [vmem:[%s4 + $0x130] sm:$0xff] %v3725
        %3774 = vst [vmem:[%s4 + $0x138] sm:$0xff] %v3726
        %3775 = vst [vmem:[%s4 + $0x140] sm:$0xff] %v3727
        %3776 = vst [vmem:[%s4 + $0x148] sm:$0xff] %v3728
        %3777 = vst [vmem:[%s4 + $0x150] sm:$0xff] %v3729
        %3778 = vst [vmem:[%s4 + $0x158] sm:$0xff] %v3730
        %3779 = vst [vmem:[%s4 + $0x160] sm:$0xff] %v3731
        %3780 = vst [vmem:[%s4 + $0x168] sm:$0xff] %v3732
        %3781 = vst [vmem:[%s4 + $0x170] sm:$0xff] %v3733
        %3782 = vst [vmem:[%s4 + $0x178] sm:$0xff] %v3734
      $region44: #{vel_net_forward.1} parent=35 // pred_fallthru
        _
      %p3783 = scmp.eq.s32.totalorder %s15, 20
      // Predicated region
      $region45: #{vel_net_forward.1} parent=35 // pred_check
        %p3784 = pneg %p3783
      $region46: #{vel_net_forward.1} parent=35 // pred_check_branch
        %3786 = sbr.rel (%p3784) target = $region48
      $region47: #{vel_net_forward.1} parent=35 // pred_region
        %v3787 = vld [vmem:[%s4] sm:$0xff]
        %v3788 = vld [vmem:[%s4 + $0x8] sm:$0xff]
        %v3789 = vld [vmem:[%s4 + $0x10] sm:$0xff]
        %v3790 = vld [vmem:[%s4 + $0x18] sm:$0xff]
        %v3791 = vld [vmem:[%s4 + $0x20] sm:$0xff]
        %v3792 = vld [vmem:[%s4 + $0x28] sm:$0xff]
        %v3793 = vld [vmem:[%s4 + $0x30] sm:$0xff]
        %v3794 = vld [vmem:[%s4 + $0x38] sm:$0xff]
        %v3795 = vld [vmem:[%s4 + $0x40] sm:$0xff]
        %v3796 = vld [vmem:[%s4 + $0x48] sm:$0xff]
        %v3797 = vld [vmem:[%s4 + $0x50] sm:$0xff]
        %v3798 = vld [vmem:[%s4 + $0x58] sm:$0xff]
        %v3799 = vld [vmem:[%s4 + $0x60] sm:$0xff]
        %v3800 = vld [vmem:[%s4 + $0x68] sm:$0xff]
        %v3801 = vld [vmem:[%s4 + $0x70] sm:$0xff]
        %v3802 = vld [vmem:[%s4 + $0x78] sm:$0xff]
        %v3803 = vld [vmem:[%s4 + $0x80] sm:$0xff]
        %v3804 = vld [vmem:[%s4 + $0x88] sm:$0xff]
        %v3805 = vld [vmem:[%s4 + $0x90] sm:$0xff]
        %v3806 = vld [vmem:[%s4 + $0x98] sm:$0xff]
        %v3807 = vld [vmem:[%s4 + $0xa0] sm:$0xff]
        %v3808 = vld [vmem:[%s4 + $0xa8] sm:$0xff]
        %v3809 = vld [vmem:[%s4 + $0xb0] sm:$0xff]
        %v3810 = vld [vmem:[%s4 + $0xb8] sm:$0xff]
        %v3811 = vld [vmem:[%s4 + $0xc0] sm:$0xff]
        %v3812 = vld [vmem:[%s4 + $0xc8] sm:$0xff]
        %v3813 = vld [vmem:[%s4 + $0xd0] sm:$0xff]
        %v3814 = vld [vmem:[%s4 + $0xd8] sm:$0xff]
        %v3815 = vld [vmem:[%s4 + $0xe0] sm:$0xff]
        %v3816 = vld [vmem:[%s4 + $0xe8] sm:$0xff]
        %v3817 = vld [vmem:[%s4 + $0xf0] sm:$0xff]
        %v3818 = vld [vmem:[%s4 + $0xf8] sm:$0xff]
        %v3819 = vld [vmem:[%s4 + $0x100] sm:$0xff]
        %v3820 = vld [vmem:[%s4 + $0x108] sm:$0xff]
        %v3821 = vld [vmem:[%s4 + $0x110] sm:$0xff]
        %v3822 = vld [vmem:[%s4 + $0x118] sm:$0xff]
        %v3823 = vld [vmem:[%s4 + $0x120] sm:$0xff]
        %v3824 = vld [vmem:[%s4 + $0x128] sm:$0xff]
        %v3825 = vld [vmem:[%s4 + $0x130] sm:$0xff]
        %v3826 = vld [vmem:[%s4 + $0x138] sm:$0xff]
        %v3827 = vld [vmem:[%s4 + $0x140] sm:$0xff]
        %v3828 = vld [vmem:[%s4 + $0x148] sm:$0xff]
        %v3829 = vld [vmem:[%s4 + $0x150] sm:$0xff]
        %v3830 = vld [vmem:[%s4 + $0x158] sm:$0xff]
        %v3831 = vld [vmem:[%s4 + $0x160] sm:$0xff]
        %v3832 = vld [vmem:[%s4 + $0x168] sm:$0xff]
        %v3833 = vld [vmem:[%s4 + $0x170] sm:$0xff]
        %v3834 = vld [vmem:[%s4 + $0x178] sm:$0xff]
        %v3835 = vld [vmem:[%s197 + $0x10] sm:$0xff]
        %v3836 = vld [vmem:[%s197 + $0x38] sm:$0xff]
        %v3837 = vld [vmem:[%s197 + $0x60] sm:$0xff]
        %v3838 = vld [vmem:[%s197 + $0x88] sm:$0xff]
        %v3839 = vld [vmem:[%s197 + $0xb0] sm:$0xff]
        %v3840 = vld [vmem:[%s197 + $0xd8] sm:$0xff]
        %v3841 = vld [vmem:[%s197 + $0x100] sm:$0xff]
        %v3842 = vld [vmem:[%s197 + $0x128] sm:$0xff]
        %v3843 = vld [vmem:[%s202] sm:$0xff]
        %v3844 = vld [vmem:[%s202 + $0x8] sm:$0xff]
        %v3845 = vld [vmem:[%s202 + $0x10] sm:$0xff]
        %v3846 = vld [vmem:[%s202 + $0x18] sm:$0xff]
        %v3847 = vld [vmem:[%s202 + $0x20] sm:$0xff]
        %v3848 = vld [vmem:[%s202 + $0x28] sm:$0xff]
        %v3849 = vld [vmem:[%s202 + $0x30] sm:$0xff]
        %v3850 = vld [vmem:[%s202 + $0x38] sm:$0xff]
        %3852 = vset.pattern.permute.xlu0 0
        %3853 = vperm.xlu0 %3852, %v3843
        %v3854 = vpop.permute.xlu0 %3853
        %3857 = vset.pattern.permute.xlu0 0
        %3858 = vperm.xlu0 %3857, %v3844
        %v3859 = vpop.permute.xlu0 %3858
        %3862 = vset.pattern.permute.xlu0 0
        %3863 = vperm.xlu0 %3862, %v3845
        %v3864 = vpop.permute.xlu0 %3863
        %3867 = vset.pattern.permute.xlu0 0
        %3868 = vperm.xlu0 %3867, %v3846
        %v3869 = vpop.permute.xlu0 %3868
        %3872 = vset.pattern.permute.xlu0 0
        %3873 = vperm.xlu0 %3872, %v3847
        %v3874 = vpop.permute.xlu0 %3873
        %3877 = vset.pattern.permute.xlu0 0
        %3878 = vperm.xlu0 %3877, %v3848
        %v3879 = vpop.permute.xlu0 %3878
        %3882 = vset.pattern.permute.xlu0 0
        %3883 = vperm.xlu0 %3882, %v3849
        %v3884 = vpop.permute.xlu0 %3883
        %3887 = vset.pattern.permute.xlu0 0
        %3888 = vperm.xlu0 %3887, %v3850
        %v3889 = vpop.permute.xlu0 %3888
        %vm3891 = vcmask 523264
        %v3893 = vsel %vm3891, %v3835, 0
        %v3896 = vsel %vm3891, %v3836, 0
        %v3899 = vsel %vm3891, %v3837, 0
        %v3902 = vsel %vm3891, %v3838, 0
        %v3905 = vsel %vm3891, %v3839, 0
        %v3908 = vsel %vm3891, %v3840, 0
        %v3911 = vsel %vm3891, %v3841, 0
        %v3914 = vsel %vm3891, %v3842, 0
        %3916 = vmatprep.subr.mxu0 %v3788
        %3917 = vmatpush1.msra.mxu0 %v3787
        %3918 = vmatprep.subr.mxu0 %v3794
        %3919 = vmatpush1.msra.mxu0 %v3793
        %3920 = vmatprep.subr.mxu0 %v3800
        %3921 = vmatpush1.msra.mxu0 %v3799
        %3922 = vmatprep.subr.mxu0 %v3806
        %3923 = vmatpush1.msra.mxu0 %v3805
        %3924 = vmatprep.subr.mxu0 %v3812
        %3925 = vmatpush1.msra.mxu0 %v3811
        %3926 = vmatprep.subr.mxu0 %v3818
        %3927 = vmatpush1.msra.mxu0 %v3817
        %3928 = vmatprep.subr.mxu0 %v3824
        %3929 = vmatpush1.msra.mxu0 %v3823
        %3930 = vmatprep.subr.mxu0 %v3830
        %3931 = vmatpush1.msra.mxu0 %v3829
        %3932 = vmatprep.subr.mxu0 0.0
        %3933 = vmatpush1.msra.mxu0 0.0
        %3934 = vmatprep.subr.mxu0 0.0
        %3935 = vmatpush1.msra.mxu0 0.0
        %3936 = vmatprep.subr.mxu0 0.0
        %3937 = vmatpush1.msra.mxu0 0.0
        %3938 = vmatprep.subr.mxu0 0.0
        %3939 = vmatpush1.msra.mxu0 0.0
        %3940 = vmatprep.subr.mxu0 0.0
        %3941 = vmatpush1.msra.mxu0 0.0
        %3942 = vmatprep.subr.mxu0 0.0
        %3943 = vmatpush1.msra.mxu0 0.0
        %3944 = vmatprep.subr.mxu0 0.0
        %3945 = vmatpush1.msra.mxu0 0.0
        %3946 = vmatprep.subr.mxu0 0.0
        %3947 = vmatpush1.msra.mxu0 0.0
        %3948 = vmatprep.subr.mxu0 0.0
        %3949 = vmatpush1.msra.mxu0 0.0
        %3950 = vmatprep.subr.mxu0 0.0
        %3951 = vmatpush1.msra.mxu0 0.0
        %3952 = vmatprep.subr.mxu0 0.0
        %3953 = vmatpush1.msra.mxu0 0.0
        %3954 = vmatprep.subr.mxu0 0.0
        %3955 = vmatpush1.msra.mxu0 0.0
        %3956 = vmatprep.subr.mxu0 0.0
        %3957 = vmatpush1.msra.mxu0 0.0
        %3958 = vmatprep.subr.mxu0 0.0
        %3959 = vmatpush1.msra.mxu0 0.0
        %3960 = vmatprep.subr.mxu0 0.0
        %3961 = vmatpush1.msra.mxu0 0.0
        %3962 = vmatprep.subr.mxu0 0.0
        %3963 = vmatpush1.msra.mxu0 0.0
        %3964 = vmatprep.subr.mxu0 0.0
        %3965 = vmatpush1.msra.mxu0 0.0
        %3966 = vmatprep.subr.mxu0 0.0
        %3967 = vmatpush1.msra.mxu0 0.0
        %3968 = vmatprep.subr.mxu0 0.0
        %3969 = vmatpush1.msra.mxu0 0.0
        %3970 = vmatprep.subr.mxu0 0.0
        %3971 = vmatpush1.msra.mxu0 0.0
        %3972 = vmatprep.subr.mxu0 0.0
        %3973 = vmatpush1.msra.mxu0 0.0
        %3974 = vmatprep.subr.mxu0 0.0
        %3975 = vmatpush1.msra.mxu0 0.0
        %3976 = vmatprep.subr.mxu0 0.0
        %3977 = vmatpush1.msra.mxu0 0.0
        %3978 = vmatprep.subr.mxu0 0.0
        %3979 = vmatpush1.msra.mxu0 0.0
        %3980 = vmatprep.mubr.f32.mxu0 0.0
        %3981 = vmatmul.mubr.f32.gmra.mrb[0].mxu0 %v3893
        %v3982 = vpop.f32.mrb[0].mxu0
        %v3983 = vadd.f32 %v3854, %v3982
        %v3984 = vpop.f32.mrb[0].mxu0
        %v3985 = vadd.f32 %v3854, %v3984
        %3986 = vmatprep.mubr.f32.mxu0 0.0
        %3987 = vmatmul.mubr.f32.gmra.mrb[0].mxu0 %v3896
        %v3988 = vpop.f32.mrb[0].mxu0
        %v3989 = vadd.f32 %v3859, %v3988
        %v3990 = vpop.f32.mrb[0].mxu0
        %v3991 = vadd.f32 %v3859, %v3990
        %3992 = vmatprep.mubr.f32.mxu0 0.0
        %3993 = vmatmul.mubr.f32.gmra.mrb[0].mxu0 %v3899
        %v3994 = vpop.f32.mrb[0].mxu0
        %v3995 = vadd.f32 %v3864, %v3994
        %v3996 = vpop.f32.mrb[0].mxu0
        %v3997 = vadd.f32 %v3864, %v3996
        %3998 = vmatprep.mubr.f32.mxu0 0.0
        %3999 = vmatmul.mubr.f32.gmra.mrb[0].mxu0 %v3902
        %v4000 = vpop.f32.mrb[0].mxu0
        %v4001 = vadd.f32 %v3869, %v4000
        %v4002 = vpop.f32.mrb[0].mxu0
        %v4003 = vadd.f32 %v3869, %v4002
        %4004 = vmatprep.mubr.f32.mxu0 0.0
        %4005 = vmatmul.mubr.f32.gmra.mrb[0].mxu0 %v3905
        %v4006 = vpop.f32.mrb[0].mxu0
        %v4007 = vadd.f32 %v3874, %v4006
        %v4008 = vpop.f32.mrb[0].mxu0
        %v4009 = vadd.f32 %v3874, %v4008
        %4010 = vmatprep.mubr.f32.mxu0 0.0
        %4011 = vmatmul.mubr.f32.gmra.mrb[0].mxu0 %v3908
        %v4012 = vpop.f32.mrb[0].mxu0
        %v4013 = vadd.f32 %v3879, %v4012
        %v4014 = vpop.f32.mrb[0].mxu0
        %v4015 = vadd.f32 %v3879, %v4014
        %4016 = vmatprep.mubr.f32.mxu0 0.0
        %4017 = vmatmul.mubr.f32.gmra.mrb[0].mxu0 %v3911
        %v4018 = vpop.f32.mrb[0].mxu0
        %v4019 = vadd.f32 %v3884, %v4018
        %v4020 = vpop.f32.mrb[0].mxu0
        %v4021 = vadd.f32 %v3884, %v4020
        %4022 = vmatprep.mubr.f32.mxu0 0.0
        %4023 = vmatmul.mubr.f32.gmra.mrb[0].mxu0 %v3914
        %v4024 = vpop.f32.mrb[0].mxu0
        %v4025 = vadd.f32 %v3889, %v4024
        %v4026 = vpop.f32.mrb[0].mxu0
        %v4027 = vadd.f32 %v3889, %v4026
        %4028 = vdwg.mxu0
        %4029 = vmatprep.subr.mxu0 %v3790
        %4030 = vmatpush1.msra.mxu0 %v3789
        %4031 = vmatprep.subr.mxu0 %v3796
        %4032 = vmatpush1.msra.mxu0 %v3795
        %4033 = vmatprep.subr.mxu0 %v3802
        %4034 = vmatpush1.msra.mxu0 %v3801
        %4035 = vmatprep.subr.mxu0 %v3808
        %4036 = vmatpush1.msra.mxu0 %v3807
        %4037 = vmatprep.subr.mxu0 %v3814
        %4038 = vmatpush1.msra.mxu0 %v3813
        %4039 = vmatprep.subr.mxu0 %v3820
        %4040 = vmatpush1.msra.mxu0 %v3819
        %4041 = vmatprep.subr.mxu0 %v3826
        %4042 = vmatpush1.msra.mxu0 %v3825
        %4043 = vmatprep.subr.mxu0 %v3832
        %4044 = vmatpush1.msra.mxu0 %v3831
        %4045 = vmatprep.subr.mxu0 0.0
        %4046 = vmatpush1.msra.mxu0 0.0
        %4047 = vmatprep.subr.mxu0 0.0
        %4048 = vmatpush1.msra.mxu0 0.0
        %4049 = vmatprep.subr.mxu0 0.0
        %4050 = vmatpush1.msra.mxu0 0.0
        %4051 = vmatprep.subr.mxu0 0.0
        %4052 = vmatpush1.msra.mxu0 0.0
        %4053 = vmatprep.subr.mxu0 0.0
        %4054 = vmatpush1.msra.mxu0 0.0
        %4055 = vmatprep.subr.mxu0 0.0
        %4056 = vmatpush1.msra.mxu0 0.0
        %4057 = vmatprep.subr.mxu0 0.0
        %4058 = vmatpush1.msra.mxu0 0.0
        %4059 = vmatprep.subr.mxu0 0.0
        %4060 = vmatpush1.msra.mxu0 0.0
        %4061 = vmatprep.subr.mxu0 0.0
        %4062 = vmatpush1.msra.mxu0 0.0
        %4063 = vmatprep.subr.mxu0 0.0
        %4064 = vmatpush1.msra.mxu0 0.0
        %4065 = vmatprep.subr.mxu0 0.0
        %4066 = vmatpush1.msra.mxu0 0.0
        %4067 = vmatprep.subr.mxu0 0.0
        %4068 = vmatpush1.msra.mxu0 0.0
        %4069 = vmatprep.subr.mxu0 0.0
        %4070 = vmatpush1.msra.mxu0 0.0
        %4071 = vmatprep.subr.mxu0 0.0
        %4072 = vmatpush1.msra.mxu0 0.0
        %4073 = vmatprep.subr.mxu0 0.0
        %4074 = vmatpush1.msra.mxu0 0.0
        %4075 = vmatprep.subr.mxu0 0.0
        %4076 = vmatpush1.msra.mxu0 0.0
        %4077 = vmatprep.subr.mxu0 0.0
        %4078 = vmatpush1.msra.mxu0 0.0
        %4079 = vmatprep.subr.mxu0 0.0
        %4080 = vmatpush1.msra.mxu0 0.0
        %4081 = vmatprep.subr.mxu0 0.0
        %4082 = vmatpush1.msra.mxu0 0.0
        %4083 = vmatprep.subr.mxu0 0.0
        %4084 = vmatpush1.msra.mxu0 0.0
        %4085 = vmatprep.subr.mxu0 0.0
        %4086 = vmatpush1.msra.mxu0 0.0
        %4087 = vmatprep.subr.mxu0 0.0
        %4088 = vmatpush1.msra.mxu0 0.0
        %4089 = vmatprep.subr.mxu0 0.0
        %4090 = vmatpush1.msra.mxu0 0.0
        %4091 = vmatprep.subr.mxu0 0.0
        %4092 = vmatpush1.msra.mxu0 0.0
        %4093 = vmatprep.mubr.f32.mxu0 0.0
        %4094 = vmatmul.mubr.f32.gmra.mrb[0].mxu0 %v3893
        %v4095 = vpop.f32.mrb[0].mxu0
        %v4096 = vadd.f32 %v3854, %v4095
        %v4097 = vpop.f32.mrb[0].mxu0
        %v4098 = vadd.f32 %v3854, %v4097
        %4099 = vmatprep.mubr.f32.mxu0 0.0
        %4100 = vmatmul.mubr.f32.gmra.mrb[0].mxu0 %v3896
        %v4101 = vpop.f32.mrb[0].mxu0
        %v4102 = vadd.f32 %v3859, %v4101
        %v4103 = vpop.f32.mrb[0].mxu0
        %v4104 = vadd.f32 %v3859, %v4103
        %4105 = vmatprep.mubr.f32.mxu0 0.0
        %4106 = vmatmul.mubr.f32.gmra.mrb[0].mxu0 %v3899
        %v4107 = vpop.f32.mrb[0].mxu0
        %v4108 = vadd.f32 %v3864, %v4107
        %v4109 = vpop.f32.mrb[0].mxu0
        %v4110 = vadd.f32 %v3864, %v4109
        %4111 = vmatprep.mubr.f32.mxu0 0.0
        %4112 = vmatmul.mubr.f32.gmra.mrb[0].mxu0 %v3902
        %v4113 = vpop.f32.mrb[0].mxu0
        %v4114 = vadd.f32 %v3869, %v4113
        %v4115 = vpop.f32.mrb[0].mxu0
        %v4116 = vadd.f32 %v3869, %v4115
        %4117 = vmatprep.mubr.f32.mxu0 0.0
        %4118 = vmatmul.mubr.f32.gmra.mrb[0].mxu0 %v3905
        %v4119 = vpop.f32.mrb[0].mxu0
        %v4120 = vadd.f32 %v3874, %v4119
        %v4121 = vpop.f32.mrb[0].mxu0
        %v4122 = vadd.f32 %v3874, %v4121
        %4123 = vmatprep.mubr.f32.mxu0 0.0
        %4124 = vmatmul.mubr.f32.gmra.mrb[0].mxu0 %v3908
        %v4125 = vpop.f32.mrb[0].mxu0
        %v4126 = vadd.f32 %v3879, %v4125
        %v4127 = vpop.f32.mrb[0].mxu0
        %v4128 = vadd.f32 %v3879, %v4127
        %4129 = vmatprep.mubr.f32.mxu0 0.0
        %4130 = vmatmul.mubr.f32.gmra.mrb[0].mxu0 %v3911
        %v4131 = vpop.f32.mrb[0].mxu0
        %v4132 = vadd.f32 %v3884, %v4131
        %v4133 = vpop.f32.mrb[0].mxu0
        %v4134 = vadd.f32 %v3884, %v4133
        %4135 = vmatprep.mubr.f32.mxu0 0.0
        %4136 = vmatmul.mubr.f32.gmra.mrb[0].mxu0 %v3914
        %v4137 = vpop.f32.mrb[0].mxu0
        %v4138 = vadd.f32 %v3889, %v4137
        %v4139 = vpop.f32.mrb[0].mxu0
        %v4140 = vadd.f32 %v3889, %v4139
        %4141 = vdwg.mxu0
        %4142 = vmatprep.subr.mxu0 %v3792
        %4143 = vmatpush1.msra.mxu0 %v3791
        %4144 = vmatprep.subr.mxu0 %v3798
        %4145 = vmatpush1.msra.mxu0 %v3797
        %4146 = vmatprep.subr.mxu0 %v3804
        %4147 = vmatpush1.msra.mxu0 %v3803
        %4148 = vmatprep.subr.mxu0 %v3810
        %4149 = vmatpush1.msra.mxu0 %v3809
        %4150 = vmatprep.subr.mxu0 %v3816
        %4151 = vmatpush1.msra.mxu0 %v3815
        %4152 = vmatprep.subr.mxu0 %v3822
        %4153 = vmatpush1.msra.mxu0 %v3821
        %4154 = vmatprep.subr.mxu0 %v3828
        %4155 = vmatpush1.msra.mxu0 %v3827
        %4156 = vmatprep.subr.mxu0 %v3834
        %4157 = vmatpush1.msra.mxu0 %v3833
        %4158 = vmatprep.subr.mxu0 0.0
        %4159 = vmatpush1.msra.mxu0 0.0
        %4160 = vmatprep.subr.mxu0 0.0
        %4161 = vmatpush1.msra.mxu0 0.0
        %4162 = vmatprep.subr.mxu0 0.0
        %4163 = vmatpush1.msra.mxu0 0.0
        %4164 = vmatprep.subr.mxu0 0.0
        %4165 = vmatpush1.msra.mxu0 0.0
        %4166 = vmatprep.subr.mxu0 0.0
        %4167 = vmatpush1.msra.mxu0 0.0
        %4168 = vmatprep.subr.mxu0 0.0
        %4169 = vmatpush1.msra.mxu0 0.0
        %4170 = vmatprep.subr.mxu0 0.0
        %4171 = vmatpush1.msra.mxu0 0.0
        %4172 = vmatprep.subr.mxu0 0.0
        %4173 = vmatpush1.msra.mxu0 0.0
        %4174 = vmatprep.subr.mxu0 0.0
        %4175 = vmatpush1.msra.mxu0 0.0
        %4176 = vmatprep.subr.mxu0 0.0
        %4177 = vmatpush1.msra.mxu0 0.0
        %4178 = vmatprep.subr.mxu0 0.0
        %4179 = vmatpush1.msra.mxu0 0.0
        %4180 = vmatprep.subr.mxu0 0.0
        %4181 = vmatpush1.msra.mxu0 0.0
        %4182 = vmatprep.subr.mxu0 0.0
        %4183 = vmatpush1.msra.mxu0 0.0
        %4184 = vmatprep.subr.mxu0 0.0
        %4185 = vmatpush1.msra.mxu0 0.0
        %4186 = vmatprep.subr.mxu0 0.0
        %4187 = vmatpush1.msra.mxu0 0.0
        %4188 = vmatprep.subr.mxu0 0.0
        %4189 = vmatpush1.msra.mxu0 0.0
        %4190 = vmatprep.subr.mxu0 0.0
        %4191 = vmatpush1.msra.mxu0 0.0
        %4192 = vmatprep.subr.mxu0 0.0
        %4193 = vmatpush1.msra.mxu0 0.0
        %4194 = vmatprep.subr.mxu0 0.0
        %4195 = vmatpush1.msra.mxu0 0.0
        %4196 = vmatprep.subr.mxu0 0.0
        %4197 = vmatpush1.msra.mxu0 0.0
        %4198 = vmatprep.subr.mxu0 0.0
        %4199 = vmatpush1.msra.mxu0 0.0
        %4200 = vmatprep.subr.mxu0 0.0
        %4201 = vmatpush1.msra.mxu0 0.0
        %4202 = vmatprep.subr.mxu0 0.0
        %4203 = vmatpush1.msra.mxu0 0.0
        %4204 = vmatprep.subr.mxu0 0.0
        %4205 = vmatpush1.msra.mxu0 0.0
        %4206 = vmatprep.mubr.f32.mxu0 0.0
        %4207 = vmatmul.mubr.f32.gmra.mrb[0].mxu0 %v3893
        %v4208 = vpop.f32.mrb[0].mxu0
        %v4209 = vadd.f32 %v3854, %v4208
        %v4210 = vpop.f32.mrb[0].mxu0
        %v4211 = vadd.f32 %v3854, %v4210
        %4212 = vmatprep.mubr.f32.mxu0 0.0
        %4213 = vmatmul.mubr.f32.gmra.mrb[0].mxu0 %v3896
        %v4214 = vpop.f32.mrb[0].mxu0
        %v4215 = vadd.f32 %v3859, %v4214
        %v4216 = vpop.f32.mrb[0].mxu0
        %v4217 = vadd.f32 %v3859, %v4216
        %4218 = vmatprep.mubr.f32.mxu0 0.0
        %4219 = vmatmul.mubr.f32.gmra.mrb[0].mxu0 %v3899
        %v4220 = vpop.f32.mrb[0].mxu0
        %v4221 = vadd.f32 %v3864, %v4220
        %v4222 = vpop.f32.mrb[0].mxu0
        %v4223 = vadd.f32 %v3864, %v4222
        %4224 = vmatprep.mubr.f32.mxu0 0.0
        %4225 = vmatmul.mubr.f32.gmra.mrb[0].mxu0 %v3902
        %v4226 = vpop.f32.mrb[0].mxu0
        %v4227 = vadd.f32 %v3869, %v4226
        %v4228 = vpop.f32.mrb[0].mxu0
        %v4229 = vadd.f32 %v3869, %v4228
        %4230 = vmatprep.mubr.f32.mxu0 0.0
        %4231 = vmatmul.mubr.f32.gmra.mrb[0].mxu0 %v3905
        %v4232 = vpop.f32.mrb[0].mxu0
        %v4233 = vadd.f32 %v3874, %v4232
        %v4234 = vpop.f32.mrb[0].mxu0
        %v4235 = vadd.f32 %v3874, %v4234
        %4236 = vmatprep.mubr.f32.mxu0 0.0
        %4237 = vmatmul.mubr.f32.gmra.mrb[0].mxu0 %v3908
        %v4238 = vpop.f32.mrb[0].mxu0
        %v4239 = vadd.f32 %v3879, %v4238
        %v4240 = vpop.f32.mrb[0].mxu0
        %v4241 = vadd.f32 %v3879, %v4240
        %4242 = vmatprep.mubr.f32.mxu0 0.0
        %4243 = vmatmul.mubr.f32.gmra.mrb[0].mxu0 %v3911
        %v4244 = vpop.f32.mrb[0].mxu0
        %v4245 = vadd.f32 %v3884, %v4244
        %v4246 = vpop.f32.mrb[0].mxu0
        %v4247 = vadd.f32 %v3884, %v4246
        %4248 = vmatprep.mubr.f32.mxu0 0.0
        %4249 = vmatmul.mubr.f32.gmra.mrb[0].mxu0 %v3914
        %v4250 = vpop.f32.mrb[0].mxu0
        %v4251 = vadd.f32 %v3889, %v4250
        %v4252 = vpop.f32.mrb[0].mxu0
        %v4253 = vadd.f32 %v3889, %v4252
        %4254 = vdwg.mxu0
        %v4255 = vld [vmem:[%s3] sm:$0x3f]
        %v4257 = vlaneseq
        %v4258 = vshrl.u32 %v4257, 7
        %v4259 = vsub.s32 0, %v4258
        %v4260 = vrot.slane %v4255, %v4259
        %v4261 = vlaneseq
        %v4262 = vshrl.u32 %v4261, 7
        %v4263 = vsub.s32 1, %v4262
        %v4264 = vrot.slane %v4255, %v4263
        %v4265 = vlaneseq
        %v4266 = vshrl.u32 %v4265, 7
        %v4267 = vsub.s32 2, %v4266
        %v4268 = vrot.slane %v4255, %v4267
        %v4269 = vlaneseq
        %v4270 = vshrl.u32 %v4269, 7
        %v4271 = vsub.s32 3, %v4270
        %v4272 = vrot.slane %v4255, %v4271
        %v4273 = vlaneseq
        %v4274 = vshrl.u32 %v4273, 7
        %v4275 = vsub.s32 4, %v4274
        %v4276 = vrot.slane %v4255, %v4275
        %v4277 = vlaneseq
        %v4278 = vshrl.u32 %v4277, 7
        %v4279 = vsub.s32 5, %v4278
        %v4280 = vrot.slane %v4255, %v4279
        %v4287 = vmul.f32 %v3983, %v4260
        %v4288 = vmul.f32 %v3985, %v4264
        %v4289 = vmul.f32 %v4096, %v4268
        %v4290 = vmul.f32 %v4098, %v4272
        %v4291 = vmul.f32 %v4209, %v4276
        %v4292 = vmul.f32 %v4211, %v4280
        %v4293 = vmul.f32 %v3989, %v4260
        %v4294 = vmul.f32 %v3991, %v4264
        %v4295 = vmul.f32 %v4102, %v4268
        %v4296 = vmul.f32 %v4104, %v4272
        %v4297 = vmul.f32 %v4215, %v4276
        %v4298 = vmul.f32 %v4217, %v4280
        %v4299 = vmul.f32 %v3995, %v4260
        %v4300 = vmul.f32 %v3997, %v4264
        %v4301 = vmul.f32 %v4108, %v4268
        %v4302 = vmul.f32 %v4110, %v4272
        %v4303 = vmul.f32 %v4221, %v4276
        %v4304 = vmul.f32 %v4223, %v4280
        %v4305 = vmul.f32 %v4001, %v4260
        %v4306 = vmul.f32 %v4003, %v4264
        %v4307 = vmul.f32 %v4114, %v4268
        %v4308 = vmul.f32 %v4116, %v4272
        %v4309 = vmul.f32 %v4227, %v4276
        %v4310 = vmul.f32 %v4229, %v4280
        %v4311 = vmul.f32 %v4007, %v4260
        %v4312 = vmul.f32 %v4009, %v4264
        %v4313 = vmul.f32 %v4120, %v4268
        %v4314 = vmul.f32 %v4122, %v4272
        %v4315 = vmul.f32 %v4233, %v4276
        %v4316 = vmul.f32 %v4235, %v4280
        %v4317 = vmul.f32 %v4013, %v4260
        %v4318 = vmul.f32 %v4015, %v4264
        %v4319 = vmul.f32 %v4126, %v4268
        %v4320 = vmul.f32 %v4128, %v4272
        %v4321 = vmul.f32 %v4239, %v4276
        %v4322 = vmul.f32 %v4241, %v4280
        %v4323 = vmul.f32 %v4019, %v4260
        %v4324 = vmul.f32 %v4021, %v4264
        %v4325 = vmul.f32 %v4132, %v4268
        %v4326 = vmul.f32 %v4134, %v4272
        %v4327 = vmul.f32 %v4245, %v4276
        %v4328 = vmul.f32 %v4247, %v4280
        %v4329 = vmul.f32 %v4025, %v4260
        %v4330 = vmul.f32 %v4027, %v4264
        %v4331 = vmul.f32 %v4138, %v4268
        %v4332 = vmul.f32 %v4140, %v4272
        %v4333 = vmul.f32 %v4251, %v4276
        %v4334 = vmul.f32 %v4253, %v4280
        %4335 = vst [vmem:[%s4] sm:$0xff] %v4287
        %4336 = vst [vmem:[%s4 + $0x8] sm:$0xff] %v4288
        %4337 = vst [vmem:[%s4 + $0x10] sm:$0xff] %v4289
        %4338 = vst [vmem:[%s4 + $0x18] sm:$0xff] %v4290
        %4339 = vst [vmem:[%s4 + $0x20] sm:$0xff] %v4291
        %4340 = vst [vmem:[%s4 + $0x28] sm:$0xff] %v4292
        %4341 = vst [vmem:[%s4 + $0x30] sm:$0xff] %v4293
        %4342 = vst [vmem:[%s4 + $0x38] sm:$0xff] %v4294
        %4343 = vst [vmem:[%s4 + $0x40] sm:$0xff] %v4295
        %4344 = vst [vmem:[%s4 + $0x48] sm:$0xff] %v4296
        %4345 = vst [vmem:[%s4 + $0x50] sm:$0xff] %v4297
        %4346 = vst [vmem:[%s4 + $0x58] sm:$0xff] %v4298
        %4347 = vst [vmem:[%s4 + $0x60] sm:$0xff] %v4299
        %4348 = vst [vmem:[%s4 + $0x68] sm:$0xff] %v4300
        %4349 = vst [vmem:[%s4 + $0x70] sm:$0xff] %v4301
        %4350 = vst [vmem:[%s4 + $0x78] sm:$0xff] %v4302
        %4351 = vst [vmem:[%s4 + $0x80] sm:$0xff] %v4303
        %4352 = vst [vmem:[%s4 + $0x88] sm:$0xff] %v4304
        %4353 = vst [vmem:[%s4 + $0x90] sm:$0xff] %v4305
        %4354 = vst [vmem:[%s4 + $0x98] sm:$0xff] %v4306
        %4355 = vst [vmem:[%s4 + $0xa0] sm:$0xff] %v4307
        %4356 = vst [vmem:[%s4 + $0xa8] sm:$0xff] %v4308
        %4357 = vst [vmem:[%s4 + $0xb0] sm:$0xff] %v4309
        %4358 = vst [vmem:[%s4 + $0xb8] sm:$0xff] %v4310
        %4359 = vst [vmem:[%s4 + $0xc0] sm:$0xff] %v4311
        %4360 = vst [vmem:[%s4 + $0xc8] sm:$0xff] %v4312
        %4361 = vst [vmem:[%s4 + $0xd0] sm:$0xff] %v4313
        %4362 = vst [vmem:[%s4 + $0xd8] sm:$0xff] %v4314
        %4363 = vst [vmem:[%s4 + $0xe0] sm:$0xff] %v4315
        %4364 = vst [vmem:[%s4 + $0xe8] sm:$0xff] %v4316
        %4365 = vst [vmem:[%s4 + $0xf0] sm:$0xff] %v4317
        %4366 = vst [vmem:[%s4 + $0xf8] sm:$0xff] %v4318
        %4367 = vst [vmem:[%s4 + $0x100] sm:$0xff] %v4319
        %4368 = vst [vmem:[%s4 + $0x108] sm:$0xff] %v4320
        %4369 = vst [vmem:[%s4 + $0x110] sm:$0xff] %v4321
        %4370 = vst [vmem:[%s4 + $0x118] sm:$0xff] %v4322
        %4371 = vst [vmem:[%s4 + $0x120] sm:$0xff] %v4323
        %4372 = vst [vmem:[%s4 + $0x128] sm:$0xff] %v4324
        %4373 = vst [vmem:[%s4 + $0x130] sm:$0xff] %v4325
        %4374 = vst [vmem:[%s4 + $0x138] sm:$0xff] %v4326
        %4375 = vst [vmem:[%s4 + $0x140] sm:$0xff] %v4327
        %4376 = vst [vmem:[%s4 + $0x148] sm:$0xff] %v4328
        %4377 = vst [vmem:[%s4 + $0x150] sm:$0xff] %v4329
        %4378 = vst [vmem:[%s4 + $0x158] sm:$0xff] %v4330
        %4379 = vst [vmem:[%s4 + $0x160] sm:$0xff] %v4331
        %4380 = vst [vmem:[%s4 + $0x168] sm:$0xff] %v4332
        %4381 = vst [vmem:[%s4 + $0x170] sm:$0xff] %v4333
        %4382 = vst [vmem:[%s4 + $0x178] sm:$0xff] %v4334
      $region48: #{vel_net_forward.1} parent=35 // pred_fallthru
        _
      // Predicated region
      $region49: #{vel_net_forward.1} parent=35 // pred_check
        %p4383 = pneg %p122
      $region50: #{vel_net_forward.1} parent=35 // pred_check_branch
        %4385 = sbr.rel (%p4383) target = $region52
      $region51: #{vel_net_forward.1} parent=35 // pred_region
        _
      $region52: #{vel_net_forward.1} parent=35 // pred_fallthru
        _
      // Predicated region
      $region53: #{vel_net_forward.1} parent=35 // pred_check
        %p4386 = pneg %p122
      $region54: #{vel_net_forward.1} parent=35 // pred_check_branch
        %4388 = sbr.rel (%p4386) target = $region56
      $region55: #{vel_net_forward.1} parent=35 // pred_region
        _
      $region56: #{vel_net_forward.1} parent=35 // pred_fallthru
        _
    $region36: #{vel_net_forward.1} parent=5 // pred_fallthru
      _
    %p4389 = scmp.le.s32.totalorder 2, %s10
    // Predicated region
    $region57: #{vel_net_forward.1} parent=5 // pred_check
      %p4390 = pneg %p4389
    $region58: #{vel_net_forward.1} parent=5 // pred_check_branch
      %4392 = sbr.rel (%p4390) target = $region60
    $region59: #{vel_net_forward.1} parent=5 // pred_region
      %s4393 = ssub.s32 %s10, 2
    $region60: #{vel_net_forward.1} parent=5 // pred_fallthru
      _
  $region6: #{vel_net_forward.1} parent=0 // loop_footer
    %s14 = sadd.s32 1, %s10
  $region7: #{vel_net_forward.1} parent=0 // loop_footer_branch
    %9 = sbr.rel target = $region3
  $region8: #{vel_net_forward.1} parent=0 // loop_exit
    _

</llo_original>
